<compile_context>
chip_gen: v6e
topology: v6e:2x2x1
jax: 0.10.0
libtpu: 0.0.40
codegen_flags: <defaults>
</compile_context>

<pallas_src>
import jax
import jax.numpy as jnp
from jax import lax
from jax.experimental import pallas as pl
from jax.experimental.pallas import tpu as pltpu

_MASK_VALUE = -1e30  # finite "minus infinity": exp underflows to 0, never produces NaN


def _round_up(x, m):
    return ((x + m - 1) // m) * m


def _bahdanau_kernel(
    inp_ref,        # (Bt, Dp_in)
    ctx_ref,        # (Bt, Lp, Dp_ctx)
    mask_ref,       # (Bt, Lp) int32, nonzero => masked
    w_in_cat_ref,   # (Dp_in, Dp_ctx + Dp_in)   [W_in | W_out_in], shared-LHS fusion
    b_comb_ref,     # (1, Dp_ctx)               b_in + b_ctx (folded)
    w_ctx_ref,      # (Dp_ctx, Dp_ctx)
    w_score_ref,    # (1, Dp_ctx)               score_proj weight, no bias
    w_out_x_ref,    # (Dp_ctx, Dp_in)           rows of output_proj acting on context vec
    b_out_ref,      # (1, Dp_in)
    x_out_ref,      # (Bt, Dp_in)
    attn_out_ref,   # (Bt, Lp)
):
    Bt, Lp, Dc = ctx_ref.shape
    inp = inp_ref[...]          # native dtype straight into the MXU
    ctx = ctx_ref[...]

    # One MXU matmul for both input-side projections: (Bt, Dp_ctx + Dp_in)
    proj_cat = jnp.dot(inp, w_in_cat_ref[...], preferred_element_type=jnp.float32)
    proj_in = proj_cat[:, :Dc] + b_comb_ref[...]     # input_proj(input) + (b_in + b_ctx)
    proj_out_in = proj_cat[:, Dc:]                   # input @ W_out[D_ctx:, :]

    # context_proj(context) (bias already folded above): one 2-D MXU matmul, M = Bt*Lp
    ctx2d = ctx.reshape(Bt * Lp, Dc)
    proj_ctx = jnp.dot(
        ctx2d, w_ctx_ref[...], preferred_element_type=jnp.float32
    ).reshape(Bt, Lp, Dc)

    # score_proj(tanh(...)): EUP tanh, VPU multiply, lane (XLU) reduce   -> (Bt, Lp)
    pre = jnp.tanh(proj_in[:, None, :] + proj_ctx)
    scores = jnp.sum(pre * w_score_ref[...], axis=-1)

    # masked_fill_ with a large finite negative (no NaNs if a row is fully masked)
    scores = jnp.where(mask_ref[...] != 0, _MASK_VALUE, scores)

    # softmax over L; the divide goes to the EUP via approximate reciprocal
    m = jnp.max(scores, axis=-1, keepdims=True)
    e = jnp.exp(scores - m)
    attn = e * pl.reciprocal(jnp.sum(e, axis=-1, keepdims=True), approx=True)

    # weighted context sum on the MXU: batch over Bt, contract over L    -> (Bt, Dp_ctx)
    attn_mm = attn.astype(ctx.dtype)[:, None, :]                 # (Bt, 1, Lp)
    xctx = lax.dot_general(
        attn_mm, ctx,
        dimension_numbers=(((2,), (1,)), ((0,), (0,))),
        preferred_element_type=jnp.float32,
    ).reshape(Bt, Dc)

    # tanh(output_proj(cat((xctx, input), dim=1)))
    #   = tanh(xctx @ W_out[:D_ctx] + input @ W_out[D_ctx:] + b_out)
    out = jnp.tanh(
        jnp.dot(xctx.astype(w_out_x_ref.dtype), w_out_x_ref[...],
                preferred_element_type=jnp.float32)
        + proj_out_in
        + b_out_ref[...]
    )

    x_out_ref[...] = out.astype(x_out_ref.dtype)
    attn_out_ref[...] = attn.astype(attn_out_ref.dtype)


def bahdanau_attention(input, context, params, context_mask=None, *, block_b=None):
    """Pallas forward. input: (B, D_in), context: (B, L, D_ctx),
    context_mask: optional (B, L) bool (True => masked). Returns (x, attn_scores)."""
    B, D_in = input.shape
    _, L, D_ctx = context.shape
    w_in, b_in, w_ctx, b_ctx, w_score, w_out, b_out = params

    # cat order is (context_vec, input): split output_proj rows accordingly.
    w_out_x = w_out[:D_ctx, :]     # (D_ctx, D_in)
    w_out_in = w_out[D_ctx:, :]    # (D_in, D_in)

    # ---- lane/sublane-friendly padded shapes --------------------------------
    Dp_in = _round_up(D_in, 128)
    Dp_ctx = _round_up(D_ctx, 128)
    Lp = _round_up(L, 128)

    ctx_itemsize = context.dtype.itemsize
    if block_b is None:
        # Keep the double-buffered context tile (the dominant HBM stream) well under
        # the tightest generation's VMEM (v7x: 64 MiB per TensorCore, ~32 MiB scoped),
        # leaving room for the f32 (Bt, Lp, Dp_ctx) projection/tanh intermediates.
        block_b = 256
        while block_b > 8 and 2 * block_b * Lp * Dp_ctx * ctx_itemsize > (8 << 20):
            block_b //= 2
    block_b = max(8, _round_up(min(block_b, _round_up(B, 8)), 8))
    Bp = _round_up(B, block_b)
    grid = (Bp // block_b,)

    # ---- zero-pad data; mask padded key positions ----------------------------
    f32 = jnp.float32
    inp_p = jnp.zeros((Bp, Dp_in), input.dtype).at[:B, :D_in].set(input)
    ctx_p = jnp.zeros((Bp, Lp, Dp_ctx), context.dtype).at[:B, :L, :D_ctx].set(context)
    mask_p = jnp.ones((Bp, Lp), jnp.int32)          # padded keys / padded rows masked
    if context_mask is None:
        mask_p = mask_p.at[:B, :L].set(0)
    else:
        mask_p = mask_p.at[:B, :L].set(context_mask.astype(jnp.int32))

    # Fused input-side weight [W_in | W_out_in]; combined bias b_in + b_ctx.
    w_in_cat_p = jnp.zeros((Dp_in, Dp_ctx + Dp_in), f32)
    w_in_cat_p = w_in_cat_p.at[:D_in, :D_ctx].set(w_in)
    w_in_cat_p = w_in_cat_p.at[:D_in, Dp_ctx:Dp_ctx + D_in].set(w_out_in)
    b_comb_p = jnp.zeros((1, Dp_ctx), f32).at[:, :D_ctx].set(b_in + b_ctx)
    w_ctx_p = jnp.zeros((Dp_ctx, Dp_ctx), f32).at[:D_ctx, :D_ctx].set(w_ctx)
    w_score_p = jnp.zeros((1, Dp_ctx), f32).at[:, :D_ctx].set(w_score)
    w_out_x_p = jnp.zeros((Dp_ctx, Dp_in), f32).at[:D_ctx, :D_in].set(w_out_x)
    b_out_p = jnp.zeros((1, Dp_in), f32).at[:, :D_in].set(b_out)

    # ---- specs: batch-tiled activations, resident (constant-index) weights ---
    in_specs = [
        pl.BlockSpec((block_b, Dp_in), lambda i: (i, 0)),           # input
        pl.BlockSpec((block_b, Lp, Dp_ctx), lambda i: (i, 0, 0)),   # context
        pl.BlockSpec((block_b, Lp), lambda i: (i, 0)),              # mask
        pl.BlockSpec((Dp_in, Dp_ctx + Dp_in), lambda i: (0, 0)),    # w_in_cat
        pl.BlockSpec((1, Dp_ctx), lambda i: (0, 0)),                # b_comb
        pl.BlockSpec((Dp_ctx, Dp_ctx), lambda i: (0, 0)),           # w_ctx
        pl.BlockSpec((1, Dp_ctx), lambda i: (0, 0)),                # w_score
        pl.BlockSpec((Dp_ctx, Dp_in), lambda i: (0, 0)),            # w_out_x
        pl.BlockSpec((1, Dp_in), lambda i: (0, 0)),                 # b_out
    ]
    out_specs = (
        pl.BlockSpec((block_b, Dp_in), lambda i: (i, 0)),
        pl.BlockSpec((block_b, Lp), lambda i: (i, 0)),
    )

    # ---- VMEM budget + cost hint ---------------------------------------------
    weight_bytes = 4 * (Dp_in * (Dp_ctx + Dp_in) + Dp_ctx * Dp_ctx + Dp_ctx * Dp_in
                        + 2 * Dp_ctx + Dp_in)
    tile_bytes = block_b * (
        Dp_in * input.dtype.itemsize       # input tile
        + Lp * Dp_ctx * ctx_itemsize       # context tile (dominant stream)
        + Lp * 4                           # mask tile
        + Dp_in * 4 + Lp * 4               # output tiles
    )
    intermediate_bytes = 2 * block_b * Lp * Dp_ctx * 4   # f32 proj_ctx + tanh intermediate
    vmem_limit = int(min(
        64 << 20,
        max(16 << 20, 3 * tile_bytes + 2 * weight_bytes + intermediate_bytes + (4 << 20)),
    ))

    flops = (
        2 * Bp * Dp_in * (Dp_ctx + Dp_in)  # fused input-side projections
        + 2 * Bp * Lp * Dp_ctx * Dp_ctx    # context_proj
        + 4 * Bp * Lp * Dp_ctx             # add + score multiply/reduce
        + 2 * Bp * Lp * Dp_ctx             # weighted context sum
        + 2 * Bp * Dp_ctx * Dp_in          # output_proj (context half)
    )
    transcendentals = Bp * Lp * Dp_ctx + Bp * Lp + Bp * Dp_in + Bp
    bytes_accessed = (
        inp_p.size * inp_p.dtype.itemsize
        + ctx_p.size * ctx_p.dtype.itemsize
        + mask_p.size * 4
        + weight_bytes
        + Bp * Dp_in * 4
        + Bp * Lp * 4
    )

    x_p, attn_p = pl.pallas_call(
        _bahdanau_kernel,
        grid=grid,
        out_shape=(
            jax.ShapeDtypeStruct((Bp, Dp_in), jnp.float32),
            jax.ShapeDtypeStruct((Bp, Lp), jnp.float32),
        ),
        in_specs=in_specs,
        out_specs=out_specs,
        compiler_params=pltpu.CompilerParams(
            dimension_semantics=("parallel",),
            vmem_limit_bytes=vmem_limit,
        ),
        cost_estimate=pl.CostEstimate(
            flops=flops,
            transcendentals=transcendentals,
            bytes_accessed=bytes_accessed,
        ),
    )(
        inp_p, ctx_p, mask_p,
        w_in_cat_p, b_comb_p, w_ctx_p, w_score_p, w_out_x_p, b_out_p,
    )
    return x_p[:B, :D_in], attn_p[:B, :L]


def init_params(key, input_dim, context_dim):
    """Deterministic PyTorch-Linear-style init; weights stored (in, out)."""
    ks = jax.random.split(key, 7)

    def lin_w(k, fan_in, fan_out):
        bound = 1.0 / jnp.sqrt(fan_in)
        return jax.random.uniform(k, (fan_in, fan_out), jnp.float32, -bound, bound)

    def lin_b(k, fan_in, fan_out):
        bound = 1.0 / jnp.sqrt(fan_in)
        return jax.random.uniform(k, (1, fan_out), jnp.float32, -bound, bound)

    w_in = lin_w(ks[0], input_dim, context_dim)
    b_in = lin_b(ks[1], input_dim, context_dim)
    w_ctx = lin_w(ks[2], context_dim, context_dim)
    b_ctx = lin_b(ks[3], context_dim, context_dim)
    w_score = lin_w(ks[4], context_dim, 1).reshape(1, context_dim)  # no bias
    w_out = lin_w(ks[5], input_dim + context_dim, input_dim)
    b_out = lin_b(ks[6], input_dim + context_dim, input_dim)
    return (w_in, b_in, w_ctx, b_ctx, w_score, w_out, b_out)


def bahdanau_reference(input, context, params, context_mask=None):
    """Pure-JAX reference mirroring the PyTorch forward."""
    w_in, b_in, w_ctx, b_ctx, w_score, w_out, b_out = params
    proj_in = input @ w_in + b_in                                  # (B, D_ctx)
    proj_ctx = jnp.einsum("bld,de->ble", context, w_ctx) + b_ctx   # (B, L, D_ctx)
    scores = jnp.sum(jnp.tanh(proj_in[:, None, :] + proj_ctx) * w_score, axis=-1)
    if context_mask is not None:
        scores = jnp.where(context_mask, -jnp.inf, scores)
    attn = jax.nn.softmax(scores, axis=-1)
    xctx = jnp.sum(attn[:, :, None] * context, axis=1)
    x = jnp.tanh(jnp.concatenate([xctx, input], axis=1) @ w_out + b_out)
    return x, attn


if __name__ == "__main__":
    B, L = 2, 8
    input_dim, context_dim = 32, 32

    key = jax.random.PRNGKey(0)
    k_inp, k_ctx, k_mask, k_par = jax.random.split(key, 4)

    input = jax.random.normal(k_inp, (B, input_dim), jnp.float32)
    context = jax.random.normal(k_ctx, (B, L, context_dim), jnp.float32)
    # Mask a couple of positions (but never a whole row).
    context_mask = jnp.zeros((B, L), dtype=bool).at[0, 5].set(True).at[1, 2].set(True)

    params = init_params(k_par, input_dim, context_dim)

    run = jax.jit(bahdanau_attention)
    x, attn = run(input, context, params, context_mask)
    jax.block_until_ready((x, attn))

    x_ref, attn_ref = bahdanau_reference(input, context, params, context_mask)
    # Loose-ish tolerance: the softmax denominator uses the EUP approximate reciprocal.
    assert jnp.allclose(attn, attn_ref, atol=1e-2, rtol=1e-2)
    assert jnp.allclose(x, x_ref, atol=1e-2, rtol=1e-2)
    assert x.shape == (B, input_dim) and attn.shape == (B, L)

    print("KERNEL_OK")
</pallas_src>

<mosaic_0001>
module attributes {stable_mosaic.version = 11 : i64} {
  func.func @_bahdanau_kernel(%arg0: i32, %arg1: memref<8x128xf32, #tpu.memory_space<vmem>>, %arg2: memref<8x128x128xf32, #tpu.memory_space<vmem>>, %arg3: memref<8x128xi32, #tpu.memory_space<vmem>>, %arg4: memref<128x256xf32, #tpu.memory_space<vmem>>, %arg5: memref<1x128xf32, #tpu.memory_space<vmem>>, %arg6: memref<128x128xf32, #tpu.memory_space<vmem>>, %arg7: memref<1x128xf32, #tpu.memory_space<vmem>>, %arg8: memref<128x128xf32, #tpu.memory_space<vmem>>, %arg9: memref<1x128xf32, #tpu.memory_space<vmem>>, %arg10: memref<8x128xf32, #tpu.memory_space<vmem>>, %arg11: memref<8x128xf32, #tpu.memory_space<vmem>>) attributes {dimension_semantics = [#tpu.dimension_semantics<parallel>], iteration_bounds = array<i64: 1>, scalar_prefetch = 0 : i64, scratch_operands = 0 : i64, tpu.core_type = #tpu.core_type<tc>, window_params = [{transform_indices = @transform_0, window_bounds = array<i64: 8, 128>}, {transform_indices = @transform_1, window_bounds = array<i64: 8, 128, 128>}, {transform_indices = @transform_2, window_bounds = array<i64: 8, 128>}, {pipeline_mode = #tpu.pipeline_mode<synchronous>, transform_indices = @transform_3, window_bounds = array<i64: 128, 256>}, {pipeline_mode = #tpu.pipeline_mode<synchronous>, transform_indices = @transform_4, window_bounds = array<i64: 1, 128>}, {pipeline_mode = #tpu.pipeline_mode<synchronous>, transform_indices = @transform_5, window_bounds = array<i64: 128, 128>}, {pipeline_mode = #tpu.pipeline_mode<synchronous>, transform_indices = @transform_6, window_bounds = array<i64: 1, 128>}, {pipeline_mode = #tpu.pipeline_mode<synchronous>, transform_indices = @transform_7, window_bounds = array<i64: 128, 128>}, {pipeline_mode = #tpu.pipeline_mode<synchronous>, transform_indices = @transform_8, window_bounds = array<i64: 1, 128>}, {transform_indices = @transform_9, window_bounds = array<i64: 8, 128>}, {transform_indices = @transform_10, window_bounds = array<i64: 8, 128>}]} {
    %c0 = arith.constant 0 : index
    %c0_0 = arith.constant 0 : index
    %0 = vector.load %arg1[%c0, %c0_0] : memref<8x128xf32, #tpu.memory_space<vmem>>, vector<8x128xf32>
    %c0_1 = arith.constant 0 : index
    %c0_2 = arith.constant 0 : index
    %c0_3 = arith.constant 0 : index
    %1 = vector.load %arg2[%c0_1, %c0_2, %c0_3] : memref<8x128x128xf32, #tpu.memory_space<vmem>>, vector<8x128x128xf32>
    %c0_4 = arith.constant 0 : index
    %c0_5 = arith.constant 0 : index
    %2 = vector.load %arg4[%c0_4, %c0_5] : memref<128x256xf32, #tpu.memory_space<vmem>>, vector<128x256xf32>
    %cst = arith.constant dense<0.000000e+00> : vector<8x256xf32>
    %3 = tpu.matmul %0, %2, %cst {dimension_numbers = #tpu.dot_dimension_numbers<[1], [0], [0], [1], [0, 0, 1, 1], [], []>} : vector<8x128xf32>, vector<128x256xf32>, vector<8x256xf32> -> vector<8x256xf32>
    %4 = vector.extract_strided_slice %3 {offsets = [0, 0], sizes = [8, 128], strides = [1, 1]} : vector<8x256xf32> to vector<8x128xf32>
    %c0_6 = arith.constant 0 : index
    %c0_7 = arith.constant 0 : index
    %5 = vector.load %arg5[%c0_6, %c0_7] : memref<1x128xf32, #tpu.memory_space<vmem>>, vector<1x128xf32>
    %6 = vector.broadcast %5 : vector<1x128xf32> to vector<8x128xf32>
    %7 = arith.addf %4, %6 : vector<8x128xf32>
    %8 = vector.extract_strided_slice %3 {offsets = [0, 128], sizes = [8, 128], strides = [1, 1]} : vector<8x256xf32> to vector<8x128xf32>
    %9 = vector.shape_cast %1 : vector<8x128x128xf32> to vector<1024x128xf32>
    %c0_8 = arith.constant 0 : index
    %c0_9 = arith.constant 0 : index
    %10 = vector.load %arg6[%c0_8, %c0_9] : memref<128x128xf32, #tpu.memory_space<vmem>>, vector<128x128xf32>
    %cst_10 = arith.constant dense<0.000000e+00> : vector<1024x128xf32>
    %11 = tpu.matmul %9, %10, %cst_10 {dimension_numbers = #tpu.dot_dimension_numbers<[1], [0], [0], [1], [0, 0, 1, 1], [], []>} : vector<1024x128xf32>, vector<128x128xf32>, vector<1024x128xf32> -> vector<1024x128xf32>
    %12 = vector.shape_cast %11 : vector<1024x128xf32> to vector<8x128x128xf32>
    %13 = vector.shape_cast %7 : vector<8x128xf32> to vector<8x1x128xf32>
    %14 = vector.broadcast %13 : vector<8x1x128xf32> to vector<8x128x128xf32>
    %15 = arith.addf %14, %12 : vector<8x128x128xf32>
    %16 = math.tanh %15 : vector<8x128x128xf32>
    %c0_11 = arith.constant 0 : index
    %c0_12 = arith.constant 0 : index
    %17 = vector.load %arg7[%c0_11, %c0_12] : memref<1x128xf32, #tpu.memory_space<vmem>>, vector<1x128xf32>
    %18 = vector.shape_cast %17 : vector<1x128xf32> to vector<1x1x128xf32>
    %19 = vector.broadcast %18 : vector<1x1x128xf32> to vector<8x128x128xf32>
    %20 = arith.mulf %16, %19 : vector<8x128x128xf32>
    %cst_13 = arith.constant dense<0.000000e+00> : vector<8x128xf32>
    %21 = vector.multi_reduction <add>, %20, %cst_13 [2] : vector<8x128x128xf32> to vector<8x128xf32>
    %c0_14 = arith.constant 0 : index
    %c0_15 = arith.constant 0 : index
    %22 = vector.load %arg3[%c0_14, %c0_15] : memref<8x128xi32, #tpu.memory_space<vmem>>, vector<8x128xi32>
    %c0_i32 = arith.constant 0 : i32
    %23 = vector.broadcast %c0_i32 : i32 to vector<8x128xi32>
    %24 = arith.cmpi ne, %22, %23 : vector<8x128xi32>
    %cst_16 = arith.constant -1.000000e+30 : f32
    %25 = vector.broadcast %cst_16 : f32 to vector<8x128xf32>
    %26 = arith.select %24, %25, %21 : vector<8x128xi1>, vector<8x128xf32>
    %cst_17 = arith.constant dense<0xFF800000> : vector<8xf32>
    %27 = vector.multi_reduction <maximumf>, %26, %cst_17 [1] : vector<8x128xf32> to vector<8xf32>
    %28 = vector.shape_cast %27 : vector<8xf32> to vector<8x1xf32>
    %29 = vector.broadcast %28 : vector<8x1xf32> to vector<8x128xf32>
    %30 = arith.subf %26, %29 : vector<8x128xf32>
    %31 = math.exp %30 : vector<8x128xf32>
    %cst_18 = arith.constant dense<0.000000e+00> : vector<8xf32>
    %32 = vector.multi_reduction <add>, %31, %cst_18 [1] : vector<8x128xf32> to vector<8xf32>
    %33 = vector.shape_cast %32 : vector<8xf32> to vector<8x1xf32>
    %34 = tpu.reciprocal %33 {approx = true} : vector<8x1xf32> -> vector<8x1xf32>
    %35 = vector.broadcast %34 : vector<8x1xf32> to vector<8x128xf32>
    %36 = arith.mulf %31, %35 : vector<8x128xf32>
    %37 = vector.shape_cast %36 : vector<8x128xf32> to vector<8x1x128xf32>
    %cst_19 = arith.constant dense<0.000000e+00> : vector<8x1x128xf32>
    %38 = tpu.matmul %37, %1, %cst_19 {dimension_numbers = #tpu.dot_dimension_numbers<[2], [1], [1], [2], [0, 0, 0, 1, 1, 2], [0], [0]>} : vector<8x1x128xf32>, vector<8x128x128xf32>, vector<8x1x128xf32> -> vector<8x1x128xf32>
    %39 = vector.shape_cast %38 : vector<8x1x128xf32> to vector<8x128xf32>
    %c0_20 = arith.constant 0 : index
    %c0_21 = arith.constant 0 : index
    %40 = vector.load %arg8[%c0_20, %c0_21] : memref<128x128xf32, #tpu.memory_space<vmem>>, vector<128x128xf32>
    %cst_22 = arith.constant dense<0.000000e+00> : vector<8x128xf32>
    %41 = tpu.matmul %39, %40, %cst_22 {dimension_numbers = #tpu.dot_dimension_numbers<[1], [0], [0], [1], [0, 0, 1, 1], [], []>} : vector<8x128xf32>, vector<128x128xf32>, vector<8x128xf32> -> vector<8x128xf32>
    %42 = arith.addf %41, %8 : vector<8x128xf32>
    %c0_23 = arith.constant 0 : index
    %c0_24 = arith.constant 0 : index
    %43 = vector.load %arg9[%c0_23, %c0_24] : memref<1x128xf32, #tpu.memory_space<vmem>>, vector<1x128xf32>
    %44 = vector.broadcast %43 : vector<1x128xf32> to vector<8x128xf32>
    %45 = arith.addf %42, %44 : vector<8x128xf32>
    %46 = math.tanh %45 : vector<8x128xf32>
    %c0_25 = arith.constant 0 : index
    %c0_26 = arith.constant 0 : index
    %47 = vector.load %arg10[%c0_25, %c0_26] : memref<8x128xf32, #tpu.memory_space<vmem>>, vector<8x128xf32>
    tpu.vector_store %arg10[%c0_25, %c0_26], %46 {strides = array<i32>} : memref<8x128xf32, #tpu.memory_space<vmem>>, vector<8x128xf32>,
    %c0_27 = arith.constant 0 : index
    %c0_28 = arith.constant 0 : index
    %48 = vector.load %arg11[%c0_27, %c0_28] : memref<8x128xf32, #tpu.memory_space<vmem>>, vector<8x128xf32>
    tpu.vector_store %arg11[%c0_27, %c0_28], %36 {strides = array<i32>} : memref<8x128xf32, #tpu.memory_space<vmem>>, vector<8x128xf32>,
    return
  }
  func.func @transform_0(%arg0: i32) -> (i32, i32) {
    %c0_i32 = arith.constant 0 : i32
    %c0_i32_0 = arith.constant 0 : i32
    return %arg0, %c0_i32 : i32, i32
  }
  func.func @transform_1(%arg0: i32) -> (i32, i32, i32) {
    %c0_i32 = arith.constant 0 : i32
    %c0_i32_0 = arith.constant 0 : i32
    %c0_i32_1 = arith.constant 0 : i32
    return %arg0, %c0_i32, %c0_i32_0 : i32, i32, i32
  }
  func.func @transform_2(%arg0: i32) -> (i32, i32) {
    %c0_i32 = arith.constant 0 : i32
    %c0_i32_0 = arith.constant 0 : i32
    return %arg0, %c0_i32 : i32, i32
  }
  func.func @transform_3(%arg0: i32) -> (i32, i32) {
    %c0_i32 = arith.constant 0 : i32
    %c0_i32_0 = arith.constant 0 : i32
    %c0_i32_1 = arith.constant 0 : i32
    return %c0_i32, %c0_i32_0 : i32, i32
  }
  func.func @transform_4(%arg0: i32) -> (i32, i32) {
    %c0_i32 = arith.constant 0 : i32
    %c0_i32_0 = arith.constant 0 : i32
    %c0_i32_1 = arith.constant 0 : i32
    return %c0_i32, %c0_i32_0 : i32, i32
  }
  func.func @transform_5(%arg0: i32) -> (i32, i32) {
    %c0_i32 = arith.constant 0 : i32
    %c0_i32_0 = arith.constant 0 : i32
    %c0_i32_1 = arith.constant 0 : i32
    return %c0_i32, %c0_i32_0 : i32, i32
  }
  func.func @transform_6(%arg0: i32) -> (i32, i32) {
    %c0_i32 = arith.constant 0 : i32
    %c0_i32_0 = arith.constant 0 : i32
    %c0_i32_1 = arith.constant 0 : i32
    return %c0_i32, %c0_i32_0 : i32, i32
  }
  func.func @transform_7(%arg0: i32) -> (i32, i32) {
    %c0_i32 = arith.constant 0 : i32
    %c0_i32_0 = arith.constant 0 : i32
    %c0_i32_1 = arith.constant 0 : i32
    return %c0_i32, %c0_i32_0 : i32, i32
  }
  func.func @transform_8(%arg0: i32) -> (i32, i32) {
    %c0_i32 = arith.constant 0 : i32
    %c0_i32_0 = arith.constant 0 : i32
    %c0_i32_1 = arith.constant 0 : i32
    return %c0_i32, %c0_i32_0 : i32, i32
  }
  func.func @transform_9(%arg0: i32) -> (i32, i32) {
    %c0_i32 = arith.constant 0 : i32
    %c0_i32_0 = arith.constant 0 : i32
    return %arg0, %c0_i32 : i32, i32
  }
  func.func @transform_10(%arg0: i32) -> (i32, i32) {
    %c0_i32 = arith.constant 0 : i32
    %c0_i32_0 = arith.constant 0 : i32
    return %arg0, %c0_i32 : i32, i32
  }
}

</mosaic_0001>

<llo_original>
// kernel: bahdanau_attention.1
$region0: #{bahdanau_attention.1}
  #allocation0 [shape = 'u32[]', space=smem, size = 0x4, offset = 0x4, fixed_abs, tag = 'smem constant byte address 0x4 - core index']
  #allocation1 [shape = 'u32[144,128]{1,0:T(1,128)}', space=vmem, size = 0x12000, scoped, tag = 'internal scratch']
  %s0 = inlined_call_operand.vmem [shape: f32[8,128], index: 0, kind: input, shape index: {}]
  %s1 = inlined_call_operand.vmem [shape: f32[8,128,128], index: 1, kind: input, shape index: {}]
  %s2 = inlined_call_operand.vmem [shape: s32[8,128], index: 2, kind: input, shape index: {}]
  %s3 = inlined_call_operand.vmem [shape: f32[128,256], index: 3, kind: input, shape index: {}]
  %s4 = inlined_call_operand.vmem [shape: f32[1,128], index: 4, kind: input, shape index: {}]
  %s5 = inlined_call_operand.vmem [shape: f32[128,128], index: 5, kind: input, shape index: {}]
  %s6 = inlined_call_operand.vmem [shape: f32[1,128], index: 6, kind: input, shape index: {}]
  %s7 = inlined_call_operand.vmem [shape: f32[128,128], index: 7, kind: input, shape index: {}]
  %s8 = inlined_call_operand.vmem [shape: f32[1,128], index: 8, kind: input, shape index: {}]
  %s9 = inlined_call_operand.vmem [shape: f32[8,128], index: 9, kind: output, shape index: {0}]
  %s10 = inlined_call_operand.vmem [shape: f32[8,128], index: 10, kind: output, shape index: {1}]
  %11 = xla_tuple %s9, %s10
  %s12 = sld [smem:[#allocation0]]
  $region54: #{bahdanau_attention.1} parent=0
    _
  %s14 = ssub.s32 1, %s12
  %s15 = scalar_select 0, %s14, %s12
  // Predicated region
  $region2: #{bahdanau_attention.1} parent=0 // pred_check
    _
  $region3: #{bahdanau_attention.1} parent=0 // pred_check_branch
    %17 = sbr.rel (0) target = $region5
  $region4: #{bahdanau_attention.1} parent=0 // pred_region
    _
  $region5: #{bahdanau_attention.1} parent=0 // pred_fallthru
    _
  // Predicated region
  $region6: #{bahdanau_attention.1} parent=0 // pred_check
    _
  $region7: #{bahdanau_attention.1} parent=0 // pred_check_branch
    %19 = sbr.rel (0) target = $region9
  $region8: #{bahdanau_attention.1} parent=0 // pred_region
    _
  $region9: #{bahdanau_attention.1} parent=0 // pred_fallthru
    _
  // Predicated region
  $region10: #{bahdanau_attention.1} parent=0 // pred_check
    _
  $region11: #{bahdanau_attention.1} parent=0 // pred_check_branch
    %21 = sbr.rel (0) target = $region13
  $region12: #{bahdanau_attention.1} parent=0 // pred_region
    _
  $region13: #{bahdanau_attention.1} parent=0 // pred_fallthru
    _
  // Predicated region
  $region14: #{bahdanau_attention.1} parent=0 // pred_check
    _
  $region15: #{bahdanau_attention.1} parent=0 // pred_check_branch
    %23 = sbr.rel (0) target = $region17
  $region16: #{bahdanau_attention.1} parent=0 // pred_region
    _
  $region17: #{bahdanau_attention.1} parent=0 // pred_fallthru
    _
  // Predicated region
  $region18: #{bahdanau_attention.1} parent=0 // pred_check
    _
  $region19: #{bahdanau_attention.1} parent=0 // pred_check_branch
    %25 = sbr.rel (0) target = $region21
  $region20: #{bahdanau_attention.1} parent=0 // pred_region
    _
  $region21: #{bahdanau_attention.1} parent=0 // pred_fallthru
    _
  // Predicated region
  $region22: #{bahdanau_attention.1} parent=0 // pred_check
    _
  $region23: #{bahdanau_attention.1} parent=0 // pred_check_branch
    %27 = sbr.rel (0) target = $region25
  $region24: #{bahdanau_attention.1} parent=0 // pred_region
    _
  $region25: #{bahdanau_attention.1} parent=0 // pred_fallthru
    _
  // Predicated region
  $region26: #{bahdanau_attention.1} parent=0 // pred_check
    _
  $region27: #{bahdanau_attention.1} parent=0 // pred_check_branch
    %29 = sbr.rel (0) target = $region29
  $region28: #{bahdanau_attention.1} parent=0 // pred_region
    _
  $region29: #{bahdanau_attention.1} parent=0 // pred_fallthru
    _
  // Predicated region
  $region30: #{bahdanau_attention.1} parent=0 // pred_check
    _
  $region31: #{bahdanau_attention.1} parent=0 // pred_check_branch
    %31 = sbr.rel (0) target = $region33
  $region32: #{bahdanau_attention.1} parent=0 // pred_region
    _
  $region33: #{bahdanau_attention.1} parent=0 // pred_fallthru
    _
  // Predicated region
  $region34: #{bahdanau_attention.1} parent=0 // pred_check
    _
  $region35: #{bahdanau_attention.1} parent=0 // pred_check_branch
    %33 = sbr.rel (0) target = $region37
  $region36: #{bahdanau_attention.1} parent=0 // pred_region
    _
  $region37: #{bahdanau_attention.1} parent=0 // pred_fallthru
    _
  %v34 = vld [vmem:[%s0] sm:$0xff]
  %v35 = vld [vmem:[%s1] sm:$0xff]
  %v36 = vld [vmem:[%s1 + $0x8] sm:$0xff]
  %v37 = vld [vmem:[%s1 + $0x10] sm:$0xff]
  %v38 = vld [vmem:[%s1 + $0x18] sm:$0xff]
  %v39 = vld [vmem:[%s1 + $0x20] sm:$0xff]
  %v40 = vld [vmem:[%s1 + $0x28] sm:$0xff]
  %v41 = vld [vmem:[%s1 + $0x30] sm:$0xff]
  %v42 = vld [vmem:[%s1 + $0x38] sm:$0xff]
  %v43 = vld [vmem:[%s1 + $0x40] sm:$0xff]
  %v44 = vld [vmem:[%s1 + $0x48] sm:$0xff]
  %v45 = vld [vmem:[%s1 + $0x50] sm:$0xff]
  %v46 = vld [vmem:[%s1 + $0x58] sm:$0xff]
  %v47 = vld [vmem:[%s1 + $0x60] sm:$0xff]
  %v48 = vld [vmem:[%s1 + $0x68] sm:$0xff]
  %v49 = vld [vmem:[%s1 + $0x70] sm:$0xff]
  %v50 = vld [vmem:[%s1 + $0x78] sm:$0xff]
  %v51 = vld [vmem:[%s1 + $0x80] sm:$0xff]
  %v52 = vld [vmem:[%s1 + $0x88] sm:$0xff]
  %v53 = vld [vmem:[%s1 + $0x90] sm:$0xff]
  %v54 = vld [vmem:[%s1 + $0x98] sm:$0xff]
  %v55 = vld [vmem:[%s1 + $0xa0] sm:$0xff]
  %v56 = vld [vmem:[%s1 + $0xa8] sm:$0xff]
  %v57 = vld [vmem:[%s1 + $0xb0] sm:$0xff]
  %v58 = vld [vmem:[%s1 + $0xb8] sm:$0xff]
  %v59 = vld [vmem:[%s1 + $0xc0] sm:$0xff]
  %v60 = vld [vmem:[%s1 + $0xc8] sm:$0xff]
  %v61 = vld [vmem:[%s1 + $0xd0] sm:$0xff]
  %v62 = vld [vmem:[%s1 + $0xd8] sm:$0xff]
  %v63 = vld [vmem:[%s1 + $0xe0] sm:$0xff]
  %v64 = vld [vmem:[%s1 + $0xe8] sm:$0xff]
  %v65 = vld [vmem:[%s1 + $0xf0] sm:$0xff]
  %v66 = vld [vmem:[%s1 + $0xf8] sm:$0xff]
  %v67 = vld [vmem:[%s1 + $0x100] sm:$0xff]
  %v68 = vld [vmem:[%s1 + $0x108] sm:$0xff]
  %v69 = vld [vmem:[%s1 + $0x110] sm:$0xff]
  %v70 = vld [vmem:[%s1 + $0x118] sm:$0xff]
  %v71 = vld [vmem:[%s1 + $0x120] sm:$0xff]
  %v72 = vld [vmem:[%s1 + $0x128] sm:$0xff]
  %v73 = vld [vmem:[%s1 + $0x130] sm:$0xff]
  %v74 = vld [vmem:[%s1 + $0x138] sm:$0xff]
  %v75 = vld [vmem:[%s1 + $0x140] sm:$0xff]
  %v76 = vld [vmem:[%s1 + $0x148] sm:$0xff]
  %v77 = vld [vmem:[%s1 + $0x150] sm:$0xff]
  %v78 = vld [vmem:[%s1 + $0x158] sm:$0xff]
  %v79 = vld [vmem:[%s1 + $0x160] sm:$0xff]
  %v80 = vld [vmem:[%s1 + $0x168] sm:$0xff]
  %v81 = vld [vmem:[%s1 + $0x170] sm:$0xff]
  %v82 = vld [vmem:[%s1 + $0x178] sm:$0xff]
  %v83 = vld [vmem:[%s1 + $0x180] sm:$0xff]
  %v84 = vld [vmem:[%s1 + $0x188] sm:$0xff]
  %v85 = vld [vmem:[%s1 + $0x190] sm:$0xff]
  %v86 = vld [vmem:[%s1 + $0x198] sm:$0xff]
  %v87 = vld [vmem:[%s1 + $0x1a0] sm:$0xff]
  %v88 = vld [vmem:[%s1 + $0x1a8] sm:$0xff]
  %v89 = vld [vmem:[%s1 + $0x1b0] sm:$0xff]
  %v90 = vld [vmem:[%s1 + $0x1b8] sm:$0xff]
  %v91 = vld [vmem:[%s1 + $0x1c0] sm:$0xff]
  %v92 = vld [vmem:[%s1 + $0x1c8] sm:$0xff]
  %v93 = vld [vmem:[%s1 + $0x1d0] sm:$0xff]
  %v94 = vld [vmem:[%s1 + $0x1d8] sm:$0xff]
  %v95 = vld [vmem:[%s1 + $0x1e0] sm:$0xff]
  %v96 = vld [vmem:[%s1 + $0x1e8] sm:$0xff]
  %v97 = vld [vmem:[%s1 + $0x1f0] sm:$0xff]
  %v98 = vld [vmem:[%s1 + $0x1f8] sm:$0xff]
  %v99 = vld [vmem:[%s1 + $0x200] sm:$0xff]
  %v100 = vld [vmem:[%s1 + $0x208] sm:$0xff]
  %v101 = vld [vmem:[%s1 + $0x210] sm:$0xff]
  %v102 = vld [vmem:[%s1 + $0x218] sm:$0xff]
  %v103 = vld [vmem:[%s1 + $0x220] sm:$0xff]
  %v104 = vld [vmem:[%s1 + $0x228] sm:$0xff]
  %v105 = vld [vmem:[%s1 + $0x230] sm:$0xff]
  %v106 = vld [vmem:[%s1 + $0x238] sm:$0xff]
  %v107 = vld [vmem:[%s1 + $0x240] sm:$0xff]
  %v108 = vld [vmem:[%s1 + $0x248] sm:$0xff]
  %v109 = vld [vmem:[%s1 + $0x250] sm:$0xff]
  %v110 = vld [vmem:[%s1 + $0x258] sm:$0xff]
  %v111 = vld [vmem:[%s1 + $0x260] sm:$0xff]
  %v112 = vld [vmem:[%s1 + $0x268] sm:$0xff]
  %v113 = vld [vmem:[%s1 + $0x270] sm:$0xff]
  %v114 = vld [vmem:[%s1 + $0x278] sm:$0xff]
  %v115 = vld [vmem:[%s1 + $0x280] sm:$0xff]
  %v116 = vld [vmem:[%s1 + $0x288] sm:$0xff]
  %v117 = vld [vmem:[%s1 + $0x290] sm:$0xff]
  %v118 = vld [vmem:[%s1 + $0x298] sm:$0xff]
  %v119 = vld [vmem:[%s1 + $0x2a0] sm:$0xff]
  %v120 = vld [vmem:[%s1 + $0x2a8] sm:$0xff]
  %v121 = vld [vmem:[%s1 + $0x2b0] sm:$0xff]
  %v122 = vld [vmem:[%s1 + $0x2b8] sm:$0xff]
  %v123 = vld [vmem:[%s1 + $0x2c0] sm:$0xff]
  %v124 = vld [vmem:[%s1 + $0x2c8] sm:$0xff]
  %v125 = vld [vmem:[%s1 + $0x2d0] sm:$0xff]
  %v126 = vld [vmem:[%s1 + $0x2d8] sm:$0xff]
  %v127 = vld [vmem:[%s1 + $0x2e0] sm:$0xff]
  %v128 = vld [vmem:[%s1 + $0x2e8] sm:$0xff]
  %v129 = vld [vmem:[%s1 + $0x2f0] sm:$0xff]
  %v130 = vld [vmem:[%s1 + $0x2f8] sm:$0xff]
  %v131 = vld [vmem:[%s1 + $0x300] sm:$0xff]
  %v132 = vld [vmem:[%s1 + $0x308] sm:$0xff]
  %v133 = vld [vmem:[%s1 + $0x310] sm:$0xff]
  %v134 = vld [vmem:[%s1 + $0x318] sm:$0xff]
  %v135 = vld [vmem:[%s1 + $0x320] sm:$0xff]
  %v136 = vld [vmem:[%s1 + $0x328] sm:$0xff]
  %v137 = vld [vmem:[%s1 + $0x330] sm:$0xff]
  %v138 = vld [vmem:[%s1 + $0x338] sm:$0xff]
  %v139 = vld [vmem:[%s1 + $0x340] sm:$0xff]
  %v140 = vld [vmem:[%s1 + $0x348] sm:$0xff]
  %v141 = vld [vmem:[%s1 + $0x350] sm:$0xff]
  %v142 = vld [vmem:[%s1 + $0x358] sm:$0xff]
  %v143 = vld [vmem:[%s1 + $0x360] sm:$0xff]
  %v144 = vld [vmem:[%s1 + $0x368] sm:$0xff]
  %v145 = vld [vmem:[%s1 + $0x370] sm:$0xff]
  %v146 = vld [vmem:[%s1 + $0x378] sm:$0xff]
  %v147 = vld [vmem:[%s1 + $0x380] sm:$0xff]
  %v148 = vld [vmem:[%s1 + $0x388] sm:$0xff]
  %v149 = vld [vmem:[%s1 + $0x390] sm:$0xff]
  %v150 = vld [vmem:[%s1 + $0x398] sm:$0xff]
  %v151 = vld [vmem:[%s1 + $0x3a0] sm:$0xff]
  %v152 = vld [vmem:[%s1 + $0x3a8] sm:$0xff]
  %v153 = vld [vmem:[%s1 + $0x3b0] sm:$0xff]
  %v154 = vld [vmem:[%s1 + $0x3b8] sm:$0xff]
  %v155 = vld [vmem:[%s1 + $0x3c0] sm:$0xff]
  %v156 = vld [vmem:[%s1 + $0x3c8] sm:$0xff]
  %v157 = vld [vmem:[%s1 + $0x3d0] sm:$0xff]
  %v158 = vld [vmem:[%s1 + $0x3d8] sm:$0xff]
  %v159 = vld [vmem:[%s1 + $0x3e0] sm:$0xff]
  %v160 = vld [vmem:[%s1 + $0x3e8] sm:$0xff]
  %v161 = vld [vmem:[%s1 + $0x3f0] sm:$0xff]
  %v162 = vld [vmem:[%s1 + $0x3f8] sm:$0xff]
  %v163 = vld [vmem:[%s3] sm:$0xff]
  %v164 = vld [vmem:[%s3 + $0x8] sm:$0xff]
  %v165 = vld [vmem:[%s3 + $0x10] sm:$0xff]
  %v166 = vld [vmem:[%s3 + $0x18] sm:$0xff]
  %v167 = vld [vmem:[%s3 + $0x20] sm:$0xff]
  %v168 = vld [vmem:[%s3 + $0x28] sm:$0xff]
  %v169 = vld [vmem:[%s3 + $0x30] sm:$0xff]
  %v170 = vld [vmem:[%s3 + $0x38] sm:$0xff]
  %v171 = vld [vmem:[%s3 + $0x40] sm:$0xff]
  %v172 = vld [vmem:[%s3 + $0x48] sm:$0xff]
  %v173 = vld [vmem:[%s3 + $0x50] sm:$0xff]
  %v174 = vld [vmem:[%s3 + $0x58] sm:$0xff]
  %v175 = vld [vmem:[%s3 + $0x60] sm:$0xff]
  %v176 = vld [vmem:[%s3 + $0x68] sm:$0xff]
  %v177 = vld [vmem:[%s3 + $0x70] sm:$0xff]
  %v178 = vld [vmem:[%s3 + $0x78] sm:$0xff]
  %v179 = vld [vmem:[%s3 + $0x80] sm:$0xff]
  %v180 = vld [vmem:[%s3 + $0x88] sm:$0xff]
  %v181 = vld [vmem:[%s3 + $0x90] sm:$0xff]
  %v182 = vld [vmem:[%s3 + $0x98] sm:$0xff]
  %v183 = vld [vmem:[%s3 + $0xa0] sm:$0xff]
  %v184 = vld [vmem:[%s3 + $0xa8] sm:$0xff]
  %v185 = vld [vmem:[%s3 + $0xb0] sm:$0xff]
  %v186 = vld [vmem:[%s3 + $0xb8] sm:$0xff]
  %v187 = vld [vmem:[%s3 + $0xc0] sm:$0xff]
  %v188 = vld [vmem:[%s3 + $0xc8] sm:$0xff]
  %v189 = vld [vmem:[%s3 + $0xd0] sm:$0xff]
  %v190 = vld [vmem:[%s3 + $0xd8] sm:$0xff]
  %v191 = vld [vmem:[%s3 + $0xe0] sm:$0xff]
  %v192 = vld [vmem:[%s3 + $0xe8] sm:$0xff]
  %v193 = vld [vmem:[%s3 + $0xf0] sm:$0xff]
  %v194 = vld [vmem:[%s3 + $0xf8] sm:$0xff]
  %195 = vmatprep.subr.mxu0 %v194
  %196 = vmatpush1.msra.mxu0 %v193
  %197 = vmatprep.subr.mxu0 %v192
  %198 = vmatpush1.msra.mxu0 %v191
  %199 = vmatprep.subr.mxu0 %v190
  %200 = vmatpush1.msra.mxu0 %v189
  %201 = vmatprep.subr.mxu0 %v188
  %202 = vmatpush1.msra.mxu0 %v187
  %203 = vmatprep.subr.mxu0 %v186
  %204 = vmatpush1.msra.mxu0 %v185
  %205 = vmatprep.subr.mxu0 %v184
  %206 = vmatpush1.msra.mxu0 %v183
  %207 = vmatprep.subr.mxu0 %v182
  %208 = vmatpush1.msra.mxu0 %v181
  %209 = vmatprep.subr.mxu0 %v180
  %210 = vmatpush1.msra.mxu0 %v179
  %211 = vmatprep.subr.mxu0 %v178
  %212 = vmatpush1.msra.mxu0 %v177
  %213 = vmatprep.subr.mxu0 %v176
  %214 = vmatpush1.msra.mxu0 %v175
  %215 = vmatprep.subr.mxu0 %v174
  %216 = vmatpush1.msra.mxu0 %v173
  %217 = vmatprep.subr.mxu0 %v172
  %218 = vmatpush1.msra.mxu0 %v171
  %219 = vmatprep.subr.mxu0 %v170
  %220 = vmatpush1.msra.mxu0 %v169
  %221 = vmatprep.subr.mxu0 %v168
  %222 = vmatpush1.msra.mxu0 %v167
  %223 = vmatprep.subr.mxu0 %v166
  %224 = vmatpush1.msra.mxu0 %v165
  %225 = vmatprep.subr.mxu0 %v164
  %226 = vmatpush1.msra.mxu0 %v163
  %227 = vmatprep.subr.mxu0 0.0
  %228 = vmatpush2.msra.mxu0 0.0
  %229 = vmatprep.subr.mxu0 0.0
  %230 = vmatpush2.msra.mxu0 0.0
  %231 = vmatprep.subr.mxu0 0.0
  %232 = vmatpush2.msra.mxu0 0.0
  %233 = vmatprep.subr.mxu0 0.0
  %234 = vmatpush2.msra.mxu0 0.0
  %235 = vmatprep.subr.mxu0 0.0
  %236 = vmatpush2.msra.mxu0 0.0
  %237 = vmatprep.subr.mxu0 0.0
  %238 = vmatpush2.msra.mxu0 0.0
  %239 = vmatprep.subr.mxu0 0.0
  %240 = vmatpush2.msra.mxu0 0.0
  %241 = vmatprep.subr.mxu0 0.0
  %242 = vmatpush2.msra.mxu0 0.0
  %243 = vmatprep.subr.mxu0 0.0
  %244 = vmatpush2.msra.mxu0 0.0
  %245 = vmatprep.subr.mxu0 0.0
  %246 = vmatpush2.msra.mxu0 0.0
  %247 = vmatprep.subr.mxu0 0.0
  %248 = vmatpush2.msra.mxu0 0.0
  %249 = vmatprep.subr.mxu0 0.0
  %250 = vmatpush2.msra.mxu0 0.0
  %251 = vmatprep.subr.mxu0 0.0
  %252 = vmatpush2.msra.mxu0 0.0
  %253 = vmatprep.subr.mxu0 0.0
  %254 = vmatpush2.msra.mxu0 0.0
  %255 = vmatprep.subr.mxu0 0.0
  %256 = vmatpush2.msra.mxu0 0.0
  %257 = vmatprep.subr.mxu0 0.0
  %258 = vmatpush2.msra.mxu0 0.0
  %259 = vmatprep.mubr.f32.mxu0 0.0
  %260 = vmatmul.mubr.f32.gmra.mxu0 %v34
  %v261 = vpop.f32.mrf.mxu0
  %v262 = vadd.f32 0.0, %v261
  %v263 = vpop.f32.mrf.mxu0
  %v264 = vadd.f32 0.0, %v263
  %265 = vdwg.mxu0
  %v266 = vld [vmem:[%s4] sm:$0x1]
  %v268 = vlaneseq
  %v269 = vshrl.u32 %v268, 7
  %v270 = vsub.s32 0, %v269
  %v271 = vrot.slane %v266, %v270
  %v273 = vadd.f32 %v262, %v271
  %v274 = vld [vmem:[%s5] sm:$0xff]
  %v275 = vld [vmem:[%s5 + $0x8] sm:$0xff]
  %v276 = vld [vmem:[%s5 + $0x10] sm:$0xff]
  %v277 = vld [vmem:[%s5 + $0x18] sm:$0xff]
  %v278 = vld [vmem:[%s5 + $0x20] sm:$0xff]
  %v279 = vld [vmem:[%s5 + $0x28] sm:$0xff]
  %v280 = vld [vmem:[%s5 + $0x30] sm:$0xff]
  %v281 = vld [vmem:[%s5 + $0x38] sm:$0xff]
  %v282 = vld [vmem:[%s5 + $0x40] sm:$0xff]
  %v283 = vld [vmem:[%s5 + $0x48] sm:$0xff]
  %v284 = vld [vmem:[%s5 + $0x50] sm:$0xff]
  %v285 = vld [vmem:[%s5 + $0x58] sm:$0xff]
  %v286 = vld [vmem:[%s5 + $0x60] sm:$0xff]
  %v287 = vld [vmem:[%s5 + $0x68] sm:$0xff]
  %v288 = vld [vmem:[%s5 + $0x70] sm:$0xff]
  %v289 = vld [vmem:[%s5 + $0x78] sm:$0xff]
  %290 = vmatprep.subr.mxu0 0.0
  %291 = vmatpush1.msra.mxu0 %v289
  %292 = vmatprep.subr.mxu0 0.0
  %293 = vmatpush1.msra.mxu0 %v288
  %294 = vmatprep.subr.mxu0 0.0
  %295 = vmatpush1.msra.mxu0 %v287
  %296 = vmatprep.subr.mxu0 0.0
  %297 = vmatpush1.msra.mxu0 %v286
  %298 = vmatprep.subr.mxu0 0.0
  %299 = vmatpush1.msra.mxu0 %v285
  %300 = vmatprep.subr.mxu0 0.0
  %301 = vmatpush1.msra.mxu0 %v284
  %302 = vmatprep.subr.mxu0 0.0
  %303 = vmatpush1.msra.mxu0 %v283
  %304 = vmatprep.subr.mxu0 0.0
  %305 = vmatpush1.msra.mxu0 %v282
  %306 = vmatprep.subr.mxu0 0.0
  %307 = vmatpush1.msra.mxu0 %v281
  %308 = vmatprep.subr.mxu0 0.0
  %309 = vmatpush1.msra.mxu0 %v280
  %310 = vmatprep.subr.mxu0 0.0
  %311 = vmatpush1.msra.mxu0 %v279
  %312 = vmatprep.subr.mxu0 0.0
  %313 = vmatpush1.msra.mxu0 %v278
  %314 = vmatprep.subr.mxu0 0.0
  %315 = vmatpush1.msra.mxu0 %v277
  %316 = vmatprep.subr.mxu0 0.0
  %317 = vmatpush1.msra.mxu0 %v276
  %318 = vmatprep.subr.mxu0 0.0
  %319 = vmatpush1.msra.mxu0 %v275
  %320 = vmatprep.subr.mxu0 0.0
  %321 = vmatpush1.msra.mxu0 %v274
  %322 = vmatprep.subr.mxu0 0.0
  %323 = vmatpush2.msra.mxu0 0.0
  %324 = vmatprep.subr.mxu0 0.0
  %325 = vmatpush2.msra.mxu0 0.0
  %326 = vmatprep.subr.mxu0 0.0
  %327 = vmatpush2.msra.mxu0 0.0
  %328 = vmatprep.subr.mxu0 0.0
  %329 = vmatpush2.msra.mxu0 0.0
  %330 = vmatprep.subr.mxu0 0.0
  %331 = vmatpush2.msra.mxu0 0.0
  %332 = vmatprep.subr.mxu0 0.0
  %333 = vmatpush2.msra.mxu0 0.0
  %334 = vmatprep.subr.mxu0 0.0
  %335 = vmatpush2.msra.mxu0 0.0
  %336 = vmatprep.subr.mxu0 0.0
  %337 = vmatpush2.msra.mxu0 0.0
  %338 = vmatprep.subr.mxu0 0.0
  %339 = vmatpush2.msra.mxu0 0.0
  %340 = vmatprep.subr.mxu0 0.0
  %341 = vmatpush2.msra.mxu0 0.0
  %342 = vmatprep.subr.mxu0 0.0
  %343 = vmatpush2.msra.mxu0 0.0
  %344 = vmatprep.subr.mxu0 0.0
  %345 = vmatpush2.msra.mxu0 0.0
  %346 = vmatprep.subr.mxu0 0.0
  %347 = vmatpush2.msra.mxu0 0.0
  %348 = vmatprep.subr.mxu0 0.0
  %349 = vmatpush2.msra.mxu0 0.0
  %350 = vmatprep.subr.mxu0 0.0
  %351 = vmatpush2.msra.mxu0 0.0
  %352 = vmatprep.subr.mxu0 0.0
  %353 = vmatpush2.msra.mxu0 0.0
  %354 = vmatprep.mubr.f32.mxu0 0.0
  %355 = vmatmul.mubr.f32.gmra.mxu0 %v35
  %v356 = vpop.f32.mrf.mxu0
  %v357 = vadd.f32 0.0, %v356
  %v358 = vpop.f32.mrf.mxu0
  %359 = vmatprep.mubr.f32.mxu0 0.0
  %360 = vmatmul.mubr.f32.gmra.mxu0 %v36
  %v361 = vpop.f32.mrf.mxu0
  %v362 = vadd.f32 0.0, %v361
  %v363 = vpop.f32.mrf.mxu0
  %364 = vmatprep.mubr.f32.mxu0 0.0
  %365 = vmatmul.mubr.f32.gmra.mxu0 %v37
  %v366 = vpop.f32.mrf.mxu0
  %v367 = vadd.f32 0.0, %v366
  %v368 = vpop.f32.mrf.mxu0
  %369 = vmatprep.mubr.f32.mxu0 0.0
  %370 = vmatmul.mubr.f32.gmra.mxu0 %v38
  %v371 = vpop.f32.mrf.mxu0
  %v372 = vadd.f32 0.0, %v371
  %v373 = vpop.f32.mrf.mxu0
  %374 = vmatprep.mubr.f32.mxu0 0.0
  %375 = vmatmul.mubr.f32.gmra.mxu0 %v39
  %v376 = vpop.f32.mrf.mxu0
  %v377 = vadd.f32 0.0, %v376
  %v378 = vpop.f32.mrf.mxu0
  %379 = vmatprep.mubr.f32.mxu0 0.0
  %380 = vmatmul.mubr.f32.gmra.mxu0 %v40
  %v381 = vpop.f32.mrf.mxu0
  %v382 = vadd.f32 0.0, %v381
  %v383 = vpop.f32.mrf.mxu0
  %384 = vmatprep.mubr.f32.mxu0 0.0
  %385 = vmatmul.mubr.f32.gmra.mxu0 %v41
  %v386 = vpop.f32.mrf.mxu0
  %v387 = vadd.f32 0.0, %v386
  %v388 = vpop.f32.mrf.mxu0
  %389 = vmatprep.mubr.f32.mxu0 0.0
  %390 = vmatmul.mubr.f32.gmra.mxu0 %v42
  %v391 = vpop.f32.mrf.mxu0
  %v392 = vadd.f32 0.0, %v391
  %v393 = vpop.f32.mrf.mxu0
  %394 = vmatprep.mubr.f32.mxu0 0.0
  %395 = vmatmul.mubr.f32.gmra.mxu0 %v43
  %v396 = vpop.f32.mrf.mxu0
  %v397 = vadd.f32 0.0, %v396
  %v398 = vpop.f32.mrf.mxu0
  %399 = vmatprep.mubr.f32.mxu0 0.0
  %400 = vmatmul.mubr.f32.gmra.mxu0 %v44
  %v401 = vpop.f32.mrf.mxu0
  %v402 = vadd.f32 0.0, %v401
  %v403 = vpop.f32.mrf.mxu0
  %404 = vmatprep.mubr.f32.mxu0 0.0
  %405 = vmatmul.mubr.f32.gmra.mxu0 %v45
  %v406 = vpop.f32.mrf.mxu0
  %v407 = vadd.f32 0.0, %v406
  %v408 = vpop.f32.mrf.mxu0
  %409 = vmatprep.mubr.f32.mxu0 0.0
  %410 = vmatmul.mubr.f32.gmra.mxu0 %v46
  %v411 = vpop.f32.mrf.mxu0
  %v412 = vadd.f32 0.0, %v411
  %v413 = vpop.f32.mrf.mxu0
  %414 = vmatprep.mubr.f32.mxu0 0.0
  %415 = vmatmul.mubr.f32.gmra.mxu0 %v47
  %v416 = vpop.f32.mrf.mxu0
  %v417 = vadd.f32 0.0, %v416
  %v418 = vpop.f32.mrf.mxu0
  %419 = vmatprep.mubr.f32.mxu0 0.0
  %420 = vmatmul.mubr.f32.gmra.mxu0 %v48
  %v421 = vpop.f32.mrf.mxu0
  %v422 = vadd.f32 0.0, %v421
  %v423 = vpop.f32.mrf.mxu0
  %424 = vmatprep.mubr.f32.mxu0 0.0
  %425 = vmatmul.mubr.f32.gmra.mxu0 %v49
  %v426 = vpop.f32.mrf.mxu0
  %v427 = vadd.f32 0.0, %v426
  %v428 = vpop.f32.mrf.mxu0
  %429 = vmatprep.mubr.f32.mxu0 0.0
  %430 = vmatmul.mubr.f32.gmra.mxu0 %v50
  %v431 = vpop.f32.mrf.mxu0
  %v432 = vadd.f32 0.0, %v431
  %v433 = vpop.f32.mrf.mxu0
  %434 = vmatprep.mubr.f32.mxu0 0.0
  %435 = vmatmul.mubr.f32.gmra.mxu0 %v51
  %v436 = vpop.f32.mrf.mxu0
  %v437 = vadd.f32 0.0, %v436
  %v438 = vpop.f32.mrf.mxu0
  %439 = vmatprep.mubr.f32.mxu0 0.0
  %440 = vmatmul.mubr.f32.gmra.mxu0 %v52
  %v441 = vpop.f32.mrf.mxu0
  %v442 = vadd.f32 0.0, %v441
  %v443 = vpop.f32.mrf.mxu0
  %444 = vmatprep.mubr.f32.mxu0 0.0
  %445 = vmatmul.mubr.f32.gmra.mxu0 %v53
  %v446 = vpop.f32.mrf.mxu0
  %v447 = vadd.f32 0.0, %v446
  %v448 = vpop.f32.mrf.mxu0
  %449 = vmatprep.mubr.f32.mxu0 0.0
  %450 = vmatmul.mubr.f32.gmra.mxu0 %v54
  %v451 = vpop.f32.mrf.mxu0
  %v452 = vadd.f32 0.0, %v451
  %v453 = vpop.f32.mrf.mxu0
  %454 = vmatprep.mubr.f32.mxu0 0.0
  %455 = vmatmul.mubr.f32.gmra.mxu0 %v55
  %v456 = vpop.f32.mrf.mxu0
  %v457 = vadd.f32 0.0, %v456
  %v458 = vpop.f32.mrf.mxu0
  %459 = vmatprep.mubr.f32.mxu0 0.0
  %460 = vmatmul.mubr.f32.gmra.mxu0 %v56
  %v461 = vpop.f32.mrf.mxu0
  %v462 = vadd.f32 0.0, %v461
  %v463 = vpop.f32.mrf.mxu0
  %464 = vmatprep.mubr.f32.mxu0 0.0
  %465 = vmatmul.mubr.f32.gmra.mxu0 %v57
  %v466 = vpop.f32.mrf.mxu0
  %v467 = vadd.f32 0.0, %v466
  %v468 = vpop.f32.mrf.mxu0
  %469 = vmatprep.mubr.f32.mxu0 0.0
  %470 = vmatmul.mubr.f32.gmra.mxu0 %v58
  %v471 = vpop.f32.mrf.mxu0
  %v472 = vadd.f32 0.0, %v471
  %v473 = vpop.f32.mrf.mxu0
  %474 = vmatprep.mubr.f32.mxu0 0.0
  %475 = vmatmul.mubr.f32.gmra.mxu0 %v59
  %v476 = vpop.f32.mrf.mxu0
  %v477 = vadd.f32 0.0, %v476
  %v478 = vpop.f32.mrf.mxu0
  %479 = vmatprep.mubr.f32.mxu0 0.0
  %480 = vmatmul.mubr.f32.gmra.mxu0 %v60
  %v481 = vpop.f32.mrf.mxu0
  %v482 = vadd.f32 0.0, %v481
  %v483 = vpop.f32.mrf.mxu0
  %484 = vmatprep.mubr.f32.mxu0 0.0
  %485 = vmatmul.mubr.f32.gmra.mxu0 %v61
  %v486 = vpop.f32.mrf.mxu0
  %v487 = vadd.f32 0.0, %v486
  %v488 = vpop.f32.mrf.mxu0
  %489 = vmatprep.mubr.f32.mxu0 0.0
  %490 = vmatmul.mubr.f32.gmra.mxu0 %v62
  %v491 = vpop.f32.mrf.mxu0
  %v492 = vadd.f32 0.0, %v491
  %v493 = vpop.f32.mrf.mxu0
  %494 = vmatprep.mubr.f32.mxu0 0.0
  %495 = vmatmul.mubr.f32.gmra.mxu0 %v63
  %v496 = vpop.f32.mrf.mxu0
  %v497 = vadd.f32 0.0, %v496
  %v498 = vpop.f32.mrf.mxu0
  %499 = vmatprep.mubr.f32.mxu0 0.0
  %500 = vmatmul.mubr.f32.gmra.mxu0 %v64
  %v501 = vpop.f32.mrf.mxu0
  %v502 = vadd.f32 0.0, %v501
  %v503 = vpop.f32.mrf.mxu0
  %504 = vmatprep.mubr.f32.mxu0 0.0
  %505 = vmatmul.mubr.f32.gmra.mxu0 %v65
  %v506 = vpop.f32.mrf.mxu0
  %v507 = vadd.f32 0.0, %v506
  %v508 = vpop.f32.mrf.mxu0
  %509 = vmatprep.mubr.f32.mxu0 0.0
  %510 = vmatmul.mubr.f32.gmra.mxu0 %v66
  %v511 = vpop.f32.mrf.mxu0
  %v512 = vadd.f32 0.0, %v511
  %v513 = vpop.f32.mrf.mxu0
  %514 = vmatprep.mubr.f32.mxu0 0.0
  %515 = vmatmul.mubr.f32.gmra.mxu0 %v67
  %v516 = vpop.f32.mrf.mxu0
  %v517 = vadd.f32 0.0, %v516
  %v518 = vpop.f32.mrf.mxu0
  %519 = vmatprep.mubr.f32.mxu0 0.0
  %520 = vmatmul.mubr.f32.gmra.mxu0 %v68
  %v521 = vpop.f32.mrf.mxu0
  %v522 = vadd.f32 0.0, %v521
  %v523 = vpop.f32.mrf.mxu0
  %524 = vmatprep.mubr.f32.mxu0 0.0
  %525 = vmatmul.mubr.f32.gmra.mxu0 %v69
  %v526 = vpop.f32.mrf.mxu0
  %v527 = vadd.f32 0.0, %v526
  %v528 = vpop.f32.mrf.mxu0
  %529 = vmatprep.mubr.f32.mxu0 0.0
  %530 = vmatmul.mubr.f32.gmra.mxu0 %v70
  %v531 = vpop.f32.mrf.mxu0
  %v532 = vadd.f32 0.0, %v531
  %v533 = vpop.f32.mrf.mxu0
  %534 = vmatprep.mubr.f32.mxu0 0.0
  %535 = vmatmul.mubr.f32.gmra.mxu0 %v71
  %v536 = vpop.f32.mrf.mxu0
  %v537 = vadd.f32 0.0, %v536
  %v538 = vpop.f32.mrf.mxu0
  %539 = vmatprep.mubr.f32.mxu0 0.0
  %540 = vmatmul.mubr.f32.gmra.mxu0 %v72
  %v541 = vpop.f32.mrf.mxu0
  %v542 = vadd.f32 0.0, %v541
  %v543 = vpop.f32.mrf.mxu0
  %544 = vmatprep.mubr.f32.mxu0 0.0
  %545 = vmatmul.mubr.f32.gmra.mxu0 %v73
  %v546 = vpop.f32.mrf.mxu0
  %v547 = vadd.f32 0.0, %v546
  %v548 = vpop.f32.mrf.mxu0
  %549 = vmatprep.mubr.f32.mxu0 0.0
  %550 = vmatmul.mubr.f32.gmra.mxu0 %v74
  %v551 = vpop.f32.mrf.mxu0
  %v552 = vadd.f32 0.0, %v551
  %v553 = vpop.f32.mrf.mxu0
  %554 = vmatprep.mubr.f32.mxu0 0.0
  %555 = vmatmul.mubr.f32.gmra.mxu0 %v75
  %v556 = vpop.f32.mrf.mxu0
  %v557 = vadd.f32 0.0, %v556
  %v558 = vpop.f32.mrf.mxu0
  %559 = vmatprep.mubr.f32.mxu0 0.0
  %560 = vmatmul.mubr.f32.gmra.mxu0 %v76
  %v561 = vpop.f32.mrf.mxu0
  %v562 = vadd.f32 0.0, %v561
  %v563 = vpop.f32.mrf.mxu0
  %564 = vmatprep.mubr.f32.mxu0 0.0
  %565 = vmatmul.mubr.f32.gmra.mxu0 %v77
  %v566 = vpop.f32.mrf.mxu0
  %v567 = vadd.f32 0.0, %v566
  %v568 = vpop.f32.mrf.mxu0
  %569 = vmatprep.mubr.f32.mxu0 0.0
  %570 = vmatmul.mubr.f32.gmra.mxu0 %v78
  %v571 = vpop.f32.mrf.mxu0
  %v572 = vadd.f32 0.0, %v571
  %v573 = vpop.f32.mrf.mxu0
  %574 = vmatprep.mubr.f32.mxu0 0.0
  %575 = vmatmul.mubr.f32.gmra.mxu0 %v79
  %v576 = vpop.f32.mrf.mxu0
  %v577 = vadd.f32 0.0, %v576
  %v578 = vpop.f32.mrf.mxu0
  %579 = vmatprep.mubr.f32.mxu0 0.0
  %580 = vmatmul.mubr.f32.gmra.mxu0 %v80
  %v581 = vpop.f32.mrf.mxu0
  %v582 = vadd.f32 0.0, %v581
  %v583 = vpop.f32.mrf.mxu0
  %584 = vmatprep.mubr.f32.mxu0 0.0
  %585 = vmatmul.mubr.f32.gmra.mxu0 %v81
  %v586 = vpop.f32.mrf.mxu0
  %v587 = vadd.f32 0.0, %v586
  %v588 = vpop.f32.mrf.mxu0
  %589 = vmatprep.mubr.f32.mxu0 0.0
  %590 = vmatmul.mubr.f32.gmra.mxu0 %v82
  %v591 = vpop.f32.mrf.mxu0
  %v592 = vadd.f32 0.0, %v591
  %v593 = vpop.f32.mrf.mxu0
  %594 = vmatprep.mubr.f32.mxu0 0.0
  %595 = vmatmul.mubr.f32.gmra.mxu0 %v83
  %v596 = vpop.f32.mrf.mxu0
  %v597 = vadd.f32 0.0, %v596
  %v598 = vpop.f32.mrf.mxu0
  %599 = vmatprep.mubr.f32.mxu0 0.0
  %600 = vmatmul.mubr.f32.gmra.mxu0 %v84
  %v601 = vpop.f32.mrf.mxu0
  %v602 = vadd.f32 0.0, %v601
  %v603 = vpop.f32.mrf.mxu0
  %604 = vmatprep.mubr.f32.mxu0 0.0
  %605 = vmatmul.mubr.f32.gmra.mxu0 %v85
  %v606 = vpop.f32.mrf.mxu0
  %v607 = vadd.f32 0.0, %v606
  %v608 = vpop.f32.mrf.mxu0
  %609 = vmatprep.mubr.f32.mxu0 0.0
  %610 = vmatmul.mubr.f32.gmra.mxu0 %v86
  %v611 = vpop.f32.mrf.mxu0
  %v612 = vadd.f32 0.0, %v611
  %v613 = vpop.f32.mrf.mxu0
  %614 = vmatprep.mubr.f32.mxu0 0.0
  %615 = vmatmul.mubr.f32.gmra.mxu0 %v87
  %v616 = vpop.f32.mrf.mxu0
  %v617 = vadd.f32 0.0, %v616
  %v618 = vpop.f32.mrf.mxu0
  %619 = vmatprep.mubr.f32.mxu0 0.0
  %620 = vmatmul.mubr.f32.gmra.mxu0 %v88
  %v621 = vpop.f32.mrf.mxu0
  %v622 = vadd.f32 0.0, %v621
  %v623 = vpop.f32.mrf.mxu0
  %624 = vmatprep.mubr.f32.mxu0 0.0
  %625 = vmatmul.mubr.f32.gmra.mxu0 %v89
  %v626 = vpop.f32.mrf.mxu0
  %v627 = vadd.f32 0.0, %v626
  %v628 = vpop.f32.mrf.mxu0
  %629 = vmatprep.mubr.f32.mxu0 0.0
  %630 = vmatmul.mubr.f32.gmra.mxu0 %v90
  %v631 = vpop.f32.mrf.mxu0
  %v632 = vadd.f32 0.0, %v631
  %v633 = vpop.f32.mrf.mxu0
  %634 = vmatprep.mubr.f32.mxu0 0.0
  %635 = vmatmul.mubr.f32.gmra.mxu0 %v91
  %v636 = vpop.f32.mrf.mxu0
  %v637 = vadd.f32 0.0, %v636
  %v638 = vpop.f32.mrf.mxu0
  %639 = vmatprep.mubr.f32.mxu0 0.0
  %640 = vmatmul.mubr.f32.gmra.mxu0 %v92
  %v641 = vpop.f32.mrf.mxu0
  %v642 = vadd.f32 0.0, %v641
  %v643 = vpop.f32.mrf.mxu0
  %644 = vmatprep.mubr.f32.mxu0 0.0
  %645 = vmatmul.mubr.f32.gmra.mxu0 %v93
  %v646 = vpop.f32.mrf.mxu0
  %v647 = vadd.f32 0.0, %v646
  %v648 = vpop.f32.mrf.mxu0
  %649 = vmatprep.mubr.f32.mxu0 0.0
  %650 = vmatmul.mubr.f32.gmra.mxu0 %v94
  %v651 = vpop.f32.mrf.mxu0
  %v652 = vadd.f32 0.0, %v651
  %v653 = vpop.f32.mrf.mxu0
  %654 = vmatprep.mubr.f32.mxu0 0.0
  %655 = vmatmul.mubr.f32.gmra.mxu0 %v95
  %v656 = vpop.f32.mrf.mxu0
  %v657 = vadd.f32 0.0, %v656
  %v658 = vpop.f32.mrf.mxu0
  %659 = vmatprep.mubr.f32.mxu0 0.0
  %660 = vmatmul.mubr.f32.gmra.mxu0 %v96
  %v661 = vpop.f32.mrf.mxu0
  %v662 = vadd.f32 0.0, %v661
  %v663 = vpop.f32.mrf.mxu0
  %664 = vmatprep.mubr.f32.mxu0 0.0
  %665 = vmatmul.mubr.f32.gmra.mxu0 %v97
  %v666 = vpop.f32.mrf.mxu0
  %v667 = vadd.f32 0.0, %v666
  %v668 = vpop.f32.mrf.mxu0
  %669 = vmatprep.mubr.f32.mxu0 0.0
  %670 = vmatmul.mubr.f32.gmra.mxu0 %v98
  %v671 = vpop.f32.mrf.mxu0
  %v672 = vadd.f32 0.0, %v671
  %v673 = vpop.f32.mrf.mxu0
  %674 = vmatprep.mubr.f32.mxu0 0.0
  %675 = vmatmul.mubr.f32.gmra.mxu0 %v99
  %v676 = vpop.f32.mrf.mxu0
  %v677 = vadd.f32 0.0, %v676
  %v678 = vpop.f32.mrf.mxu0
  %679 = vmatprep.mubr.f32.mxu0 0.0
  %680 = vmatmul.mubr.f32.gmra.mxu0 %v100
  %v681 = vpop.f32.mrf.mxu0
  %v682 = vadd.f32 0.0, %v681
  %v683 = vpop.f32.mrf.mxu0
  %684 = vmatprep.mubr.f32.mxu0 0.0
  %685 = vmatmul.mubr.f32.gmra.mxu0 %v101
  %v686 = vpop.f32.mrf.mxu0
  %v687 = vadd.f32 0.0, %v686
  %v688 = vpop.f32.mrf.mxu0
  %689 = vmatprep.mubr.f32.mxu0 0.0
  %690 = vmatmul.mubr.f32.gmra.mxu0 %v102
  %v691 = vpop.f32.mrf.mxu0
  %v692 = vadd.f32 0.0, %v691
  %v693 = vpop.f32.mrf.mxu0
  %694 = vmatprep.mubr.f32.mxu0 0.0
  %695 = vmatmul.mubr.f32.gmra.mxu0 %v103
  %v696 = vpop.f32.mrf.mxu0
  %v697 = vadd.f32 0.0, %v696
  %v698 = vpop.f32.mrf.mxu0
  %699 = vmatprep.mubr.f32.mxu0 0.0
  %700 = vmatmul.mubr.f32.gmra.mxu0 %v104
  %v701 = vpop.f32.mrf.mxu0
  %v702 = vadd.f32 0.0, %v701
  %v703 = vpop.f32.mrf.mxu0
  %704 = vmatprep.mubr.f32.mxu0 0.0
  %705 = vmatmul.mubr.f32.gmra.mxu0 %v105
  %v706 = vpop.f32.mrf.mxu0
  %v707 = vadd.f32 0.0, %v706
  %v708 = vpop.f32.mrf.mxu0
  %709 = vmatprep.mubr.f32.mxu0 0.0
  %710 = vmatmul.mubr.f32.gmra.mxu0 %v106
  %v711 = vpop.f32.mrf.mxu0
  %v712 = vadd.f32 0.0, %v711
  %v713 = vpop.f32.mrf.mxu0
  %714 = vmatprep.mubr.f32.mxu0 0.0
  %715 = vmatmul.mubr.f32.gmra.mxu0 %v107
  %v716 = vpop.f32.mrf.mxu0
  %v717 = vadd.f32 0.0, %v716
  %v718 = vpop.f32.mrf.mxu0
  %719 = vmatprep.mubr.f32.mxu0 0.0
  %720 = vmatmul.mubr.f32.gmra.mxu0 %v108
  %v721 = vpop.f32.mrf.mxu0
  %v722 = vadd.f32 0.0, %v721
  %v723 = vpop.f32.mrf.mxu0
  %724 = vmatprep.mubr.f32.mxu0 0.0
  %725 = vmatmul.mubr.f32.gmra.mxu0 %v109
  %v726 = vpop.f32.mrf.mxu0
  %v727 = vadd.f32 0.0, %v726
  %v728 = vpop.f32.mrf.mxu0
  %729 = vmatprep.mubr.f32.mxu0 0.0
  %730 = vmatmul.mubr.f32.gmra.mxu0 %v110
  %v731 = vpop.f32.mrf.mxu0
  %v732 = vadd.f32 0.0, %v731
  %v733 = vpop.f32.mrf.mxu0
  %734 = vmatprep.mubr.f32.mxu0 0.0
  %735 = vmatmul.mubr.f32.gmra.mxu0 %v111
  %v736 = vpop.f32.mrf.mxu0
  %v737 = vadd.f32 0.0, %v736
  %v738 = vpop.f32.mrf.mxu0
  %739 = vmatprep.mubr.f32.mxu0 0.0
  %740 = vmatmul.mubr.f32.gmra.mxu0 %v112
  %v741 = vpop.f32.mrf.mxu0
  %v742 = vadd.f32 0.0, %v741
  %v743 = vpop.f32.mrf.mxu0
  %744 = vmatprep.mubr.f32.mxu0 0.0
  %745 = vmatmul.mubr.f32.gmra.mxu0 %v113
  %v746 = vpop.f32.mrf.mxu0
  %v747 = vadd.f32 0.0, %v746
  %v748 = vpop.f32.mrf.mxu0
  %749 = vmatprep.mubr.f32.mxu0 0.0
  %750 = vmatmul.mubr.f32.gmra.mxu0 %v114
  %v751 = vpop.f32.mrf.mxu0
  %v752 = vadd.f32 0.0, %v751
  %v753 = vpop.f32.mrf.mxu0
  %754 = vmatprep.mubr.f32.mxu0 0.0
  %755 = vmatmul.mubr.f32.gmra.mxu0 %v115
  %v756 = vpop.f32.mrf.mxu0
  %v757 = vadd.f32 0.0, %v756
  %v758 = vpop.f32.mrf.mxu0
  %759 = vmatprep.mubr.f32.mxu0 0.0
  %760 = vmatmul.mubr.f32.gmra.mxu0 %v116
  %v761 = vpop.f32.mrf.mxu0
  %v762 = vadd.f32 0.0, %v761
  %v763 = vpop.f32.mrf.mxu0
  %764 = vmatprep.mubr.f32.mxu0 0.0
  %765 = vmatmul.mubr.f32.gmra.mxu0 %v117
  %v766 = vpop.f32.mrf.mxu0
  %v767 = vadd.f32 0.0, %v766
  %v768 = vpop.f32.mrf.mxu0
  %769 = vmatprep.mubr.f32.mxu0 0.0
  %770 = vmatmul.mubr.f32.gmra.mxu0 %v118
  %v771 = vpop.f32.mrf.mxu0
  %v772 = vadd.f32 0.0, %v771
  %v773 = vpop.f32.mrf.mxu0
  %774 = vmatprep.mubr.f32.mxu0 0.0
  %775 = vmatmul.mubr.f32.gmra.mxu0 %v119
  %v776 = vpop.f32.mrf.mxu0
  %v777 = vadd.f32 0.0, %v776
  %v778 = vpop.f32.mrf.mxu0
  %779 = vmatprep.mubr.f32.mxu0 0.0
  %780 = vmatmul.mubr.f32.gmra.mxu0 %v120
  %v781 = vpop.f32.mrf.mxu0
  %v782 = vadd.f32 0.0, %v781
  %v783 = vpop.f32.mrf.mxu0
  %784 = vmatprep.mubr.f32.mxu0 0.0
  %785 = vmatmul.mubr.f32.gmra.mxu0 %v121
  %v786 = vpop.f32.mrf.mxu0
  %v787 = vadd.f32 0.0, %v786
  %v788 = vpop.f32.mrf.mxu0
  %789 = vmatprep.mubr.f32.mxu0 0.0
  %790 = vmatmul.mubr.f32.gmra.mxu0 %v122
  %v791 = vpop.f32.mrf.mxu0
  %v792 = vadd.f32 0.0, %v791
  %v793 = vpop.f32.mrf.mxu0
  %794 = vmatprep.mubr.f32.mxu0 0.0
  %795 = vmatmul.mubr.f32.gmra.mxu0 %v123
  %v796 = vpop.f32.mrf.mxu0
  %v797 = vadd.f32 0.0, %v796
  %v798 = vpop.f32.mrf.mxu0
  %799 = vmatprep.mubr.f32.mxu0 0.0
  %800 = vmatmul.mubr.f32.gmra.mxu0 %v124
  %v801 = vpop.f32.mrf.mxu0
  %v802 = vadd.f32 0.0, %v801
  %v803 = vpop.f32.mrf.mxu0
  %804 = vmatprep.mubr.f32.mxu0 0.0
  %805 = vmatmul.mubr.f32.gmra.mxu0 %v125
  %v806 = vpop.f32.mrf.mxu0
  %v807 = vadd.f32 0.0, %v806
  %v808 = vpop.f32.mrf.mxu0
  %809 = vmatprep.mubr.f32.mxu0 0.0
  %810 = vmatmul.mubr.f32.gmra.mxu0 %v126
  %v811 = vpop.f32.mrf.mxu0
  %v812 = vadd.f32 0.0, %v811
  %v813 = vpop.f32.mrf.mxu0
  %814 = vmatprep.mubr.f32.mxu0 0.0
  %815 = vmatmul.mubr.f32.gmra.mxu0 %v127
  %v816 = vpop.f32.mrf.mxu0
  %v817 = vadd.f32 0.0, %v816
  %v818 = vpop.f32.mrf.mxu0
  %819 = vmatprep.mubr.f32.mxu0 0.0
  %820 = vmatmul.mubr.f32.gmra.mxu0 %v128
  %v821 = vpop.f32.mrf.mxu0
  %v822 = vadd.f32 0.0, %v821
  %v823 = vpop.f32.mrf.mxu0
  %824 = vmatprep.mubr.f32.mxu0 0.0
  %825 = vmatmul.mubr.f32.gmra.mxu0 %v129
  %v826 = vpop.f32.mrf.mxu0
  %v827 = vadd.f32 0.0, %v826
  %v828 = vpop.f32.mrf.mxu0
  %829 = vmatprep.mubr.f32.mxu0 0.0
  %830 = vmatmul.mubr.f32.gmra.mxu0 %v130
  %v831 = vpop.f32.mrf.mxu0
  %v832 = vadd.f32 0.0, %v831
  %v833 = vpop.f32.mrf.mxu0
  %834 = vmatprep.mubr.f32.mxu0 0.0
  %835 = vmatmul.mubr.f32.gmra.mxu0 %v131
  %v836 = vpop.f32.mrf.mxu0
  %v837 = vadd.f32 0.0, %v836
  %v838 = vpop.f32.mrf.mxu0
  %839 = vmatprep.mubr.f32.mxu0 0.0
  %840 = vmatmul.mubr.f32.gmra.mxu0 %v132
  %v841 = vpop.f32.mrf.mxu0
  %v842 = vadd.f32 0.0, %v841
  %v843 = vpop.f32.mrf.mxu0
  %844 = vmatprep.mubr.f32.mxu0 0.0
  %845 = vmatmul.mubr.f32.gmra.mxu0 %v133
  %v846 = vpop.f32.mrf.mxu0
  %v847 = vadd.f32 0.0, %v846
  %v848 = vpop.f32.mrf.mxu0
  %849 = vmatprep.mubr.f32.mxu0 0.0
  %850 = vmatmul.mubr.f32.gmra.mxu0 %v134
  %v851 = vpop.f32.mrf.mxu0
  %v852 = vadd.f32 0.0, %v851
  %v853 = vpop.f32.mrf.mxu0
  %854 = vmatprep.mubr.f32.mxu0 0.0
  %855 = vmatmul.mubr.f32.gmra.mxu0 %v135
  %v856 = vpop.f32.mrf.mxu0
  %v857 = vadd.f32 0.0, %v856
  %v858 = vpop.f32.mrf.mxu0
  %859 = vmatprep.mubr.f32.mxu0 0.0
  %860 = vmatmul.mubr.f32.gmra.mxu0 %v136
  %v861 = vpop.f32.mrf.mxu0
  %v862 = vadd.f32 0.0, %v861
  %v863 = vpop.f32.mrf.mxu0
  %864 = vmatprep.mubr.f32.mxu0 0.0
  %865 = vmatmul.mubr.f32.gmra.mxu0 %v137
  %v866 = vpop.f32.mrf.mxu0
  %v867 = vadd.f32 0.0, %v866
  %v868 = vpop.f32.mrf.mxu0
  %869 = vmatprep.mubr.f32.mxu0 0.0
  %870 = vmatmul.mubr.f32.gmra.mxu0 %v138
  %v871 = vpop.f32.mrf.mxu0
  %v872 = vadd.f32 0.0, %v871
  %v873 = vpop.f32.mrf.mxu0
  %874 = vmatprep.mubr.f32.mxu0 0.0
  %875 = vmatmul.mubr.f32.gmra.mxu0 %v139
  %v876 = vpop.f32.mrf.mxu0
  %v877 = vadd.f32 0.0, %v876
  %v878 = vpop.f32.mrf.mxu0
  %879 = vmatprep.mubr.f32.mxu0 0.0
  %880 = vmatmul.mubr.f32.gmra.mxu0 %v140
  %v881 = vpop.f32.mrf.mxu0
  %v882 = vadd.f32 0.0, %v881
  %v883 = vpop.f32.mrf.mxu0
  %884 = vmatprep.mubr.f32.mxu0 0.0
  %885 = vmatmul.mubr.f32.gmra.mxu0 %v141
  %v886 = vpop.f32.mrf.mxu0
  %v887 = vadd.f32 0.0, %v886
  %v888 = vpop.f32.mrf.mxu0
  %889 = vmatprep.mubr.f32.mxu0 0.0
  %890 = vmatmul.mubr.f32.gmra.mxu0 %v142
  %v891 = vpop.f32.mrf.mxu0
  %v892 = vadd.f32 0.0, %v891
  %v893 = vpop.f32.mrf.mxu0
  %894 = vmatprep.mubr.f32.mxu0 0.0
  %895 = vmatmul.mubr.f32.gmra.mxu0 %v143
  %v896 = vpop.f32.mrf.mxu0
  %v897 = vadd.f32 0.0, %v896
  %v898 = vpop.f32.mrf.mxu0
  %899 = vmatprep.mubr.f32.mxu0 0.0
  %900 = vmatmul.mubr.f32.gmra.mxu0 %v144
  %v901 = vpop.f32.mrf.mxu0
  %v902 = vadd.f32 0.0, %v901
  %v903 = vpop.f32.mrf.mxu0
  %904 = vmatprep.mubr.f32.mxu0 0.0
  %905 = vmatmul.mubr.f32.gmra.mxu0 %v145
  %v906 = vpop.f32.mrf.mxu0
  %v907 = vadd.f32 0.0, %v906
  %v908 = vpop.f32.mrf.mxu0
  %909 = vmatprep.mubr.f32.mxu0 0.0
  %910 = vmatmul.mubr.f32.gmra.mxu0 %v146
  %v911 = vpop.f32.mrf.mxu0
  %v912 = vadd.f32 0.0, %v911
  %v913 = vpop.f32.mrf.mxu0
  %914 = vmatprep.mubr.f32.mxu0 0.0
  %915 = vmatmul.mubr.f32.gmra.mxu0 %v147
  %v916 = vpop.f32.mrf.mxu0
  %v917 = vadd.f32 0.0, %v916
  %v918 = vpop.f32.mrf.mxu0
  %919 = vmatprep.mubr.f32.mxu0 0.0
  %920 = vmatmul.mubr.f32.gmra.mxu0 %v148
  %v921 = vpop.f32.mrf.mxu0
  %v922 = vadd.f32 0.0, %v921
  %v923 = vpop.f32.mrf.mxu0
  %924 = vmatprep.mubr.f32.mxu0 0.0
  %925 = vmatmul.mubr.f32.gmra.mxu0 %v149
  %v926 = vpop.f32.mrf.mxu0
  %v927 = vadd.f32 0.0, %v926
  %v928 = vpop.f32.mrf.mxu0
  %929 = vmatprep.mubr.f32.mxu0 0.0
  %930 = vmatmul.mubr.f32.gmra.mxu0 %v150
  %v931 = vpop.f32.mrf.mxu0
  %v932 = vadd.f32 0.0, %v931
  %v933 = vpop.f32.mrf.mxu0
  %934 = vmatprep.mubr.f32.mxu0 0.0
  %935 = vmatmul.mubr.f32.gmra.mxu0 %v151
  %v936 = vpop.f32.mrf.mxu0
  %v937 = vadd.f32 0.0, %v936
  %v938 = vpop.f32.mrf.mxu0
  %939 = vmatprep.mubr.f32.mxu0 0.0
  %940 = vmatmul.mubr.f32.gmra.mxu0 %v152
  %v941 = vpop.f32.mrf.mxu0
  %v942 = vadd.f32 0.0, %v941
  %v943 = vpop.f32.mrf.mxu0
  %944 = vmatprep.mubr.f32.mxu0 0.0
  %945 = vmatmul.mubr.f32.gmra.mxu0 %v153
  %v946 = vpop.f32.mrf.mxu0
  %v947 = vadd.f32 0.0, %v946
  %v948 = vpop.f32.mrf.mxu0
  %949 = vmatprep.mubr.f32.mxu0 0.0
  %950 = vmatmul.mubr.f32.gmra.mxu0 %v154
  %v951 = vpop.f32.mrf.mxu0
  %v952 = vadd.f32 0.0, %v951
  %v953 = vpop.f32.mrf.mxu0
  %954 = vmatprep.mubr.f32.mxu0 0.0
  %955 = vmatmul.mubr.f32.gmra.mxu0 %v155
  %v956 = vpop.f32.mrf.mxu0
  %v957 = vadd.f32 0.0, %v956
  %v958 = vpop.f32.mrf.mxu0
  %959 = vmatprep.mubr.f32.mxu0 0.0
  %960 = vmatmul.mubr.f32.gmra.mxu0 %v156
  %v961 = vpop.f32.mrf.mxu0
  %v962 = vadd.f32 0.0, %v961
  %v963 = vpop.f32.mrf.mxu0
  %964 = vmatprep.mubr.f32.mxu0 0.0
  %965 = vmatmul.mubr.f32.gmra.mxu0 %v157
  %v966 = vpop.f32.mrf.mxu0
  %v967 = vadd.f32 0.0, %v966
  %v968 = vpop.f32.mrf.mxu0
  %969 = vmatprep.mubr.f32.mxu0 0.0
  %970 = vmatmul.mubr.f32.gmra.mxu0 %v158
  %v971 = vpop.f32.mrf.mxu0
  %v972 = vadd.f32 0.0, %v971
  %v973 = vpop.f32.mrf.mxu0
  %974 = vmatprep.mubr.f32.mxu0 0.0
  %975 = vmatmul.mubr.f32.gmra.mxu0 %v159
  %v976 = vpop.f32.mrf.mxu0
  %v977 = vadd.f32 0.0, %v976
  %v978 = vpop.f32.mrf.mxu0
  %979 = vmatprep.mubr.f32.mxu0 0.0
  %980 = vmatmul.mubr.f32.gmra.mxu0 %v160
  %v981 = vpop.f32.mrf.mxu0
  %v982 = vadd.f32 0.0, %v981
  %v983 = vpop.f32.mrf.mxu0
  %984 = vmatprep.mubr.f32.mxu0 0.0
  %985 = vmatmul.mubr.f32.gmra.mxu0 %v161
  %v986 = vpop.f32.mrf.mxu0
  %v987 = vadd.f32 0.0, %v986
  %v988 = vpop.f32.mrf.mxu0
  %989 = vmatprep.mubr.f32.mxu0 0.0
  %990 = vmatmul.mubr.f32.gmra.mxu0 %v162
  %v991 = vpop.f32.mrf.mxu0
  %v992 = vadd.f32 0.0, %v991
  %v993 = vpop.f32.mrf.mxu0
  %994 = vdwg.mxu0
  %v996 = vcombine.high %v273, %v273
  %v998 = vunpack.c.l.s4 1966171168
  %v999 = vunpack.c.0.s8 %v998
  %v1000 = vlaneseq
  %v1001 = vshrl.u32 %v1000, 7
  %v1002 = vsub.s32 %v999, %v1001
  %v1003 = vrot.slane %v273, %v1002
  %v1005 = vunpack.c.l.s4 1966171168
  %v1006 = vunpack.c.0.s8 %v1005
  %v1007 = vlaneseq
  %v1008 = vshrl.u32 %v1007, 7
  %v1009 = vsub.s32 %v1006, %v1008
  %v1010 = vrot.slane %v996, %v1009
  %v1011 = vcombine.high %v1003, %v1003
  %v1012 = vcombine.high %v1010, %v1010
  %v1014 = vunpack.c.l.s4 1966171168
  %v1015 = vunpack.c.0.s8 %v1014
  %v1016 = vlaneseq
  %v1017 = vshrl.u32 %v1016, 7
  %v1018 = vsub.s32 %v1015, %v1017
  %v1019 = vrot.slane %v1003, %v1018
  %v1021 = vunpack.c.l.s4 1966171168
  %v1022 = vunpack.c.0.s8 %v1021
  %v1023 = vlaneseq
  %v1024 = vshrl.u32 %v1023, 7
  %v1025 = vsub.s32 %v1022, %v1024
  %v1026 = vrot.slane %v1010, %v1025
  %v1028 = vunpack.c.l.s4 1966171168
  %v1029 = vunpack.c.0.s8 %v1028
  %v1030 = vlaneseq
  %v1031 = vshrl.u32 %v1030, 7
  %v1032 = vsub.s32 %v1029, %v1031
  %v1033 = vrot.slane %v1011, %v1032
  %v1035 = vunpack.c.l.s4 1966171168
  %v1036 = vunpack.c.0.s8 %v1035
  %v1037 = vlaneseq
  %v1038 = vshrl.u32 %v1037, 7
  %v1039 = vsub.s32 %v1036, %v1038
  %v1040 = vrot.slane %v1012, %v1039
  %v1041 = vcombine.high %v1019, %v1019
  %v1042 = vcombine.high %v1026, %v1026
  %v1043 = vcombine.high %v1033, %v1033
  %v1044 = vcombine.high %v1040, %v1040
  %v1045 = vlaneseq
  %v1046 = vshrl.u32 %v1045, 7
  %v1047 = vsub.s32 0, %v1046
  %v1048 = vrot.slane %v1019, %v1047
  %v1049 = vlaneseq
  %v1050 = vshrl.u32 %v1049, 7
  %v1051 = vsub.s32 0, %v1050
  %v1052 = vrot.slane %v1033, %v1051
  %v1053 = vlaneseq
  %v1054 = vshrl.u32 %v1053, 7
  %v1055 = vsub.s32 0, %v1054
  %v1056 = vrot.slane %v1041, %v1055
  %v1057 = vlaneseq
  %v1058 = vshrl.u32 %v1057, 7
  %v1059 = vsub.s32 0, %v1058
  %v1060 = vrot.slane %v1043, %v1059
  %v1061 = vlaneseq
  %v1062 = vshrl.u32 %v1061, 7
  %v1063 = vsub.s32 0, %v1062
  %v1064 = vrot.slane %v1026, %v1063
  %v1065 = vlaneseq
  %v1066 = vshrl.u32 %v1065, 7
  %v1067 = vsub.s32 0, %v1066
  %v1068 = vrot.slane %v1040, %v1067
  %v1069 = vlaneseq
  %v1070 = vshrl.u32 %v1069, 7
  %v1071 = vsub.s32 0, %v1070
  %v1072 = vrot.slane %v1042, %v1071
  %v1073 = vlaneseq
  %v1074 = vshrl.u32 %v1073, 7
  %v1075 = vsub.s32 0, %v1074
  %v1076 = vrot.slane %v1044, %v1075
  %v1085 = vadd.f32 %v1048, %v357
  %v1086 = vadd.f32 %v1048, %v362
  %v1087 = vadd.f32 %v1048, %v367
  %v1088 = vadd.f32 %v1048, %v372
  %v1089 = vadd.f32 %v1048, %v377
  %v1090 = vadd.f32 %v1048, %v382
  %v1091 = vadd.f32 %v1048, %v387
  %v1092 = vadd.f32 %v1048, %v392
  %v1093 = vadd.f32 %v1048, %v397
  %v1094 = vadd.f32 %v1048, %v402
  %v1095 = vadd.f32 %v1048, %v407
  %v1096 = vadd.f32 %v1048, %v412
  %v1097 = vadd.f32 %v1048, %v417
  %v1098 = vadd.f32 %v1048, %v422
  %v1099 = vadd.f32 %v1048, %v427
  %v1100 = vadd.f32 %v1048, %v432
  %v1101 = vadd.f32 %v1052, %v437
  %v1102 = vadd.f32 %v1052, %v442
  %v1103 = vadd.f32 %v1052, %v447
  %v1104 = vadd.f32 %v1052, %v452
  %v1105 = vadd.f32 %v1052, %v457
  %v1106 = vadd.f32 %v1052, %v462
  %v1107 = vadd.f32 %v1052, %v467
  %v1108 = vadd.f32 %v1052, %v472
  %v1109 = vadd.f32 %v1052, %v477
  %v1110 = vadd.f32 %v1052, %v482
  %v1111 = vadd.f32 %v1052, %v487
  %v1112 = vadd.f32 %v1052, %v492
  %v1113 = vadd.f32 %v1052, %v497
  %v1114 = vadd.f32 %v1052, %v502
  %v1115 = vadd.f32 %v1052, %v507
  %v1116 = vadd.f32 %v1052, %v512
  %v1117 = vadd.f32 %v1056, %v517
  %v1118 = vadd.f32 %v1056, %v522
  %v1119 = vadd.f32 %v1056, %v527
  %v1120 = vadd.f32 %v1056, %v532
  %v1121 = vadd.f32 %v1056, %v537
  %v1122 = vadd.f32 %v1056, %v542
  %v1123 = vadd.f32 %v1056, %v547
  %v1124 = vadd.f32 %v1056, %v552
  %v1125 = vadd.f32 %v1056, %v557
  %v1126 = vadd.f32 %v1056, %v562
  %v1127 = vadd.f32 %v1056, %v567
  %v1128 = vadd.f32 %v1056, %v572
  %v1129 = vadd.f32 %v1056, %v577
  %v1130 = vadd.f32 %v1056, %v582
  %v1131 = vadd.f32 %v1056, %v587
  %v1132 = vadd.f32 %v1056, %v592
  %v1133 = vadd.f32 %v1060, %v597
  %v1134 = vadd.f32 %v1060, %v602
  %v1135 = vadd.f32 %v1060, %v607
  %v1136 = vadd.f32 %v1060, %v612
  %v1137 = vadd.f32 %v1060, %v617
  %v1138 = vadd.f32 %v1060, %v622
  %v1139 = vadd.f32 %v1060, %v627
  %v1140 = vadd.f32 %v1060, %v632
  %v1141 = vadd.f32 %v1060, %v637
  %v1142 = vadd.f32 %v1060, %v642
  %v1143 = vadd.f32 %v1060, %v647
  %v1144 = vadd.f32 %v1060, %v652
  %v1145 = vadd.f32 %v1060, %v657
  %v1146 = vadd.f32 %v1060, %v662
  %v1147 = vadd.f32 %v1060, %v667
  %v1148 = vadd.f32 %v1060, %v672
  %v1149 = vadd.f32 %v1064, %v677
  %v1150 = vadd.f32 %v1064, %v682
  %v1151 = vadd.f32 %v1064, %v687
  %v1152 = vadd.f32 %v1064, %v692
  %v1153 = vadd.f32 %v1064, %v697
  %v1154 = vadd.f32 %v1064, %v702
  %v1155 = vadd.f32 %v1064, %v707
  %v1156 = vadd.f32 %v1064, %v712
  %v1157 = vadd.f32 %v1064, %v717
  %v1158 = vadd.f32 %v1064, %v722
  %v1159 = vadd.f32 %v1064, %v727
  %v1160 = vadd.f32 %v1064, %v732
  %v1161 = vadd.f32 %v1064, %v737
  %v1162 = vadd.f32 %v1064, %v742
  %v1163 = vadd.f32 %v1064, %v747
  %v1164 = vadd.f32 %v1064, %v752
  %v1165 = vadd.f32 %v1068, %v757
  %v1166 = vadd.f32 %v1068, %v762
  %v1167 = vadd.f32 %v1068, %v767
  %v1168 = vadd.f32 %v1068, %v772
  %v1169 = vadd.f32 %v1068, %v777
  %v1170 = vadd.f32 %v1068, %v782
  %v1171 = vadd.f32 %v1068, %v787
  %v1172 = vadd.f32 %v1068, %v792
  %v1173 = vadd.f32 %v1068, %v797
  %v1174 = vadd.f32 %v1068, %v802
  %v1175 = vadd.f32 %v1068, %v807
  %v1176 = vadd.f32 %v1068, %v812
  %v1177 = vadd.f32 %v1068, %v817
  %v1178 = vadd.f32 %v1068, %v822
  %v1179 = vadd.f32 %v1068, %v827
  %v1180 = vadd.f32 %v1068, %v832
  %v1181 = vadd.f32 %v1072, %v837
  %v1182 = vadd.f32 %v1072, %v842
  %v1183 = vadd.f32 %v1072, %v847
  %v1184 = vadd.f32 %v1072, %v852
  %v1185 = vadd.f32 %v1072, %v857
  %v1186 = vadd.f32 %v1072, %v862
  %v1187 = vadd.f32 %v1072, %v867
  %v1188 = vadd.f32 %v1072, %v872
  %v1189 = vadd.f32 %v1072, %v877
  %v1190 = vadd.f32 %v1072, %v882
  %v1191 = vadd.f32 %v1072, %v887
  %v1192 = vadd.f32 %v1072, %v892
  %v1193 = vadd.f32 %v1072, %v897
  %v1194 = vadd.f32 %v1072, %v902
  %v1195 = vadd.f32 %v1072, %v907
  %v1196 = vadd.f32 %v1072, %v912
  %v1197 = vadd.f32 %v1076, %v917
  %v1198 = vadd.f32 %v1076, %v922
  %v1199 = vadd.f32 %v1076, %v927
  %v1200 = vadd.f32 %v1076, %v932
  %v1201 = vadd.f32 %v1076, %v937
  %v1202 = vadd.f32 %v1076, %v942
  %v1203 = vadd.f32 %v1076, %v947
  %v1204 = vadd.f32 %v1076, %v952
  %v1205 = vadd.f32 %v1076, %v957
  %v1206 = vadd.f32 %v1076, %v962
  %v1207 = vadd.f32 %v1076, %v967
  %v1208 = vadd.f32 %v1076, %v972
  %v1209 = vadd.f32 %v1076, %v977
  %v1210 = vadd.f32 %v1076, %v982
  %v1211 = vadd.f32 %v1076, %v987
  %v1212 = vadd.f32 %v1076, %v992
  %v1213 = vtanh.pop %v1085
  %v1214 = vtanh.pop %v1086
  %v1215 = vtanh.pop %v1087
  %v1216 = vtanh.pop %v1088
  %v1217 = vtanh.pop %v1089
  %v1218 = vtanh.pop %v1090
  %v1219 = vtanh.pop %v1091
  %v1220 = vtanh.pop %v1092
  %v1221 = vtanh.pop %v1093
  %v1222 = vtanh.pop %v1094
  %v1223 = vtanh.pop %v1095
  %v1224 = vtanh.pop %v1096
  %v1225 = vtanh.pop %v1097
  %v1226 = vtanh.pop %v1098
  %v1227 = vtanh.pop %v1099
  %v1228 = vtanh.pop %v1100
  %v1229 = vtanh.pop %v1101
  %v1230 = vtanh.pop %v1102
  %v1231 = vtanh.pop %v1103
  %v1232 = vtanh.pop %v1104
  %v1233 = vtanh.pop %v1105
  %v1234 = vtanh.pop %v1106
  %v1235 = vtanh.pop %v1107
  %v1236 = vtanh.pop %v1108
  %v1237 = vtanh.pop %v1109
  %v1238 = vtanh.pop %v1110
  %v1239 = vtanh.pop %v1111
  %v1240 = vtanh.pop %v1112
  %v1241 = vtanh.pop %v1113
  %v1242 = vtanh.pop %v1114
  %v1243 = vtanh.pop %v1115
  %v1244 = vtanh.pop %v1116
  %v1245 = vtanh.pop %v1117
  %v1246 = vtanh.pop %v1118
  %v1247 = vtanh.pop %v1119
  %v1248 = vtanh.pop %v1120
  %v1249 = vtanh.pop %v1121
  %v1250 = vtanh.pop %v1122
  %v1251 = vtanh.pop %v1123
  %v1252 = vtanh.pop %v1124
  %v1253 = vtanh.pop %v1125
  %v1254 = vtanh.pop %v1126
  %v1255 = vtanh.pop %v1127
  %v1256 = vtanh.pop %v1128
  %v1257 = vtanh.pop %v1129
  %v1258 = vtanh.pop %v1130
  %v1259 = vtanh.pop %v1131
  %v1260 = vtanh.pop %v1132
  %v1261 = vtanh.pop %v1133
  %v1262 = vtanh.pop %v1134
  %v1263 = vtanh.pop %v1135
  %v1264 = vtanh.pop %v1136
  %v1265 = vtanh.pop %v1137
  %v1266 = vtanh.pop %v1138
  %v1267 = vtanh.pop %v1139
  %v1268 = vtanh.pop %v1140
  %v1269 = vtanh.pop %v1141
  %v1270 = vtanh.pop %v1142
  %v1271 = vtanh.pop %v1143
  %v1272 = vtanh.pop %v1144
  %v1273 = vtanh.pop %v1145
  %v1274 = vtanh.pop %v1146
  %v1275 = vtanh.pop %v1147
  %v1276 = vtanh.pop %v1148
  %v1277 = vtanh.pop %v1149
  %v1278 = vtanh.pop %v1150
  %v1279 = vtanh.pop %v1151
  %v1280 = vtanh.pop %v1152
  %v1281 = vtanh.pop %v1153
  %v1282 = vtanh.pop %v1154
  %v1283 = vtanh.pop %v1155
  %v1284 = vtanh.pop %v1156
  %v1285 = vtanh.pop %v1157
  %v1286 = vtanh.pop %v1158
  %v1287 = vtanh.pop %v1159
  %v1288 = vtanh.pop %v1160
  %v1289 = vtanh.pop %v1161
  %v1290 = vtanh.pop %v1162
  %v1291 = vtanh.pop %v1163
  %v1292 = vtanh.pop %v1164
  %v1293 = vtanh.pop %v1165
  %v1294 = vtanh.pop %v1166
  %v1295 = vtanh.pop %v1167
  %v1296 = vtanh.pop %v1168
  %v1297 = vtanh.pop %v1169
  %v1298 = vtanh.pop %v1170
  %v1299 = vtanh.pop %v1171
  %v1300 = vtanh.pop %v1172
  %v1301 = vtanh.pop %v1173
  %v1302 = vtanh.pop %v1174
  %v1303 = vtanh.pop %v1175
  %v1304 = vtanh.pop %v1176
  %v1305 = vtanh.pop %v1177
  %v1306 = vtanh.pop %v1178
  %v1307 = vtanh.pop %v1179
  %v1308 = vtanh.pop %v1180
  %v1309 = vtanh.pop %v1181
  %v1310 = vtanh.pop %v1182
  %v1311 = vtanh.pop %v1183
  %v1312 = vtanh.pop %v1184
  %v1313 = vtanh.pop %v1185
  %v1314 = vtanh.pop %v1186
  %v1315 = vtanh.pop %v1187
  %v1316 = vtanh.pop %v1188
  %v1317 = vtanh.pop %v1189
  %v1318 = vtanh.pop %v1190
  %v1319 = vtanh.pop %v1191
  %v1320 = vtanh.pop %v1192
  %v1321 = vtanh.pop %v1193
  %v1322 = vtanh.pop %v1194
  %v1323 = vtanh.pop %v1195
  %v1324 = vtanh.pop %v1196
  %v1325 = vtanh.pop %v1197
  %v1326 = vtanh.pop %v1198
  %v1327 = vtanh.pop %v1199
  %v1328 = vtanh.pop %v1200
  %v1329 = vtanh.pop %v1201
  %v1330 = vtanh.pop %v1202
  %v1331 = vtanh.pop %v1203
  %v1332 = vtanh.pop %v1204
  %v1333 = vtanh.pop %v1205
  %v1334 = vtanh.pop %v1206
  %v1335 = vtanh.pop %v1207
  %v1336 = vtanh.pop %v1208
  %v1337 = vtanh.pop %v1209
  %v1338 = vtanh.pop %v1210
  %v1339 = vtanh.pop %v1211
  %v1340 = vtanh.pop %v1212
  %v1341 = vld [vmem:[%s6] sm:$0x1]
  %v1343 = vlaneseq
  %v1344 = vshrl.u32 %v1343, 7
  %v1345 = vsub.s32 0, %v1344
  %v1346 = vrot.slane %v1341, %v1345
  %v1348 = vmul.f32 %v1213, %v1346
  %v1349 = vmul.f32 %v1214, %v1346
  %v1350 = vmul.f32 %v1215, %v1346
  %v1351 = vmul.f32 %v1216, %v1346
  %v1352 = vmul.f32 %v1217, %v1346
  %v1353 = vmul.f32 %v1218, %v1346
  %v1354 = vmul.f32 %v1219, %v1346
  %v1355 = vmul.f32 %v1220, %v1346
  %v1356 = vmul.f32 %v1221, %v1346
  %v1357 = vmul.f32 %v1222, %v1346
  %v1358 = vmul.f32 %v1223, %v1346
  %v1359 = vmul.f32 %v1224, %v1346
  %v1360 = vmul.f32 %v1225, %v1346
  %v1361 = vmul.f32 %v1226, %v1346
  %v1362 = vmul.f32 %v1227, %v1346
  %v1363 = vmul.f32 %v1228, %v1346
  %v1364 = vmul.f32 %v1229, %v1346
  %v1365 = vmul.f32 %v1230, %v1346
  %v1366 = vmul.f32 %v1231, %v1346
  %v1367 = vmul.f32 %v1232, %v1346
  %v1368 = vmul.f32 %v1233, %v1346
  %v1369 = vmul.f32 %v1234, %v1346
  %v1370 = vmul.f32 %v1235, %v1346
  %v1371 = vmul.f32 %v1236, %v1346
  %v1372 = vmul.f32 %v1237, %v1346
  %v1373 = vmul.f32 %v1238, %v1346
  %v1374 = vmul.f32 %v1239, %v1346
  %v1375 = vmul.f32 %v1240, %v1346
  %v1376 = vmul.f32 %v1241, %v1346
  %v1377 = vmul.f32 %v1242, %v1346
  %v1378 = vmul.f32 %v1243, %v1346
  %v1379 = vmul.f32 %v1244, %v1346
  %v1380 = vmul.f32 %v1245, %v1346
  %v1381 = vmul.f32 %v1246, %v1346
  %v1382 = vmul.f32 %v1247, %v1346
  %v1383 = vmul.f32 %v1248, %v1346
  %v1384 = vmul.f32 %v1249, %v1346
  %v1385 = vmul.f32 %v1250, %v1346
  %v1386 = vmul.f32 %v1251, %v1346
  %v1387 = vmul.f32 %v1252, %v1346
  %v1388 = vmul.f32 %v1253, %v1346
  %v1389 = vmul.f32 %v1254, %v1346
  %v1390 = vmul.f32 %v1255, %v1346
  %v1391 = vmul.f32 %v1256, %v1346
  %v1392 = vmul.f32 %v1257, %v1346
  %v1393 = vmul.f32 %v1258, %v1346
  %v1394 = vmul.f32 %v1259, %v1346
  %v1395 = vmul.f32 %v1260, %v1346
  %v1396 = vmul.f32 %v1261, %v1346
  %v1397 = vmul.f32 %v1262, %v1346
  %v1398 = vmul.f32 %v1263, %v1346
  %v1399 = vmul.f32 %v1264, %v1346
  %v1400 = vmul.f32 %v1265, %v1346
  %v1401 = vmul.f32 %v1266, %v1346
  %v1402 = vmul.f32 %v1267, %v1346
  %v1403 = vmul.f32 %v1268, %v1346
  %v1404 = vmul.f32 %v1269, %v1346
  %v1405 = vmul.f32 %v1270, %v1346
  %v1406 = vmul.f32 %v1271, %v1346
  %v1407 = vmul.f32 %v1272, %v1346
  %v1408 = vmul.f32 %v1273, %v1346
  %v1409 = vmul.f32 %v1274, %v1346
  %v1410 = vmul.f32 %v1275, %v1346
  %v1411 = vmul.f32 %v1276, %v1346
  %v1412 = vmul.f32 %v1277, %v1346
  %v1413 = vmul.f32 %v1278, %v1346
  %v1414 = vmul.f32 %v1279, %v1346
  %v1415 = vmul.f32 %v1280, %v1346
  %v1416 = vmul.f32 %v1281, %v1346
  %v1417 = vmul.f32 %v1282, %v1346
  %v1418 = vmul.f32 %v1283, %v1346
  %v1419 = vmul.f32 %v1284, %v1346
  %v1420 = vmul.f32 %v1285, %v1346
  %v1421 = vmul.f32 %v1286, %v1346
  %v1422 = vmul.f32 %v1287, %v1346
  %v1423 = vmul.f32 %v1288, %v1346
  %v1424 = vmul.f32 %v1289, %v1346
  %v1425 = vmul.f32 %v1290, %v1346
  %v1426 = vmul.f32 %v1291, %v1346
  %v1427 = vmul.f32 %v1292, %v1346
  %v1428 = vmul.f32 %v1293, %v1346
  %v1429 = vmul.f32 %v1294, %v1346
  %v1430 = vmul.f32 %v1295, %v1346
  %v1431 = vmul.f32 %v1296, %v1346
  %v1432 = vmul.f32 %v1297, %v1346
  %v1433 = vmul.f32 %v1298, %v1346
  %v1434 = vmul.f32 %v1299, %v1346
  %v1435 = vmul.f32 %v1300, %v1346
  %v1436 = vmul.f32 %v1301, %v1346
  %v1437 = vmul.f32 %v1302, %v1346
  %v1438 = vmul.f32 %v1303, %v1346
  %v1439 = vmul.f32 %v1304, %v1346
  %v1440 = vmul.f32 %v1305, %v1346
  %v1441 = vmul.f32 %v1306, %v1346
  %v1442 = vmul.f32 %v1307, %v1346
  %v1443 = vmul.f32 %v1308, %v1346
  %v1444 = vmul.f32 %v1309, %v1346
  %v1445 = vmul.f32 %v1310, %v1346
  %v1446 = vmul.f32 %v1311, %v1346
  %v1447 = vmul.f32 %v1312, %v1346
  %v1448 = vmul.f32 %v1313, %v1346
  %v1449 = vmul.f32 %v1314, %v1346
  %v1450 = vmul.f32 %v1315, %v1346
  %v1451 = vmul.f32 %v1316, %v1346
  %v1452 = vmul.f32 %v1317, %v1346
  %v1453 = vmul.f32 %v1318, %v1346
  %v1454 = vmul.f32 %v1319, %v1346
  %v1455 = vmul.f32 %v1320, %v1346
  %v1456 = vmul.f32 %v1321, %v1346
  %v1457 = vmul.f32 %v1322, %v1346
  %v1458 = vmul.f32 %v1323, %v1346
  %v1459 = vmul.f32 %v1324, %v1346
  %v1460 = vmul.f32 %v1325, %v1346
  %v1461 = vmul.f32 %v1326, %v1346
  %v1462 = vmul.f32 %v1327, %v1346
  %v1463 = vmul.f32 %v1328, %v1346
  %v1464 = vmul.f32 %v1329, %v1346
  %v1465 = vmul.f32 %v1330, %v1346
  %v1466 = vmul.f32 %v1331, %v1346
  %v1467 = vmul.f32 %v1332, %v1346
  %v1468 = vmul.f32 %v1333, %v1346
  %v1469 = vmul.f32 %v1334, %v1346
  %v1470 = vmul.f32 %v1335, %v1346
  %v1471 = vmul.f32 %v1336, %v1346
  %v1472 = vmul.f32 %v1337, %v1346
  %v1473 = vmul.f32 %v1338, %v1346
  %v1474 = vmul.f32 %v1339, %v1346
  %v1475 = vmul.f32 %v1340, %v1346
  %1476 = vadd.xlane.f32.xlu0 %v1348
  %v1477 = vpop.xlane.xlu0 %1476
  %1478 = vadd.xlane.f32.xlu0 %v1349
  %v1479 = vpop.xlane.xlu0 %1478
  %1480 = vadd.xlane.f32.xlu0 %v1350
  %v1481 = vpop.xlane.xlu0 %1480
  %1482 = vadd.xlane.f32.xlu0 %v1351
  %v1483 = vpop.xlane.xlu0 %1482
  %1484 = vadd.xlane.f32.xlu0 %v1352
  %v1485 = vpop.xlane.xlu0 %1484
  %1486 = vadd.xlane.f32.xlu0 %v1353
  %v1487 = vpop.xlane.xlu0 %1486
  %1488 = vadd.xlane.f32.xlu0 %v1354
  %v1489 = vpop.xlane.xlu0 %1488
  %1490 = vadd.xlane.f32.xlu0 %v1355
  %v1491 = vpop.xlane.xlu0 %1490
  %1492 = vadd.xlane.f32.xlu0 %v1356
  %v1493 = vpop.xlane.xlu0 %1492
  %1494 = vadd.xlane.f32.xlu0 %v1357
  %v1495 = vpop.xlane.xlu0 %1494
  %1496 = vadd.xlane.f32.xlu0 %v1358
  %v1497 = vpop.xlane.xlu0 %1496
  %1498 = vadd.xlane.f32.xlu0 %v1359
  %v1499 = vpop.xlane.xlu0 %1498
  %1500 = vadd.xlane.f32.xlu0 %v1360
  %v1501 = vpop.xlane.xlu0 %1500
  %1502 = vadd.xlane.f32.xlu0 %v1361
  %v1503 = vpop.xlane.xlu0 %1502
  %1504 = vadd.xlane.f32.xlu0 %v1362
  %v1505 = vpop.xlane.xlu0 %1504
  %1506 = vadd.xlane.f32.xlu0 %v1363
  %v1507 = vpop.xlane.xlu0 %1506
  %1508 = vadd.xlane.f32.xlu0 %v1364
  %v1509 = vpop.xlane.xlu0 %1508
  %1510 = vadd.xlane.f32.xlu0 %v1365
  %v1511 = vpop.xlane.xlu0 %1510
  %1512 = vadd.xlane.f32.xlu0 %v1366
  %v1513 = vpop.xlane.xlu0 %1512
  %1514 = vadd.xlane.f32.xlu0 %v1367
  %v1515 = vpop.xlane.xlu0 %1514
  %1516 = vadd.xlane.f32.xlu0 %v1368
  %v1517 = vpop.xlane.xlu0 %1516
  %1518 = vadd.xlane.f32.xlu0 %v1369
  %v1519 = vpop.xlane.xlu0 %1518
  %1520 = vadd.xlane.f32.xlu0 %v1370
  %v1521 = vpop.xlane.xlu0 %1520
  %1522 = vadd.xlane.f32.xlu0 %v1371
  %v1523 = vpop.xlane.xlu0 %1522
  %1524 = vadd.xlane.f32.xlu0 %v1372
  %v1525 = vpop.xlane.xlu0 %1524
  %1526 = vadd.xlane.f32.xlu0 %v1373
  %v1527 = vpop.xlane.xlu0 %1526
  %1528 = vadd.xlane.f32.xlu0 %v1374
  %v1529 = vpop.xlane.xlu0 %1528
  %1530 = vadd.xlane.f32.xlu0 %v1375
  %v1531 = vpop.xlane.xlu0 %1530
  %1532 = vadd.xlane.f32.xlu0 %v1376
  %v1533 = vpop.xlane.xlu0 %1532
  %1534 = vadd.xlane.f32.xlu0 %v1377
  %v1535 = vpop.xlane.xlu0 %1534
  %1536 = vadd.xlane.f32.xlu0 %v1378
  %v1537 = vpop.xlane.xlu0 %1536
  %1538 = vadd.xlane.f32.xlu0 %v1379
  %v1539 = vpop.xlane.xlu0 %1538
  %1540 = vadd.xlane.f32.xlu0 %v1380
  %v1541 = vpop.xlane.xlu0 %1540
  %1542 = vadd.xlane.f32.xlu0 %v1381
  %v1543 = vpop.xlane.xlu0 %1542
  %1544 = vadd.xlane.f32.xlu0 %v1382
  %v1545 = vpop.xlane.xlu0 %1544
  %1546 = vadd.xlane.f32.xlu0 %v1383
  %v1547 = vpop.xlane.xlu0 %1546
  %1548 = vadd.xlane.f32.xlu0 %v1384
  %v1549 = vpop.xlane.xlu0 %1548
  %1550 = vadd.xlane.f32.xlu0 %v1385
  %v1551 = vpop.xlane.xlu0 %1550
  %1552 = vadd.xlane.f32.xlu0 %v1386
  %v1553 = vpop.xlane.xlu0 %1552
  %1554 = vadd.xlane.f32.xlu0 %v1387
  %v1555 = vpop.xlane.xlu0 %1554
  %1556 = vadd.xlane.f32.xlu0 %v1388
  %v1557 = vpop.xlane.xlu0 %1556
  %1558 = vadd.xlane.f32.xlu0 %v1389
  %v1559 = vpop.xlane.xlu0 %1558
  %1560 = vadd.xlane.f32.xlu0 %v1390
  %v1561 = vpop.xlane.xlu0 %1560
  %1562 = vadd.xlane.f32.xlu0 %v1391
  %v1563 = vpop.xlane.xlu0 %1562
  %1564 = vadd.xlane.f32.xlu0 %v1392
  %v1565 = vpop.xlane.xlu0 %1564
  %1566 = vadd.xlane.f32.xlu0 %v1393
  %v1567 = vpop.xlane.xlu0 %1566
  %1568 = vadd.xlane.f32.xlu0 %v1394
  %v1569 = vpop.xlane.xlu0 %1568
  %1570 = vadd.xlane.f32.xlu0 %v1395
  %v1571 = vpop.xlane.xlu0 %1570
  %1572 = vadd.xlane.f32.xlu0 %v1396
  %v1573 = vpop.xlane.xlu0 %1572
  %1574 = vadd.xlane.f32.xlu0 %v1397
  %v1575 = vpop.xlane.xlu0 %1574
  %1576 = vadd.xlane.f32.xlu0 %v1398
  %v1577 = vpop.xlane.xlu0 %1576
  %1578 = vadd.xlane.f32.xlu0 %v1399
  %v1579 = vpop.xlane.xlu0 %1578
  %1580 = vadd.xlane.f32.xlu0 %v1400
  %v1581 = vpop.xlane.xlu0 %1580
  %1582 = vadd.xlane.f32.xlu0 %v1401
  %v1583 = vpop.xlane.xlu0 %1582
  %1584 = vadd.xlane.f32.xlu0 %v1402
  %v1585 = vpop.xlane.xlu0 %1584
  %1586 = vadd.xlane.f32.xlu0 %v1403
  %v1587 = vpop.xlane.xlu0 %1586
  %1588 = vadd.xlane.f32.xlu0 %v1404
  %v1589 = vpop.xlane.xlu0 %1588
  %1590 = vadd.xlane.f32.xlu0 %v1405
  %v1591 = vpop.xlane.xlu0 %1590
  %1592 = vadd.xlane.f32.xlu0 %v1406
  %v1593 = vpop.xlane.xlu0 %1592
  %1594 = vadd.xlane.f32.xlu0 %v1407
  %v1595 = vpop.xlane.xlu0 %1594
  %1596 = vadd.xlane.f32.xlu0 %v1408
  %v1597 = vpop.xlane.xlu0 %1596
  %1598 = vadd.xlane.f32.xlu0 %v1409
  %v1599 = vpop.xlane.xlu0 %1598
  %1600 = vadd.xlane.f32.xlu0 %v1410
  %v1601 = vpop.xlane.xlu0 %1600
  %1602 = vadd.xlane.f32.xlu0 %v1411
  %v1603 = vpop.xlane.xlu0 %1602
  %1604 = vadd.xlane.f32.xlu0 %v1412
  %v1605 = vpop.xlane.xlu0 %1604
  %1606 = vadd.xlane.f32.xlu0 %v1413
  %v1607 = vpop.xlane.xlu0 %1606
  %1608 = vadd.xlane.f32.xlu0 %v1414
  %v1609 = vpop.xlane.xlu0 %1608
  %1610 = vadd.xlane.f32.xlu0 %v1415
  %v1611 = vpop.xlane.xlu0 %1610
  %1612 = vadd.xlane.f32.xlu0 %v1416
  %v1613 = vpop.xlane.xlu0 %1612
  %1614 = vadd.xlane.f32.xlu0 %v1417
  %v1615 = vpop.xlane.xlu0 %1614
  %1616 = vadd.xlane.f32.xlu0 %v1418
  %v1617 = vpop.xlane.xlu0 %1616
  %1618 = vadd.xlane.f32.xlu0 %v1419
  %v1619 = vpop.xlane.xlu0 %1618
  %1620 = vadd.xlane.f32.xlu0 %v1420
  %v1621 = vpop.xlane.xlu0 %1620
  %1622 = vadd.xlane.f32.xlu0 %v1421
  %v1623 = vpop.xlane.xlu0 %1622
  %1624 = vadd.xlane.f32.xlu0 %v1422
  %v1625 = vpop.xlane.xlu0 %1624
  %1626 = vadd.xlane.f32.xlu0 %v1423
  %v1627 = vpop.xlane.xlu0 %1626
  %1628 = vadd.xlane.f32.xlu0 %v1424
  %v1629 = vpop.xlane.xlu0 %1628
  %1630 = vadd.xlane.f32.xlu0 %v1425
  %v1631 = vpop.xlane.xlu0 %1630
  %1632 = vadd.xlane.f32.xlu0 %v1426
  %v1633 = vpop.xlane.xlu0 %1632
  %1634 = vadd.xlane.f32.xlu0 %v1427
  %v1635 = vpop.xlane.xlu0 %1634
  %1636 = vadd.xlane.f32.xlu0 %v1428
  %v1637 = vpop.xlane.xlu0 %1636
  %1638 = vadd.xlane.f32.xlu0 %v1429
  %v1639 = vpop.xlane.xlu0 %1638
  %1640 = vadd.xlane.f32.xlu0 %v1430
  %v1641 = vpop.xlane.xlu0 %1640
  %1642 = vadd.xlane.f32.xlu0 %v1431
  %v1643 = vpop.xlane.xlu0 %1642
  %1644 = vadd.xlane.f32.xlu0 %v1432
  %v1645 = vpop.xlane.xlu0 %1644
  %1646 = vadd.xlane.f32.xlu0 %v1433
  %v1647 = vpop.xlane.xlu0 %1646
  %1648 = vadd.xlane.f32.xlu0 %v1434
  %v1649 = vpop.xlane.xlu0 %1648
  %1650 = vadd.xlane.f32.xlu0 %v1435
  %v1651 = vpop.xlane.xlu0 %1650
  %1652 = vadd.xlane.f32.xlu0 %v1436
  %v1653 = vpop.xlane.xlu0 %1652
  %1654 = vadd.xlane.f32.xlu0 %v1437
  %v1655 = vpop.xlane.xlu0 %1654
  %1656 = vadd.xlane.f32.xlu0 %v1438
  %v1657 = vpop.xlane.xlu0 %1656
  %1658 = vadd.xlane.f32.xlu0 %v1439
  %v1659 = vpop.xlane.xlu0 %1658
  %1660 = vadd.xlane.f32.xlu0 %v1440
  %v1661 = vpop.xlane.xlu0 %1660
  %1662 = vadd.xlane.f32.xlu0 %v1441
  %v1663 = vpop.xlane.xlu0 %1662
  %1664 = vadd.xlane.f32.xlu0 %v1442
  %v1665 = vpop.xlane.xlu0 %1664
  %1666 = vadd.xlane.f32.xlu0 %v1443
  %v1667 = vpop.xlane.xlu0 %1666
  %1668 = vadd.xlane.f32.xlu0 %v1444
  %v1669 = vpop.xlane.xlu0 %1668
  %1670 = vadd.xlane.f32.xlu0 %v1445
  %v1671 = vpop.xlane.xlu0 %1670
  %1672 = vadd.xlane.f32.xlu0 %v1446
  %v1673 = vpop.xlane.xlu0 %1672
  %1674 = vadd.xlane.f32.xlu0 %v1447
  %v1675 = vpop.xlane.xlu0 %1674
  %1676 = vadd.xlane.f32.xlu0 %v1448
  %v1677 = vpop.xlane.xlu0 %1676
  %1678 = vadd.xlane.f32.xlu0 %v1449
  %v1679 = vpop.xlane.xlu0 %1678
  %1680 = vadd.xlane.f32.xlu0 %v1450
  %v1681 = vpop.xlane.xlu0 %1680
  %1682 = vadd.xlane.f32.xlu0 %v1451
  %v1683 = vpop.xlane.xlu0 %1682
  %1684 = vadd.xlane.f32.xlu0 %v1452
  %v1685 = vpop.xlane.xlu0 %1684
  %1686 = vadd.xlane.f32.xlu0 %v1453
  %v1687 = vpop.xlane.xlu0 %1686
  %1688 = vadd.xlane.f32.xlu0 %v1454
  %v1689 = vpop.xlane.xlu0 %1688
  %1690 = vadd.xlane.f32.xlu0 %v1455
  %v1691 = vpop.xlane.xlu0 %1690
  %1692 = vadd.xlane.f32.xlu0 %v1456
  %v1693 = vpop.xlane.xlu0 %1692
  %1694 = vadd.xlane.f32.xlu0 %v1457
  %v1695 = vpop.xlane.xlu0 %1694
  %1696 = vadd.xlane.f32.xlu0 %v1458
  %v1697 = vpop.xlane.xlu0 %1696
  %1698 = vadd.xlane.f32.xlu0 %v1459
  %v1699 = vpop.xlane.xlu0 %1698
  %1700 = vadd.xlane.f32.xlu0 %v1460
  %v1701 = vpop.xlane.xlu0 %1700
  %1702 = vadd.xlane.f32.xlu0 %v1461
  %v1703 = vpop.xlane.xlu0 %1702
  %1704 = vadd.xlane.f32.xlu0 %v1462
  %v1705 = vpop.xlane.xlu0 %1704
  %1706 = vadd.xlane.f32.xlu0 %v1463
  %v1707 = vpop.xlane.xlu0 %1706
  %1708 = vadd.xlane.f32.xlu0 %v1464
  %v1709 = vpop.xlane.xlu0 %1708
  %1710 = vadd.xlane.f32.xlu0 %v1465
  %v1711 = vpop.xlane.xlu0 %1710
  %1712 = vadd.xlane.f32.xlu0 %v1466
  %v1713 = vpop.xlane.xlu0 %1712
  %1714 = vadd.xlane.f32.xlu0 %v1467
  %v1715 = vpop.xlane.xlu0 %1714
  %1716 = vadd.xlane.f32.xlu0 %v1468
  %v1717 = vpop.xlane.xlu0 %1716
  %1718 = vadd.xlane.f32.xlu0 %v1469
  %v1719 = vpop.xlane.xlu0 %1718
  %1720 = vadd.xlane.f32.xlu0 %v1470
  %v1721 = vpop.xlane.xlu0 %1720
  %1722 = vadd.xlane.f32.xlu0 %v1471
  %v1723 = vpop.xlane.xlu0 %1722
  %1724 = vadd.xlane.f32.xlu0 %v1472
  %v1725 = vpop.xlane.xlu0 %1724
  %1726 = vadd.xlane.f32.xlu0 %v1473
  %v1727 = vpop.xlane.xlu0 %1726
  %1728 = vadd.xlane.f32.xlu0 %v1474
  %v1729 = vpop.xlane.xlu0 %1728
  %1730 = vadd.xlane.f32.xlu0 %v1475
  %v1731 = vpop.xlane.xlu0 %1730
  %v1732 = vld [vmem:[%s2] sm:$0xff]
  %vm1733 = vcmp.ne.s32.totalorder %v1732, 0
  %v1862 = vlaneseq
  %v1863 = vand.u32 %v1862, 127
  %v1864 = vlaneseq
  %v1865 = vshrl.u32 %v1864, 7
  %v1866 = vsub.s32 %v1863, %v1865
  %v1867 = vrot.slane %v1477, %v1866
  %v1868 = vadd.s32 %v1863, 4294967288
  %v1869 = vlaneseq
  %v1870 = vshrl.u32 %v1869, 7
  %v1871 = vsub.s32 %v1868, %v1870
  %v1872 = vrot.slane %v1479, %v1871
  %vm1873 = vcmask 130112
  %v1874 = vsel %vm1873, %v1872, %v1867
  %v1875 = vadd.s32 %v1863, 4294967280
  %v1876 = vlaneseq
  %v1877 = vshrl.u32 %v1876, 7
  %v1878 = vsub.s32 %v1875, %v1877
  %v1879 = vrot.slane %v1481, %v1878
  %vm1880 = vcmask 195712
  %v1881 = vsel %vm1880, %v1879, %v1874
  %v1882 = vadd.s32 %v1863, 4294967272
  %v1883 = vlaneseq
  %v1884 = vshrl.u32 %v1883, 7
  %v1885 = vsub.s32 %v1882, %v1884
  %v1886 = vrot.slane %v1483, %v1885
  %vm1887 = vcmask 261312
  %v1888 = vsel %vm1887, %v1886, %v1881
  %v1889 = vadd.s32 %v1863, 4294967264
  %v1890 = vlaneseq
  %v1891 = vshrl.u32 %v1890, 7
  %v1892 = vsub.s32 %v1889, %v1891
  %v1893 = vrot.slane %v1485, %v1892
  %vm1894 = vcmask 326912
  %v1895 = vsel %vm1894, %v1893, %v1888
  %v1896 = vadd.s32 %v1863, 4294967256
  %v1897 = vlaneseq
  %v1898 = vshrl.u32 %v1897, 7
  %v1899 = vsub.s32 %v1896, %v1898
  %v1900 = vrot.slane %v1487, %v1899
  %vm1901 = vcmask 392512
  %v1902 = vsel %vm1901, %v1900, %v1895
  %v1903 = vadd.s32 %v1863, 4294967248
  %v1904 = vlaneseq
  %v1905 = vshrl.u32 %v1904, 7
  %v1906 = vsub.s32 %v1903, %v1905
  %v1907 = vrot.slane %v1489, %v1906
  %vm1908 = vcmask 458112
  %v1909 = vsel %vm1908, %v1907, %v1902
  %v1910 = vadd.s32 %v1863, 4294967240
  %v1911 = vlaneseq
  %v1912 = vshrl.u32 %v1911, 7
  %v1913 = vsub.s32 %v1910, %v1912
  %v1914 = vrot.slane %v1491, %v1913
  %vm1915 = vcmask 523712
  %v1916 = vsel %vm1915, %v1914, %v1909
  %v1917 = vadd.s32 %v1863, 4294967232
  %v1918 = vlaneseq
  %v1919 = vshrl.u32 %v1918, 7
  %v1920 = vsub.s32 %v1917, %v1919
  %v1921 = vrot.slane %v1493, %v1920
  %vm1922 = vcmask 589312
  %v1923 = vsel %vm1922, %v1921, %v1916
  %v1924 = vadd.s32 %v1863, 4294967224
  %v1925 = vlaneseq
  %v1926 = vshrl.u32 %v1925, 7
  %v1927 = vsub.s32 %v1924, %v1926
  %v1928 = vrot.slane %v1495, %v1927
  %vm1929 = vcmask 654912
  %v1930 = vsel %vm1929, %v1928, %v1923
  %v1931 = vadd.s32 %v1863, 4294967216
  %v1932 = vlaneseq
  %v1933 = vshrl.u32 %v1932, 7
  %v1934 = vsub.s32 %v1931, %v1933
  %v1935 = vrot.slane %v1497, %v1934
  %vm1936 = vcmask 720512
  %v1937 = vsel %vm1936, %v1935, %v1930
  %v1938 = vadd.s32 %v1863, 4294967208
  %v1939 = vlaneseq
  %v1940 = vshrl.u32 %v1939, 7
  %v1941 = vsub.s32 %v1938, %v1940
  %v1942 = vrot.slane %v1499, %v1941
  %vm1943 = vcmask 786112
  %v1944 = vsel %vm1943, %v1942, %v1937
  %v1945 = vadd.s32 %v1863, 4294967200
  %v1946 = vlaneseq
  %v1947 = vshrl.u32 %v1946, 7
  %v1948 = vsub.s32 %v1945, %v1947
  %v1949 = vrot.slane %v1501, %v1948
  %vm1950 = vcmask 851712
  %v1951 = vsel %vm1950, %v1949, %v1944
  %v1952 = vadd.s32 %v1863, 4294967192
  %v1953 = vlaneseq
  %v1954 = vshrl.u32 %v1953, 7
  %v1955 = vsub.s32 %v1952, %v1954
  %v1956 = vrot.slane %v1503, %v1955
  %vm1957 = vcmask 917312
  %v1958 = vsel %vm1957, %v1956, %v1951
  %v1959 = vadd.s32 %v1863, 4294967184
  %v1960 = vlaneseq
  %v1961 = vshrl.u32 %v1960, 7
  %v1962 = vsub.s32 %v1959, %v1961
  %v1963 = vrot.slane %v1505, %v1962
  %vm1964 = vcmask 982912
  %v1965 = vsel %vm1964, %v1963, %v1958
  %v1966 = vadd.s32 %v1863, 4294967176
  %v1967 = vlaneseq
  %v1968 = vshrl.u32 %v1967, 7
  %v1969 = vsub.s32 %v1966, %v1968
  %v1970 = vrot.slane %v1507, %v1969
  %vm1971 = vcmask 1048512
  %v1972 = vsel %vm1971, %v1970, %v1965
  %v1973 = vlaneseq
  %v1974 = vshrl.u32 %v1973, 7
  %v1975 = vsub.s32 %v1863, %v1974
  %v1976 = vrot.slane %v1509, %v1975
  %v1977 = vlaneseq
  %v1978 = vshrl.u32 %v1977, 7
  %v1979 = vsub.s32 %v1868, %v1978
  %v1980 = vrot.slane %v1511, %v1979
  %v1981 = vsel %vm1873, %v1980, %v1976
  %v1982 = vlaneseq
  %v1983 = vshrl.u32 %v1982, 7
  %v1984 = vsub.s32 %v1875, %v1983
  %v1985 = vrot.slane %v1513, %v1984
  %v1986 = vsel %vm1880, %v1985, %v1981
  %v1987 = vlaneseq
  %v1988 = vshrl.u32 %v1987, 7
  %v1989 = vsub.s32 %v1882, %v1988
  %v1990 = vrot.slane %v1515, %v1989
  %v1991 = vsel %vm1887, %v1990, %v1986
  %v1992 = vlaneseq
  %v1993 = vshrl.u32 %v1992, 7
  %v1994 = vsub.s32 %v1889, %v1993
  %v1995 = vrot.slane %v1517, %v1994
  %v1996 = vsel %vm1894, %v1995, %v1991
  %v1997 = vlaneseq
  %v1998 = vshrl.u32 %v1997, 7
  %v1999 = vsub.s32 %v1896, %v1998
  %v2000 = vrot.slane %v1519, %v1999
  %v2001 = vsel %vm1901, %v2000, %v1996
  %v2002 = vlaneseq
  %v2003 = vshrl.u32 %v2002, 7
  %v2004 = vsub.s32 %v1903, %v2003
  %v2005 = vrot.slane %v1521, %v2004
  %v2006 = vsel %vm1908, %v2005, %v2001
  %v2007 = vlaneseq
  %v2008 = vshrl.u32 %v2007, 7
  %v2009 = vsub.s32 %v1910, %v2008
  %v2010 = vrot.slane %v1523, %v2009
  %v2011 = vsel %vm1915, %v2010, %v2006
  %v2012 = vlaneseq
  %v2013 = vshrl.u32 %v2012, 7
  %v2014 = vsub.s32 %v1917, %v2013
  %v2015 = vrot.slane %v1525, %v2014
  %v2016 = vsel %vm1922, %v2015, %v2011
  %v2017 = vlaneseq
  %v2018 = vshrl.u32 %v2017, 7
  %v2019 = vsub.s32 %v1924, %v2018
  %v2020 = vrot.slane %v1527, %v2019
  %v2021 = vsel %vm1929, %v2020, %v2016
  %v2022 = vlaneseq
  %v2023 = vshrl.u32 %v2022, 7
  %v2024 = vsub.s32 %v1931, %v2023
  %v2025 = vrot.slane %v1529, %v2024
  %v2026 = vsel %vm1936, %v2025, %v2021
  %v2027 = vlaneseq
  %v2028 = vshrl.u32 %v2027, 7
  %v2029 = vsub.s32 %v1938, %v2028
  %v2030 = vrot.slane %v1531, %v2029
  %v2031 = vsel %vm1943, %v2030, %v2026
  %v2032 = vlaneseq
  %v2033 = vshrl.u32 %v2032, 7
  %v2034 = vsub.s32 %v1945, %v2033
  %v2035 = vrot.slane %v1533, %v2034
  %v2036 = vsel %vm1950, %v2035, %v2031
  %v2037 = vlaneseq
  %v2038 = vshrl.u32 %v2037, 7
  %v2039 = vsub.s32 %v1952, %v2038
  %v2040 = vrot.slane %v1535, %v2039
  %v2041 = vsel %vm1957, %v2040, %v2036
  %v2042 = vlaneseq
  %v2043 = vshrl.u32 %v2042, 7
  %v2044 = vsub.s32 %v1959, %v2043
  %v2045 = vrot.slane %v1537, %v2044
  %v2046 = vsel %vm1964, %v2045, %v2041
  %v2047 = vlaneseq
  %v2048 = vshrl.u32 %v2047, 7
  %v2049 = vsub.s32 %v1966, %v2048
  %v2050 = vrot.slane %v1539, %v2049
  %v2051 = vsel %vm1971, %v2050, %v2046
  %v2052 = vlaneseq
  %v2053 = vshrl.u32 %v2052, 7
  %v2054 = vsub.s32 %v1863, %v2053
  %v2055 = vrot.slane %v1541, %v2054
  %v2056 = vlaneseq
  %v2057 = vshrl.u32 %v2056, 7
  %v2058 = vsub.s32 %v1868, %v2057
  %v2059 = vrot.slane %v1543, %v2058
  %v2060 = vsel %vm1873, %v2059, %v2055
  %v2061 = vlaneseq
  %v2062 = vshrl.u32 %v2061, 7
  %v2063 = vsub.s32 %v1875, %v2062
  %v2064 = vrot.slane %v1545, %v2063
  %v2065 = vsel %vm1880, %v2064, %v2060
  %v2066 = vlaneseq
  %v2067 = vshrl.u32 %v2066, 7
  %v2068 = vsub.s32 %v1882, %v2067
  %v2069 = vrot.slane %v1547, %v2068
  %v2070 = vsel %vm1887, %v2069, %v2065
  %v2071 = vlaneseq
  %v2072 = vshrl.u32 %v2071, 7
  %v2073 = vsub.s32 %v1889, %v2072
  %v2074 = vrot.slane %v1549, %v2073
  %v2075 = vsel %vm1894, %v2074, %v2070
  %v2076 = vlaneseq
  %v2077 = vshrl.u32 %v2076, 7
  %v2078 = vsub.s32 %v1896, %v2077
  %v2079 = vrot.slane %v1551, %v2078
  %v2080 = vsel %vm1901, %v2079, %v2075
  %v2081 = vlaneseq
  %v2082 = vshrl.u32 %v2081, 7
  %v2083 = vsub.s32 %v1903, %v2082
  %v2084 = vrot.slane %v1553, %v2083
  %v2085 = vsel %vm1908, %v2084, %v2080
  %v2086 = vlaneseq
  %v2087 = vshrl.u32 %v2086, 7
  %v2088 = vsub.s32 %v1910, %v2087
  %v2089 = vrot.slane %v1555, %v2088
  %v2090 = vsel %vm1915, %v2089, %v2085
  %v2091 = vlaneseq
  %v2092 = vshrl.u32 %v2091, 7
  %v2093 = vsub.s32 %v1917, %v2092
  %v2094 = vrot.slane %v1557, %v2093
  %v2095 = vsel %vm1922, %v2094, %v2090
  %v2096 = vlaneseq
  %v2097 = vshrl.u32 %v2096, 7
  %v2098 = vsub.s32 %v1924, %v2097
  %v2099 = vrot.slane %v1559, %v2098
  %v2100 = vsel %vm1929, %v2099, %v2095
  %v2101 = vlaneseq
  %v2102 = vshrl.u32 %v2101, 7
  %v2103 = vsub.s32 %v1931, %v2102
  %v2104 = vrot.slane %v1561, %v2103
  %v2105 = vsel %vm1936, %v2104, %v2100
  %v2106 = vlaneseq
  %v2107 = vshrl.u32 %v2106, 7
  %v2108 = vsub.s32 %v1938, %v2107
  %v2109 = vrot.slane %v1563, %v2108
  %v2110 = vsel %vm1943, %v2109, %v2105
  %v2111 = vlaneseq
  %v2112 = vshrl.u32 %v2111, 7
  %v2113 = vsub.s32 %v1945, %v2112
  %v2114 = vrot.slane %v1565, %v2113
  %v2115 = vsel %vm1950, %v2114, %v2110
  %v2116 = vlaneseq
  %v2117 = vshrl.u32 %v2116, 7
  %v2118 = vsub.s32 %v1952, %v2117
  %v2119 = vrot.slane %v1567, %v2118
  %v2120 = vsel %vm1957, %v2119, %v2115
  %v2121 = vlaneseq
  %v2122 = vshrl.u32 %v2121, 7
  %v2123 = vsub.s32 %v1959, %v2122
  %v2124 = vrot.slane %v1569, %v2123
  %v2125 = vsel %vm1964, %v2124, %v2120
  %v2126 = vlaneseq
  %v2127 = vshrl.u32 %v2126, 7
  %v2128 = vsub.s32 %v1966, %v2127
  %v2129 = vrot.slane %v1571, %v2128
  %v2130 = vsel %vm1971, %v2129, %v2125
  %v2131 = vlaneseq
  %v2132 = vshrl.u32 %v2131, 7
  %v2133 = vsub.s32 %v1863, %v2132
  %v2134 = vrot.slane %v1573, %v2133
  %v2135 = vlaneseq
  %v2136 = vshrl.u32 %v2135, 7
  %v2137 = vsub.s32 %v1868, %v2136
  %v2138 = vrot.slane %v1575, %v2137
  %v2139 = vsel %vm1873, %v2138, %v2134
  %v2140 = vlaneseq
  %v2141 = vshrl.u32 %v2140, 7
  %v2142 = vsub.s32 %v1875, %v2141
  %v2143 = vrot.slane %v1577, %v2142
  %v2144 = vsel %vm1880, %v2143, %v2139
  %v2145 = vlaneseq
  %v2146 = vshrl.u32 %v2145, 7
  %v2147 = vsub.s32 %v1882, %v2146
  %v2148 = vrot.slane %v1579, %v2147
  %v2149 = vsel %vm1887, %v2148, %v2144
  %v2150 = vlaneseq
  %v2151 = vshrl.u32 %v2150, 7
  %v2152 = vsub.s32 %v1889, %v2151
  %v2153 = vrot.slane %v1581, %v2152
  %v2154 = vsel %vm1894, %v2153, %v2149
  %v2155 = vlaneseq
  %v2156 = vshrl.u32 %v2155, 7
  %v2157 = vsub.s32 %v1896, %v2156
  %v2158 = vrot.slane %v1583, %v2157
  %v2159 = vsel %vm1901, %v2158, %v2154
  %v2160 = vlaneseq
  %v2161 = vshrl.u32 %v2160, 7
  %v2162 = vsub.s32 %v1903, %v2161
  %v2163 = vrot.slane %v1585, %v2162
  %v2164 = vsel %vm1908, %v2163, %v2159
  %v2165 = vlaneseq
  %v2166 = vshrl.u32 %v2165, 7
  %v2167 = vsub.s32 %v1910, %v2166
  %v2168 = vrot.slane %v1587, %v2167
  %v2169 = vsel %vm1915, %v2168, %v2164
  %v2170 = vlaneseq
  %v2171 = vshrl.u32 %v2170, 7
  %v2172 = vsub.s32 %v1917, %v2171
  %v2173 = vrot.slane %v1589, %v2172
  %v2174 = vsel %vm1922, %v2173, %v2169
  %v2175 = vlaneseq
  %v2176 = vshrl.u32 %v2175, 7
  %v2177 = vsub.s32 %v1924, %v2176
  %v2178 = vrot.slane %v1591, %v2177
  %v2179 = vsel %vm1929, %v2178, %v2174
  %v2180 = vlaneseq
  %v2181 = vshrl.u32 %v2180, 7
  %v2182 = vsub.s32 %v1931, %v2181
  %v2183 = vrot.slane %v1593, %v2182
  %v2184 = vsel %vm1936, %v2183, %v2179
  %v2185 = vlaneseq
  %v2186 = vshrl.u32 %v2185, 7
  %v2187 = vsub.s32 %v1938, %v2186
  %v2188 = vrot.slane %v1595, %v2187
  %v2189 = vsel %vm1943, %v2188, %v2184
  %v2190 = vlaneseq
  %v2191 = vshrl.u32 %v2190, 7
  %v2192 = vsub.s32 %v1945, %v2191
  %v2193 = vrot.slane %v1597, %v2192
  %v2194 = vsel %vm1950, %v2193, %v2189
  %v2195 = vlaneseq
  %v2196 = vshrl.u32 %v2195, 7
  %v2197 = vsub.s32 %v1952, %v2196
  %v2198 = vrot.slane %v1599, %v2197
  %v2199 = vsel %vm1957, %v2198, %v2194
  %v2200 = vlaneseq
  %v2201 = vshrl.u32 %v2200, 7
  %v2202 = vsub.s32 %v1959, %v2201
  %v2203 = vrot.slane %v1601, %v2202
  %v2204 = vsel %vm1964, %v2203, %v2199
  %v2205 = vlaneseq
  %v2206 = vshrl.u32 %v2205, 7
  %v2207 = vsub.s32 %v1966, %v2206
  %v2208 = vrot.slane %v1603, %v2207
  %v2209 = vsel %vm1971, %v2208, %v2204
  %v2210 = vlaneseq
  %v2211 = vshrl.u32 %v2210, 7
  %v2212 = vsub.s32 %v1863, %v2211
  %v2213 = vrot.slane %v1605, %v2212
  %v2214 = vlaneseq
  %v2215 = vshrl.u32 %v2214, 7
  %v2216 = vsub.s32 %v1868, %v2215
  %v2217 = vrot.slane %v1607, %v2216
  %v2218 = vsel %vm1873, %v2217, %v2213
  %v2219 = vlaneseq
  %v2220 = vshrl.u32 %v2219, 7
  %v2221 = vsub.s32 %v1875, %v2220
  %v2222 = vrot.slane %v1609, %v2221
  %v2223 = vsel %vm1880, %v2222, %v2218
  %v2224 = vlaneseq
  %v2225 = vshrl.u32 %v2224, 7
  %v2226 = vsub.s32 %v1882, %v2225
  %v2227 = vrot.slane %v1611, %v2226
  %v2228 = vsel %vm1887, %v2227, %v2223
  %v2229 = vlaneseq
  %v2230 = vshrl.u32 %v2229, 7
  %v2231 = vsub.s32 %v1889, %v2230
  %v2232 = vrot.slane %v1613, %v2231
  %v2233 = vsel %vm1894, %v2232, %v2228
  %v2234 = vlaneseq
  %v2235 = vshrl.u32 %v2234, 7
  %v2236 = vsub.s32 %v1896, %v2235
  %v2237 = vrot.slane %v1615, %v2236
  %v2238 = vsel %vm1901, %v2237, %v2233
  %v2239 = vlaneseq
  %v2240 = vshrl.u32 %v2239, 7
  %v2241 = vsub.s32 %v1903, %v2240
  %v2242 = vrot.slane %v1617, %v2241
  %v2243 = vsel %vm1908, %v2242, %v2238
  %v2244 = vlaneseq
  %v2245 = vshrl.u32 %v2244, 7
  %v2246 = vsub.s32 %v1910, %v2245
  %v2247 = vrot.slane %v1619, %v2246
  %v2248 = vsel %vm1915, %v2247, %v2243
  %v2249 = vlaneseq
  %v2250 = vshrl.u32 %v2249, 7
  %v2251 = vsub.s32 %v1917, %v2250
  %v2252 = vrot.slane %v1621, %v2251
  %v2253 = vsel %vm1922, %v2252, %v2248
  %v2254 = vlaneseq
  %v2255 = vshrl.u32 %v2254, 7
  %v2256 = vsub.s32 %v1924, %v2255
  %v2257 = vrot.slane %v1623, %v2256
  %v2258 = vsel %vm1929, %v2257, %v2253
  %v2259 = vlaneseq
  %v2260 = vshrl.u32 %v2259, 7
  %v2261 = vsub.s32 %v1931, %v2260
  %v2262 = vrot.slane %v1625, %v2261
  %v2263 = vsel %vm1936, %v2262, %v2258
  %v2264 = vlaneseq
  %v2265 = vshrl.u32 %v2264, 7
  %v2266 = vsub.s32 %v1938, %v2265
  %v2267 = vrot.slane %v1627, %v2266
  %v2268 = vsel %vm1943, %v2267, %v2263
  %v2269 = vlaneseq
  %v2270 = vshrl.u32 %v2269, 7
  %v2271 = vsub.s32 %v1945, %v2270
  %v2272 = vrot.slane %v1629, %v2271
  %v2273 = vsel %vm1950, %v2272, %v2268
  %v2274 = vlaneseq
  %v2275 = vshrl.u32 %v2274, 7
  %v2276 = vsub.s32 %v1952, %v2275
  %v2277 = vrot.slane %v1631, %v2276
  %v2278 = vsel %vm1957, %v2277, %v2273
  %v2279 = vlaneseq
  %v2280 = vshrl.u32 %v2279, 7
  %v2281 = vsub.s32 %v1959, %v2280
  %v2282 = vrot.slane %v1633, %v2281
  %v2283 = vsel %vm1964, %v2282, %v2278
  %v2284 = vlaneseq
  %v2285 = vshrl.u32 %v2284, 7
  %v2286 = vsub.s32 %v1966, %v2285
  %v2287 = vrot.slane %v1635, %v2286
  %v2288 = vsel %vm1971, %v2287, %v2283
  %v2289 = vlaneseq
  %v2290 = vshrl.u32 %v2289, 7
  %v2291 = vsub.s32 %v1863, %v2290
  %v2292 = vrot.slane %v1637, %v2291
  %v2293 = vlaneseq
  %v2294 = vshrl.u32 %v2293, 7
  %v2295 = vsub.s32 %v1868, %v2294
  %v2296 = vrot.slane %v1639, %v2295
  %v2297 = vsel %vm1873, %v2296, %v2292
  %v2298 = vlaneseq
  %v2299 = vshrl.u32 %v2298, 7
  %v2300 = vsub.s32 %v1875, %v2299
  %v2301 = vrot.slane %v1641, %v2300
  %v2302 = vsel %vm1880, %v2301, %v2297
  %v2303 = vlaneseq
  %v2304 = vshrl.u32 %v2303, 7
  %v2305 = vsub.s32 %v1882, %v2304
  %v2306 = vrot.slane %v1643, %v2305
  %v2307 = vsel %vm1887, %v2306, %v2302
  %v2308 = vlaneseq
  %v2309 = vshrl.u32 %v2308, 7
  %v2310 = vsub.s32 %v1889, %v2309
  %v2311 = vrot.slane %v1645, %v2310
  %v2312 = vsel %vm1894, %v2311, %v2307
  %v2313 = vlaneseq
  %v2314 = vshrl.u32 %v2313, 7
  %v2315 = vsub.s32 %v1896, %v2314
  %v2316 = vrot.slane %v1647, %v2315
  %v2317 = vsel %vm1901, %v2316, %v2312
  %v2318 = vlaneseq
  %v2319 = vshrl.u32 %v2318, 7
  %v2320 = vsub.s32 %v1903, %v2319
  %v2321 = vrot.slane %v1649, %v2320
  %v2322 = vsel %vm1908, %v2321, %v2317
  %v2323 = vlaneseq
  %v2324 = vshrl.u32 %v2323, 7
  %v2325 = vsub.s32 %v1910, %v2324
  %v2326 = vrot.slane %v1651, %v2325
  %v2327 = vsel %vm1915, %v2326, %v2322
  %v2328 = vlaneseq
  %v2329 = vshrl.u32 %v2328, 7
  %v2330 = vsub.s32 %v1917, %v2329
  %v2331 = vrot.slane %v1653, %v2330
  %v2332 = vsel %vm1922, %v2331, %v2327
  %v2333 = vlaneseq
  %v2334 = vshrl.u32 %v2333, 7
  %v2335 = vsub.s32 %v1924, %v2334
  %v2336 = vrot.slane %v1655, %v2335
  %v2337 = vsel %vm1929, %v2336, %v2332
  %v2338 = vlaneseq
  %v2339 = vshrl.u32 %v2338, 7
  %v2340 = vsub.s32 %v1931, %v2339
  %v2341 = vrot.slane %v1657, %v2340
  %v2342 = vsel %vm1936, %v2341, %v2337
  %v2343 = vlaneseq
  %v2344 = vshrl.u32 %v2343, 7
  %v2345 = vsub.s32 %v1938, %v2344
  %v2346 = vrot.slane %v1659, %v2345
  %v2347 = vsel %vm1943, %v2346, %v2342
  %v2348 = vlaneseq
  %v2349 = vshrl.u32 %v2348, 7
  %v2350 = vsub.s32 %v1945, %v2349
  %v2351 = vrot.slane %v1661, %v2350
  %v2352 = vsel %vm1950, %v2351, %v2347
  %v2353 = vlaneseq
  %v2354 = vshrl.u32 %v2353, 7
  %v2355 = vsub.s32 %v1952, %v2354
  %v2356 = vrot.slane %v1663, %v2355
  %v2357 = vsel %vm1957, %v2356, %v2352
  %v2358 = vlaneseq
  %v2359 = vshrl.u32 %v2358, 7
  %v2360 = vsub.s32 %v1959, %v2359
  %v2361 = vrot.slane %v1665, %v2360
  %v2362 = vsel %vm1964, %v2361, %v2357
  %v2363 = vlaneseq
  %v2364 = vshrl.u32 %v2363, 7
  %v2365 = vsub.s32 %v1966, %v2364
  %v2366 = vrot.slane %v1667, %v2365
  %v2367 = vsel %vm1971, %v2366, %v2362
  %v2368 = vlaneseq
  %v2369 = vshrl.u32 %v2368, 7
  %v2370 = vsub.s32 %v1863, %v2369
  %v2371 = vrot.slane %v1669, %v2370
  %v2372 = vlaneseq
  %v2373 = vshrl.u32 %v2372, 7
  %v2374 = vsub.s32 %v1868, %v2373
  %v2375 = vrot.slane %v1671, %v2374
  %v2376 = vsel %vm1873, %v2375, %v2371
  %v2377 = vlaneseq
  %v2378 = vshrl.u32 %v2377, 7
  %v2379 = vsub.s32 %v1875, %v2378
  %v2380 = vrot.slane %v1673, %v2379
  %v2381 = vsel %vm1880, %v2380, %v2376
  %v2382 = vlaneseq
  %v2383 = vshrl.u32 %v2382, 7
  %v2384 = vsub.s32 %v1882, %v2383
  %v2385 = vrot.slane %v1675, %v2384
  %v2386 = vsel %vm1887, %v2385, %v2381
  %v2387 = vlaneseq
  %v2388 = vshrl.u32 %v2387, 7
  %v2389 = vsub.s32 %v1889, %v2388
  %v2390 = vrot.slane %v1677, %v2389
  %v2391 = vsel %vm1894, %v2390, %v2386
  %v2392 = vlaneseq
  %v2393 = vshrl.u32 %v2392, 7
  %v2394 = vsub.s32 %v1896, %v2393
  %v2395 = vrot.slane %v1679, %v2394
  %v2396 = vsel %vm1901, %v2395, %v2391
  %v2397 = vlaneseq
  %v2398 = vshrl.u32 %v2397, 7
  %v2399 = vsub.s32 %v1903, %v2398
  %v2400 = vrot.slane %v1681, %v2399
  %v2401 = vsel %vm1908, %v2400, %v2396
  %v2402 = vlaneseq
  %v2403 = vshrl.u32 %v2402, 7
  %v2404 = vsub.s32 %v1910, %v2403
  %v2405 = vrot.slane %v1683, %v2404
  %v2406 = vsel %vm1915, %v2405, %v2401
  %v2407 = vlaneseq
  %v2408 = vshrl.u32 %v2407, 7
  %v2409 = vsub.s32 %v1917, %v2408
  %v2410 = vrot.slane %v1685, %v2409
  %v2411 = vsel %vm1922, %v2410, %v2406
  %v2412 = vlaneseq
  %v2413 = vshrl.u32 %v2412, 7
  %v2414 = vsub.s32 %v1924, %v2413
  %v2415 = vrot.slane %v1687, %v2414
  %v2416 = vsel %vm1929, %v2415, %v2411
  %v2417 = vlaneseq
  %v2418 = vshrl.u32 %v2417, 7
  %v2419 = vsub.s32 %v1931, %v2418
  %v2420 = vrot.slane %v1689, %v2419
  %v2421 = vsel %vm1936, %v2420, %v2416
  %v2422 = vlaneseq
  %v2423 = vshrl.u32 %v2422, 7
  %v2424 = vsub.s32 %v1938, %v2423
  %v2425 = vrot.slane %v1691, %v2424
  %v2426 = vsel %vm1943, %v2425, %v2421
  %v2427 = vlaneseq
  %v2428 = vshrl.u32 %v2427, 7
  %v2429 = vsub.s32 %v1945, %v2428
  %v2430 = vrot.slane %v1693, %v2429
  %v2431 = vsel %vm1950, %v2430, %v2426
  %v2432 = vlaneseq
  %v2433 = vshrl.u32 %v2432, 7
  %v2434 = vsub.s32 %v1952, %v2433
  %v2435 = vrot.slane %v1695, %v2434
  %v2436 = vsel %vm1957, %v2435, %v2431
  %v2437 = vlaneseq
  %v2438 = vshrl.u32 %v2437, 7
  %v2439 = vsub.s32 %v1959, %v2438
  %v2440 = vrot.slane %v1697, %v2439
  %v2441 = vsel %vm1964, %v2440, %v2436
  %v2442 = vlaneseq
  %v2443 = vshrl.u32 %v2442, 7
  %v2444 = vsub.s32 %v1966, %v2443
  %v2445 = vrot.slane %v1699, %v2444
  %v2446 = vsel %vm1971, %v2445, %v2441
  %v2447 = vlaneseq
  %v2448 = vshrl.u32 %v2447, 7
  %v2449 = vsub.s32 %v1863, %v2448
  %v2450 = vrot.slane %v1701, %v2449
  %v2451 = vlaneseq
  %v2452 = vshrl.u32 %v2451, 7
  %v2453 = vsub.s32 %v1868, %v2452
  %v2454 = vrot.slane %v1703, %v2453
  %v2455 = vsel %vm1873, %v2454, %v2450
  %v2456 = vlaneseq
  %v2457 = vshrl.u32 %v2456, 7
  %v2458 = vsub.s32 %v1875, %v2457
  %v2459 = vrot.slane %v1705, %v2458
  %v2460 = vsel %vm1880, %v2459, %v2455
  %v2461 = vlaneseq
  %v2462 = vshrl.u32 %v2461, 7
  %v2463 = vsub.s32 %v1882, %v2462
  %v2464 = vrot.slane %v1707, %v2463
  %v2465 = vsel %vm1887, %v2464, %v2460
  %v2466 = vlaneseq
  %v2467 = vshrl.u32 %v2466, 7
  %v2468 = vsub.s32 %v1889, %v2467
  %v2469 = vrot.slane %v1709, %v2468
  %v2470 = vsel %vm1894, %v2469, %v2465
  %v2471 = vlaneseq
  %v2472 = vshrl.u32 %v2471, 7
  %v2473 = vsub.s32 %v1896, %v2472
  %v2474 = vrot.slane %v1711, %v2473
  %v2475 = vsel %vm1901, %v2474, %v2470
  %v2476 = vlaneseq
  %v2477 = vshrl.u32 %v2476, 7
  %v2478 = vsub.s32 %v1903, %v2477
  %v2479 = vrot.slane %v1713, %v2478
  %v2480 = vsel %vm1908, %v2479, %v2475
  %v2481 = vlaneseq
  %v2482 = vshrl.u32 %v2481, 7
  %v2483 = vsub.s32 %v1910, %v2482
  %v2484 = vrot.slane %v1715, %v2483
  %v2485 = vsel %vm1915, %v2484, %v2480
  %v2486 = vlaneseq
  %v2487 = vshrl.u32 %v2486, 7
  %v2488 = vsub.s32 %v1917, %v2487
  %v2489 = vrot.slane %v1717, %v2488
  %v2490 = vsel %vm1922, %v2489, %v2485
  %v2491 = vlaneseq
  %v2492 = vshrl.u32 %v2491, 7
  %v2493 = vsub.s32 %v1924, %v2492
  %v2494 = vrot.slane %v1719, %v2493
  %v2495 = vsel %vm1929, %v2494, %v2490
  %v2496 = vlaneseq
  %v2497 = vshrl.u32 %v2496, 7
  %v2498 = vsub.s32 %v1931, %v2497
  %v2499 = vrot.slane %v1721, %v2498
  %v2500 = vsel %vm1936, %v2499, %v2495
  %v2501 = vlaneseq
  %v2502 = vshrl.u32 %v2501, 7
  %v2503 = vsub.s32 %v1938, %v2502
  %v2504 = vrot.slane %v1723, %v2503
  %v2505 = vsel %vm1943, %v2504, %v2500
  %v2506 = vlaneseq
  %v2507 = vshrl.u32 %v2506, 7
  %v2508 = vsub.s32 %v1945, %v2507
  %v2509 = vrot.slane %v1725, %v2508
  %v2510 = vsel %vm1950, %v2509, %v2505
  %v2511 = vlaneseq
  %v2512 = vshrl.u32 %v2511, 7
  %v2513 = vsub.s32 %v1952, %v2512
  %v2514 = vrot.slane %v1727, %v2513
  %v2515 = vsel %vm1957, %v2514, %v2510
  %v2516 = vlaneseq
  %v2517 = vshrl.u32 %v2516, 7
  %v2518 = vsub.s32 %v1959, %v2517
  %v2519 = vrot.slane %v1729, %v2518
  %v2520 = vsel %vm1964, %v2519, %v2515
  %v2521 = vlaneseq
  %v2522 = vshrl.u32 %v2521, 7
  %v2523 = vsub.s32 %v1966, %v2522
  %v2524 = vrot.slane %v1731, %v2523
  %v2525 = vsel %vm1971, %v2524, %v2520
  %vm2526 = vcmask 1041409
  %v2527 = vsel %vm2526, %v2051, %v1972
  %vm2528 = vcmask 1042434
  %v2529 = vsel %vm2528, %v2130, %v2527
  %vm2530 = vcmask 1043459
  %v2531 = vsel %vm2530, %v2209, %v2529
  %vm2532 = vcmask 1044484
  %v2533 = vsel %vm2532, %v2288, %v2531
  %vm2534 = vcmask 1045509
  %v2535 = vsel %vm2534, %v2367, %v2533
  %vm2536 = vcmask 1046534
  %v2537 = vsel %vm2536, %v2446, %v2535
  %vm2538 = vcmask 1047559
  %v2539 = vsel %vm2538, %v2525, %v2537
  %v2541 = vsel %vm1733, -1e+30, %v2539
  %2542 = vmax.xlane.f32.xlu0 %v2541
  %v2543 = vpop.xlane.xlu0 %2542
  %v2544 = vsub.f32 %v2541, %v2543
  %v2545 = vmul.f32 %v2544, 1.442695
  %v2546 = vpow.pop %v2545
  %2547 = vadd.xlane.f32.xlu0 %v2546
  %v2548 = vpop.xlane.xlu0 %2547
  %v2549 = vrcp.pop %v2548
  %v2550 = vmul.f32 %v2546, %v2549
  %v2552 = vcombine.high %v2550, %v2550
  %v2554 = vunpack.c.l.s4 1966171168
  %v2555 = vunpack.c.0.s8 %v2554
  %v2556 = vlaneseq
  %v2557 = vshrl.u32 %v2556, 7
  %v2558 = vsub.s32 %v2555, %v2557
  %v2559 = vrot.slane %v2550, %v2558
  %v2561 = vunpack.c.l.s4 1966171168
  %v2562 = vunpack.c.0.s8 %v2561
  %v2563 = vlaneseq
  %v2564 = vshrl.u32 %v2563, 7
  %v2565 = vsub.s32 %v2562, %v2564
  %v2566 = vrot.slane %v2552, %v2565
  %v2567 = vcombine.high %v2559, %v2559
  %v2568 = vcombine.high %v2566, %v2566
  %v2570 = vunpack.c.l.s4 1966171168
  %v2571 = vunpack.c.0.s8 %v2570
  %v2572 = vlaneseq
  %v2573 = vshrl.u32 %v2572, 7
  %v2574 = vsub.s32 %v2571, %v2573
  %v2575 = vrot.slane %v2559, %v2574
  %v2577 = vunpack.c.l.s4 1966171168
  %v2578 = vunpack.c.0.s8 %v2577
  %v2579 = vlaneseq
  %v2580 = vshrl.u32 %v2579, 7
  %v2581 = vsub.s32 %v2578, %v2580
  %v2582 = vrot.slane %v2566, %v2581
  %v2584 = vunpack.c.l.s4 1966171168
  %v2585 = vunpack.c.0.s8 %v2584
  %v2586 = vlaneseq
  %v2587 = vshrl.u32 %v2586, 7
  %v2588 = vsub.s32 %v2585, %v2587
  %v2589 = vrot.slane %v2567, %v2588
  %v2591 = vunpack.c.l.s4 1966171168
  %v2592 = vunpack.c.0.s8 %v2591
  %v2593 = vlaneseq
  %v2594 = vshrl.u32 %v2593, 7
  %v2595 = vsub.s32 %v2592, %v2594
  %v2596 = vrot.slane %v2568, %v2595
  %v2597 = vcombine.high %v2575, %v2575
  %v2598 = vcombine.high %v2582, %v2582
  %v2599 = vcombine.high %v2589, %v2589
  %v2600 = vcombine.high %v2596, %v2596
  %2609 = vmatprep.subr.mxu0 0.0
  %2610 = vmatpush1.msra.mxu0 %v50
  %2611 = vmatprep.subr.mxu0 0.0
  %2612 = vmatpush1.msra.mxu0 %v49
  %2613 = vmatprep.subr.mxu0 0.0
  %2614 = vmatpush1.msra.mxu0 %v48
  %2615 = vmatprep.subr.mxu0 0.0
  %2616 = vmatpush1.msra.mxu0 %v47
  %2617 = vmatprep.subr.mxu0 0.0
  %2618 = vmatpush1.msra.mxu0 %v46
  %2619 = vmatprep.subr.mxu0 0.0
  %2620 = vmatpush1.msra.mxu0 %v45
  %2621 = vmatprep.subr.mxu0 0.0
  %2622 = vmatpush1.msra.mxu0 %v44
  %2623 = vmatprep.subr.mxu0 0.0
  %2624 = vmatpush1.msra.mxu0 %v43
  %2625 = vmatprep.subr.mxu0 0.0
  %2626 = vmatpush1.msra.mxu0 %v42
  %2627 = vmatprep.subr.mxu0 0.0
  %2628 = vmatpush1.msra.mxu0 %v41
  %2629 = vmatprep.subr.mxu0 0.0
  %2630 = vmatpush1.msra.mxu0 %v40
  %2631 = vmatprep.subr.mxu0 0.0
  %2632 = vmatpush1.msra.mxu0 %v39
  %2633 = vmatprep.subr.mxu0 0.0
  %2634 = vmatpush1.msra.mxu0 %v38
  %2635 = vmatprep.subr.mxu0 0.0
  %2636 = vmatpush1.msra.mxu0 %v37
  %2637 = vmatprep.subr.mxu0 0.0
  %2638 = vmatpush1.msra.mxu0 %v36
  %2639 = vmatprep.subr.mxu0 0.0
  %2640 = vmatpush1.msra.mxu0 %v35
  %2641 = vmatprep.subr.mxu0 0.0
  %2642 = vmatpush2.msra.mxu0 0.0
  %2643 = vmatprep.subr.mxu0 0.0
  %2644 = vmatpush2.msra.mxu0 0.0
  %2645 = vmatprep.subr.mxu0 0.0
  %2646 = vmatpush2.msra.mxu0 0.0
  %2647 = vmatprep.subr.mxu0 0.0
  %2648 = vmatpush2.msra.mxu0 0.0
  %2649 = vmatprep.subr.mxu0 0.0
  %2650 = vmatpush2.msra.mxu0 0.0
  %2651 = vmatprep.subr.mxu0 0.0
  %2652 = vmatpush2.msra.mxu0 0.0
  %2653 = vmatprep.subr.mxu0 0.0
  %2654 = vmatpush2.msra.mxu0 0.0
  %2655 = vmatprep.subr.mxu0 0.0
  %2656 = vmatpush2.msra.mxu0 0.0
  %2657 = vmatprep.subr.mxu0 0.0
  %2658 = vmatpush2.msra.mxu0 0.0
  %2659 = vmatprep.subr.mxu0 0.0
  %2660 = vmatpush2.msra.mxu0 0.0
  %2661 = vmatprep.subr.mxu0 0.0
  %2662 = vmatpush2.msra.mxu0 0.0
  %2663 = vmatprep.subr.mxu0 0.0
  %2664 = vmatpush2.msra.mxu0 0.0
  %2665 = vmatprep.subr.mxu0 0.0
  %2666 = vmatpush2.msra.mxu0 0.0
  %2667 = vmatprep.subr.mxu0 0.0
  %2668 = vmatpush2.msra.mxu0 0.0
  %2669 = vmatprep.subr.mxu0 0.0
  %2670 = vmatpush2.msra.mxu0 0.0
  %2671 = vmatprep.subr.mxu0 0.0
  %2672 = vmatpush2.msra.mxu0 0.0
  %2673 = vmatprep.mubr.f32.mxu0 0.0
  %2674 = vmatmul.mubr.f32.gmra.mxu0 %v2575
  %v2675 = vpop.f32.mrf.mxu0
  %v2676 = vadd.f32 0.0, %v2675
  %v2677 = vpop.f32.mrf.mxu0
  %2678 = vdwg.mxu0
  %2679 = vmatprep.subr.mxu0 0.0
  %2680 = vmatpush1.msra.mxu0 %v66
  %2681 = vmatprep.subr.mxu0 0.0
  %2682 = vmatpush1.msra.mxu0 %v65
  %2683 = vmatprep.subr.mxu0 0.0
  %2684 = vmatpush1.msra.mxu0 %v64
  %2685 = vmatprep.subr.mxu0 0.0
  %2686 = vmatpush1.msra.mxu0 %v63
  %2687 = vmatprep.subr.mxu0 0.0
  %2688 = vmatpush1.msra.mxu0 %v62
  %2689 = vmatprep.subr.mxu0 0.0
  %2690 = vmatpush1.msra.mxu0 %v61
  %2691 = vmatprep.subr.mxu0 0.0
  %2692 = vmatpush1.msra.mxu0 %v60
  %2693 = vmatprep.subr.mxu0 0.0
  %2694 = vmatpush1.msra.mxu0 %v59
  %2695 = vmatprep.subr.mxu0 0.0
  %2696 = vmatpush1.msra.mxu0 %v58
  %2697 = vmatprep.subr.mxu0 0.0
  %2698 = vmatpush1.msra.mxu0 %v57
  %2699 = vmatprep.subr.mxu0 0.0
  %2700 = vmatpush1.msra.mxu0 %v56
  %2701 = vmatprep.subr.mxu0 0.0
  %2702 = vmatpush1.msra.mxu0 %v55
  %2703 = vmatprep.subr.mxu0 0.0
  %2704 = vmatpush1.msra.mxu0 %v54
  %2705 = vmatprep.subr.mxu0 0.0
  %2706 = vmatpush1.msra.mxu0 %v53
  %2707 = vmatprep.subr.mxu0 0.0
  %2708 = vmatpush1.msra.mxu0 %v52
  %2709 = vmatprep.subr.mxu0 0.0
  %2710 = vmatpush1.msra.mxu0 %v51
  %2711 = vmatprep.subr.mxu0 0.0
  %2712 = vmatpush2.msra.mxu0 0.0
  %2713 = vmatprep.subr.mxu0 0.0
  %2714 = vmatpush2.msra.mxu0 0.0
  %2715 = vmatprep.subr.mxu0 0.0
  %2716 = vmatpush2.msra.mxu0 0.0
  %2717 = vmatprep.subr.mxu0 0.0
  %2718 = vmatpush2.msra.mxu0 0.0
  %2719 = vmatprep.subr.mxu0 0.0
  %2720 = vmatpush2.msra.mxu0 0.0
  %2721 = vmatprep.subr.mxu0 0.0
  %2722 = vmatpush2.msra.mxu0 0.0
  %2723 = vmatprep.subr.mxu0 0.0
  %2724 = vmatpush2.msra.mxu0 0.0
  %2725 = vmatprep.subr.mxu0 0.0
  %2726 = vmatpush2.msra.mxu0 0.0
  %2727 = vmatprep.subr.mxu0 0.0
  %2728 = vmatpush2.msra.mxu0 0.0
  %2729 = vmatprep.subr.mxu0 0.0
  %2730 = vmatpush2.msra.mxu0 0.0
  %2731 = vmatprep.subr.mxu0 0.0
  %2732 = vmatpush2.msra.mxu0 0.0
  %2733 = vmatprep.subr.mxu0 0.0
  %2734 = vmatpush2.msra.mxu0 0.0
  %2735 = vmatprep.subr.mxu0 0.0
  %2736 = vmatpush2.msra.mxu0 0.0
  %2737 = vmatprep.subr.mxu0 0.0
  %2738 = vmatpush2.msra.mxu0 0.0
  %2739 = vmatprep.subr.mxu0 0.0
  %2740 = vmatpush2.msra.mxu0 0.0
  %2741 = vmatprep.subr.mxu0 0.0
  %2742 = vmatpush2.msra.mxu0 0.0
  %2743 = vmatprep.mubr.f32.mxu0 0.0
  %2744 = vmatmul.mubr.f32.gmra.mxu0 %v2589
  %v2745 = vpop.f32.mrf.mxu0
  %v2746 = vadd.f32 0.0, %v2745
  %v2747 = vpop.f32.mrf.mxu0
  %2748 = vdwg.mxu0
  %2749 = vmatprep.subr.mxu0 0.0
  %2750 = vmatpush1.msra.mxu0 %v82
  %2751 = vmatprep.subr.mxu0 0.0
  %2752 = vmatpush1.msra.mxu0 %v81
  %2753 = vmatprep.subr.mxu0 0.0
  %2754 = vmatpush1.msra.mxu0 %v80
  %2755 = vmatprep.subr.mxu0 0.0
  %2756 = vmatpush1.msra.mxu0 %v79
  %2757 = vmatprep.subr.mxu0 0.0
  %2758 = vmatpush1.msra.mxu0 %v78
  %2759 = vmatprep.subr.mxu0 0.0
  %2760 = vmatpush1.msra.mxu0 %v77
  %2761 = vmatprep.subr.mxu0 0.0
  %2762 = vmatpush1.msra.mxu0 %v76
  %2763 = vmatprep.subr.mxu0 0.0
  %2764 = vmatpush1.msra.mxu0 %v75
  %2765 = vmatprep.subr.mxu0 0.0
  %2766 = vmatpush1.msra.mxu0 %v74
  %2767 = vmatprep.subr.mxu0 0.0
  %2768 = vmatpush1.msra.mxu0 %v73
  %2769 = vmatprep.subr.mxu0 0.0
  %2770 = vmatpush1.msra.mxu0 %v72
  %2771 = vmatprep.subr.mxu0 0.0
  %2772 = vmatpush1.msra.mxu0 %v71
  %2773 = vmatprep.subr.mxu0 0.0
  %2774 = vmatpush1.msra.mxu0 %v70
  %2775 = vmatprep.subr.mxu0 0.0
  %2776 = vmatpush1.msra.mxu0 %v69
  %2777 = vmatprep.subr.mxu0 0.0
  %2778 = vmatpush1.msra.mxu0 %v68
  %2779 = vmatprep.subr.mxu0 0.0
  %2780 = vmatpush1.msra.mxu0 %v67
  %2781 = vmatprep.subr.mxu0 0.0
  %2782 = vmatpush2.msra.mxu0 0.0
  %2783 = vmatprep.subr.mxu0 0.0
  %2784 = vmatpush2.msra.mxu0 0.0
  %2785 = vmatprep.subr.mxu0 0.0
  %2786 = vmatpush2.msra.mxu0 0.0
  %2787 = vmatprep.subr.mxu0 0.0
  %2788 = vmatpush2.msra.mxu0 0.0
  %2789 = vmatprep.subr.mxu0 0.0
  %2790 = vmatpush2.msra.mxu0 0.0
  %2791 = vmatprep.subr.mxu0 0.0
  %2792 = vmatpush2.msra.mxu0 0.0
  %2793 = vmatprep.subr.mxu0 0.0
  %2794 = vmatpush2.msra.mxu0 0.0
  %2795 = vmatprep.subr.mxu0 0.0
  %2796 = vmatpush2.msra.mxu0 0.0
  %2797 = vmatprep.subr.mxu0 0.0
  %2798 = vmatpush2.msra.mxu0 0.0
  %2799 = vmatprep.subr.mxu0 0.0
  %2800 = vmatpush2.msra.mxu0 0.0
  %2801 = vmatprep.subr.mxu0 0.0
  %2802 = vmatpush2.msra.mxu0 0.0
  %2803 = vmatprep.subr.mxu0 0.0
  %2804 = vmatpush2.msra.mxu0 0.0
  %2805 = vmatprep.subr.mxu0 0.0
  %2806 = vmatpush2.msra.mxu0 0.0
  %2807 = vmatprep.subr.mxu0 0.0
  %2808 = vmatpush2.msra.mxu0 0.0
  %2809 = vmatprep.subr.mxu0 0.0
  %2810 = vmatpush2.msra.mxu0 0.0
  %2811 = vmatprep.subr.mxu0 0.0
  %2812 = vmatpush2.msra.mxu0 0.0
  %2813 = vmatprep.mubr.f32.mxu0 0.0
  %2814 = vmatmul.mubr.f32.gmra.mxu0 %v2597
  %v2815 = vpop.f32.mrf.mxu0
  %v2816 = vadd.f32 0.0, %v2815
  %v2817 = vpop.f32.mrf.mxu0
  %2818 = vdwg.mxu0
  %2819 = vmatprep.subr.mxu0 0.0
  %2820 = vmatpush1.msra.mxu0 %v98
  %2821 = vmatprep.subr.mxu0 0.0
  %2822 = vmatpush1.msra.mxu0 %v97
  %2823 = vmatprep.subr.mxu0 0.0
  %2824 = vmatpush1.msra.mxu0 %v96
  %2825 = vmatprep.subr.mxu0 0.0
  %2826 = vmatpush1.msra.mxu0 %v95
  %2827 = vmatprep.subr.mxu0 0.0
  %2828 = vmatpush1.msra.mxu0 %v94
  %2829 = vmatprep.subr.mxu0 0.0
  %2830 = vmatpush1.msra.mxu0 %v93
  %2831 = vmatprep.subr.mxu0 0.0
  %2832 = vmatpush1.msra.mxu0 %v92
  %2833 = vmatprep.subr.mxu0 0.0
  %2834 = vmatpush1.msra.mxu0 %v91
  %2835 = vmatprep.subr.mxu0 0.0
  %2836 = vmatpush1.msra.mxu0 %v90
  %2837 = vmatprep.subr.mxu0 0.0
  %2838 = vmatpush1.msra.mxu0 %v89
  %2839 = vmatprep.subr.mxu0 0.0
  %2840 = vmatpush1.msra.mxu0 %v88
  %2841 = vmatprep.subr.mxu0 0.0
  %2842 = vmatpush1.msra.mxu0 %v87
  %2843 = vmatprep.subr.mxu0 0.0
  %2844 = vmatpush1.msra.mxu0 %v86
  %2845 = vmatprep.subr.mxu0 0.0
  %2846 = vmatpush1.msra.mxu0 %v85
  %2847 = vmatprep.subr.mxu0 0.0
  %2848 = vmatpush1.msra.mxu0 %v84
  %2849 = vmatprep.subr.mxu0 0.0
  %2850 = vmatpush1.msra.mxu0 %v83
  %2851 = vmatprep.subr.mxu0 0.0
  %2852 = vmatpush2.msra.mxu0 0.0
  %2853 = vmatprep.subr.mxu0 0.0
  %2854 = vmatpush2.msra.mxu0 0.0
  %2855 = vmatprep.subr.mxu0 0.0
  %2856 = vmatpush2.msra.mxu0 0.0
  %2857 = vmatprep.subr.mxu0 0.0
  %2858 = vmatpush2.msra.mxu0 0.0
  %2859 = vmatprep.subr.mxu0 0.0
  %2860 = vmatpush2.msra.mxu0 0.0
  %2861 = vmatprep.subr.mxu0 0.0
  %2862 = vmatpush2.msra.mxu0 0.0
  %2863 = vmatprep.subr.mxu0 0.0
  %2864 = vmatpush2.msra.mxu0 0.0
  %2865 = vmatprep.subr.mxu0 0.0
  %2866 = vmatpush2.msra.mxu0 0.0
  %2867 = vmatprep.subr.mxu0 0.0
  %2868 = vmatpush2.msra.mxu0 0.0
  %2869 = vmatprep.subr.mxu0 0.0
  %2870 = vmatpush2.msra.mxu0 0.0
  %2871 = vmatprep.subr.mxu0 0.0
  %2872 = vmatpush2.msra.mxu0 0.0
  %2873 = vmatprep.subr.mxu0 0.0
  %2874 = vmatpush2.msra.mxu0 0.0
  %2875 = vmatprep.subr.mxu0 0.0
  %2876 = vmatpush2.msra.mxu0 0.0
  %2877 = vmatprep.subr.mxu0 0.0
  %2878 = vmatpush2.msra.mxu0 0.0
  %2879 = vmatprep.subr.mxu0 0.0
  %2880 = vmatpush2.msra.mxu0 0.0
  %2881 = vmatprep.subr.mxu0 0.0
  %2882 = vmatpush2.msra.mxu0 0.0
  %2883 = vmatprep.mubr.f32.mxu0 0.0
  %2884 = vmatmul.mubr.f32.gmra.mxu0 %v2599
  %v2885 = vpop.f32.mrf.mxu0
  %v2886 = vadd.f32 0.0, %v2885
  %v2887 = vpop.f32.mrf.mxu0
  %2888 = vdwg.mxu0
  %2889 = vmatprep.subr.mxu0 0.0
  %2890 = vmatpush1.msra.mxu0 %v114
  %2891 = vmatprep.subr.mxu0 0.0
  %2892 = vmatpush1.msra.mxu0 %v113
  %2893 = vmatprep.subr.mxu0 0.0
  %2894 = vmatpush1.msra.mxu0 %v112
  %2895 = vmatprep.subr.mxu0 0.0
  %2896 = vmatpush1.msra.mxu0 %v111
  %2897 = vmatprep.subr.mxu0 0.0
  %2898 = vmatpush1.msra.mxu0 %v110
  %2899 = vmatprep.subr.mxu0 0.0
  %2900 = vmatpush1.msra.mxu0 %v109
  %2901 = vmatprep.subr.mxu0 0.0
  %2902 = vmatpush1.msra.mxu0 %v108
  %2903 = vmatprep.subr.mxu0 0.0
  %2904 = vmatpush1.msra.mxu0 %v107
  %2905 = vmatprep.subr.mxu0 0.0
  %2906 = vmatpush1.msra.mxu0 %v106
  %2907 = vmatprep.subr.mxu0 0.0
  %2908 = vmatpush1.msra.mxu0 %v105
  %2909 = vmatprep.subr.mxu0 0.0
  %2910 = vmatpush1.msra.mxu0 %v104
  %2911 = vmatprep.subr.mxu0 0.0
  %2912 = vmatpush1.msra.mxu0 %v103
  %2913 = vmatprep.subr.mxu0 0.0
  %2914 = vmatpush1.msra.mxu0 %v102
  %2915 = vmatprep.subr.mxu0 0.0
  %2916 = vmatpush1.msra.mxu0 %v101
  %2917 = vmatprep.subr.mxu0 0.0
  %2918 = vmatpush1.msra.mxu0 %v100
  %2919 = vmatprep.subr.mxu0 0.0
  %2920 = vmatpush1.msra.mxu0 %v99
  %2921 = vmatprep.subr.mxu0 0.0
  %2922 = vmatpush2.msra.mxu0 0.0
  %2923 = vmatprep.subr.mxu0 0.0
  %2924 = vmatpush2.msra.mxu0 0.0
  %2925 = vmatprep.subr.mxu0 0.0
  %2926 = vmatpush2.msra.mxu0 0.0
  %2927 = vmatprep.subr.mxu0 0.0
  %2928 = vmatpush2.msra.mxu0 0.0
  %2929 = vmatprep.subr.mxu0 0.0
  %2930 = vmatpush2.msra.mxu0 0.0
  %2931 = vmatprep.subr.mxu0 0.0
  %2932 = vmatpush2.msra.mxu0 0.0
  %2933 = vmatprep.subr.mxu0 0.0
  %2934 = vmatpush2.msra.mxu0 0.0
  %2935 = vmatprep.subr.mxu0 0.0
  %2936 = vmatpush2.msra.mxu0 0.0
  %2937 = vmatprep.subr.mxu0 0.0
  %2938 = vmatpush2.msra.mxu0 0.0
  %2939 = vmatprep.subr.mxu0 0.0
  %2940 = vmatpush2.msra.mxu0 0.0
  %2941 = vmatprep.subr.mxu0 0.0
  %2942 = vmatpush2.msra.mxu0 0.0
  %2943 = vmatprep.subr.mxu0 0.0
  %2944 = vmatpush2.msra.mxu0 0.0
  %2945 = vmatprep.subr.mxu0 0.0
  %2946 = vmatpush2.msra.mxu0 0.0
  %2947 = vmatprep.subr.mxu0 0.0
  %2948 = vmatpush2.msra.mxu0 0.0
  %2949 = vmatprep.subr.mxu0 0.0
  %2950 = vmatpush2.msra.mxu0 0.0
  %2951 = vmatprep.subr.mxu0 0.0
  %2952 = vmatpush2.msra.mxu0 0.0
  %2953 = vmatprep.mubr.f32.mxu0 0.0
  %2954 = vmatmul.mubr.f32.gmra.mxu0 %v2582
  %v2955 = vpop.f32.mrf.mxu0
  %v2956 = vadd.f32 0.0, %v2955
  %v2957 = vpop.f32.mrf.mxu0
  %2958 = vdwg.mxu0
  %2959 = vmatprep.subr.mxu0 0.0
  %2960 = vmatpush1.msra.mxu0 %v130
  %2961 = vmatprep.subr.mxu0 0.0
  %2962 = vmatpush1.msra.mxu0 %v129
  %2963 = vmatprep.subr.mxu0 0.0
  %2964 = vmatpush1.msra.mxu0 %v128
  %2965 = vmatprep.subr.mxu0 0.0
  %2966 = vmatpush1.msra.mxu0 %v127
  %2967 = vmatprep.subr.mxu0 0.0
  %2968 = vmatpush1.msra.mxu0 %v126
  %2969 = vmatprep.subr.mxu0 0.0
  %2970 = vmatpush1.msra.mxu0 %v125
  %2971 = vmatprep.subr.mxu0 0.0
  %2972 = vmatpush1.msra.mxu0 %v124
  %2973 = vmatprep.subr.mxu0 0.0
  %2974 = vmatpush1.msra.mxu0 %v123
  %2975 = vmatprep.subr.mxu0 0.0
  %2976 = vmatpush1.msra.mxu0 %v122
  %2977 = vmatprep.subr.mxu0 0.0
  %2978 = vmatpush1.msra.mxu0 %v121
  %2979 = vmatprep.subr.mxu0 0.0
  %2980 = vmatpush1.msra.mxu0 %v120
  %2981 = vmatprep.subr.mxu0 0.0
  %2982 = vmatpush1.msra.mxu0 %v119
  %2983 = vmatprep.subr.mxu0 0.0
  %2984 = vmatpush1.msra.mxu0 %v118
  %2985 = vmatprep.subr.mxu0 0.0
  %2986 = vmatpush1.msra.mxu0 %v117
  %2987 = vmatprep.subr.mxu0 0.0
  %2988 = vmatpush1.msra.mxu0 %v116
  %2989 = vmatprep.subr.mxu0 0.0
  %2990 = vmatpush1.msra.mxu0 %v115
  %2991 = vmatprep.subr.mxu0 0.0
  %2992 = vmatpush2.msra.mxu0 0.0
  %2993 = vmatprep.subr.mxu0 0.0
  %2994 = vmatpush2.msra.mxu0 0.0
  %2995 = vmatprep.subr.mxu0 0.0
  %2996 = vmatpush2.msra.mxu0 0.0
  %2997 = vmatprep.subr.mxu0 0.0
  %2998 = vmatpush2.msra.mxu0 0.0
  %2999 = vmatprep.subr.mxu0 0.0
  %3000 = vmatpush2.msra.mxu0 0.0
  %3001 = vmatprep.subr.mxu0 0.0
  %3002 = vmatpush2.msra.mxu0 0.0
  %3003 = vmatprep.subr.mxu0 0.0
  %3004 = vmatpush2.msra.mxu0 0.0
  %3005 = vmatprep.subr.mxu0 0.0
  %3006 = vmatpush2.msra.mxu0 0.0
  %3007 = vmatprep.subr.mxu0 0.0
  %3008 = vmatpush2.msra.mxu0 0.0
  %3009 = vmatprep.subr.mxu0 0.0
  %3010 = vmatpush2.msra.mxu0 0.0
  %3011 = vmatprep.subr.mxu0 0.0
  %3012 = vmatpush2.msra.mxu0 0.0
  %3013 = vmatprep.subr.mxu0 0.0
  %3014 = vmatpush2.msra.mxu0 0.0
  %3015 = vmatprep.subr.mxu0 0.0
  %3016 = vmatpush2.msra.mxu0 0.0
  %3017 = vmatprep.subr.mxu0 0.0
  %3018 = vmatpush2.msra.mxu0 0.0
  %3019 = vmatprep.subr.mxu0 0.0
  %3020 = vmatpush2.msra.mxu0 0.0
  %3021 = vmatprep.subr.mxu0 0.0
  %3022 = vmatpush2.msra.mxu0 0.0
  %3023 = vmatprep.mubr.f32.mxu0 0.0
  %3024 = vmatmul.mubr.f32.gmra.mxu0 %v2596
  %v3025 = vpop.f32.mrf.mxu0
  %v3026 = vadd.f32 0.0, %v3025
  %v3027 = vpop.f32.mrf.mxu0
  %3028 = vdwg.mxu0
  %3029 = vmatprep.subr.mxu0 0.0
  %3030 = vmatpush1.msra.mxu0 %v146
  %3031 = vmatprep.subr.mxu0 0.0
  %3032 = vmatpush1.msra.mxu0 %v145
  %3033 = vmatprep.subr.mxu0 0.0
  %3034 = vmatpush1.msra.mxu0 %v144
  %3035 = vmatprep.subr.mxu0 0.0
  %3036 = vmatpush1.msra.mxu0 %v143
  %3037 = vmatprep.subr.mxu0 0.0
  %3038 = vmatpush1.msra.mxu0 %v142
  %3039 = vmatprep.subr.mxu0 0.0
  %3040 = vmatpush1.msra.mxu0 %v141
  %3041 = vmatprep.subr.mxu0 0.0
  %3042 = vmatpush1.msra.mxu0 %v140
  %3043 = vmatprep.subr.mxu0 0.0
  %3044 = vmatpush1.msra.mxu0 %v139
  %3045 = vmatprep.subr.mxu0 0.0
  %3046 = vmatpush1.msra.mxu0 %v138
  %3047 = vmatprep.subr.mxu0 0.0
  %3048 = vmatpush1.msra.mxu0 %v137
  %3049 = vmatprep.subr.mxu0 0.0
  %3050 = vmatpush1.msra.mxu0 %v136
  %3051 = vmatprep.subr.mxu0 0.0
  %3052 = vmatpush1.msra.mxu0 %v135
  %3053 = vmatprep.subr.mxu0 0.0
  %3054 = vmatpush1.msra.mxu0 %v134
  %3055 = vmatprep.subr.mxu0 0.0
  %3056 = vmatpush1.msra.mxu0 %v133
  %3057 = vmatprep.subr.mxu0 0.0
  %3058 = vmatpush1.msra.mxu0 %v132
  %3059 = vmatprep.subr.mxu0 0.0
  %3060 = vmatpush1.msra.mxu0 %v131
  %3061 = vmatprep.subr.mxu0 0.0
  %3062 = vmatpush2.msra.mxu0 0.0
  %3063 = vmatprep.subr.mxu0 0.0
  %3064 = vmatpush2.msra.mxu0 0.0
  %3065 = vmatprep.subr.mxu0 0.0
  %3066 = vmatpush2.msra.mxu0 0.0
  %3067 = vmatprep.subr.mxu0 0.0
  %3068 = vmatpush2.msra.mxu0 0.0
  %3069 = vmatprep.subr.mxu0 0.0
  %3070 = vmatpush2.msra.mxu0 0.0
  %3071 = vmatprep.subr.mxu0 0.0
  %3072 = vmatpush2.msra.mxu0 0.0
  %3073 = vmatprep.subr.mxu0 0.0
  %3074 = vmatpush2.msra.mxu0 0.0
  %3075 = vmatprep.subr.mxu0 0.0
  %3076 = vmatpush2.msra.mxu0 0.0
  %3077 = vmatprep.subr.mxu0 0.0
  %3078 = vmatpush2.msra.mxu0 0.0
  %3079 = vmatprep.subr.mxu0 0.0
  %3080 = vmatpush2.msra.mxu0 0.0
  %3081 = vmatprep.subr.mxu0 0.0
  %3082 = vmatpush2.msra.mxu0 0.0
  %3083 = vmatprep.subr.mxu0 0.0
  %3084 = vmatpush2.msra.mxu0 0.0
  %3085 = vmatprep.subr.mxu0 0.0
  %3086 = vmatpush2.msra.mxu0 0.0
  %3087 = vmatprep.subr.mxu0 0.0
  %3088 = vmatpush2.msra.mxu0 0.0
  %3089 = vmatprep.subr.mxu0 0.0
  %3090 = vmatpush2.msra.mxu0 0.0
  %3091 = vmatprep.subr.mxu0 0.0
  %3092 = vmatpush2.msra.mxu0 0.0
  %3093 = vmatprep.mubr.f32.mxu0 0.0
  %3094 = vmatmul.mubr.f32.gmra.mxu0 %v2598
  %v3095 = vpop.f32.mrf.mxu0
  %v3096 = vadd.f32 0.0, %v3095
  %v3097 = vpop.f32.mrf.mxu0
  %3098 = vdwg.mxu0
  %3099 = vmatprep.subr.mxu0 0.0
  %3100 = vmatpush1.msra.mxu0 %v162
  %3101 = vmatprep.subr.mxu0 0.0
  %3102 = vmatpush1.msra.mxu0 %v161
  %3103 = vmatprep.subr.mxu0 0.0
  %3104 = vmatpush1.msra.mxu0 %v160
  %3105 = vmatprep.subr.mxu0 0.0
  %3106 = vmatpush1.msra.mxu0 %v159
  %3107 = vmatprep.subr.mxu0 0.0
  %3108 = vmatpush1.msra.mxu0 %v158
  %3109 = vmatprep.subr.mxu0 0.0
  %3110 = vmatpush1.msra.mxu0 %v157
  %3111 = vmatprep.subr.mxu0 0.0
  %3112 = vmatpush1.msra.mxu0 %v156
  %3113 = vmatprep.subr.mxu0 0.0
  %3114 = vmatpush1.msra.mxu0 %v155
  %3115 = vmatprep.subr.mxu0 0.0
  %3116 = vmatpush1.msra.mxu0 %v154
  %3117 = vmatprep.subr.mxu0 0.0
  %3118 = vmatpush1.msra.mxu0 %v153
  %3119 = vmatprep.subr.mxu0 0.0
  %3120 = vmatpush1.msra.mxu0 %v152
  %3121 = vmatprep.subr.mxu0 0.0
  %3122 = vmatpush1.msra.mxu0 %v151
  %3123 = vmatprep.subr.mxu0 0.0
  %3124 = vmatpush1.msra.mxu0 %v150
  %3125 = vmatprep.subr.mxu0 0.0
  %3126 = vmatpush1.msra.mxu0 %v149
  %3127 = vmatprep.subr.mxu0 0.0
  %3128 = vmatpush1.msra.mxu0 %v148
  %3129 = vmatprep.subr.mxu0 0.0
  %3130 = vmatpush1.msra.mxu0 %v147
  %3131 = vmatprep.subr.mxu0 0.0
  %3132 = vmatpush2.msra.mxu0 0.0
  %3133 = vmatprep.subr.mxu0 0.0
  %3134 = vmatpush2.msra.mxu0 0.0
  %3135 = vmatprep.subr.mxu0 0.0
  %3136 = vmatpush2.msra.mxu0 0.0
  %3137 = vmatprep.subr.mxu0 0.0
  %3138 = vmatpush2.msra.mxu0 0.0
  %3139 = vmatprep.subr.mxu0 0.0
  %3140 = vmatpush2.msra.mxu0 0.0
  %3141 = vmatprep.subr.mxu0 0.0
  %3142 = vmatpush2.msra.mxu0 0.0
  %3143 = vmatprep.subr.mxu0 0.0
  %3144 = vmatpush2.msra.mxu0 0.0
  %3145 = vmatprep.subr.mxu0 0.0
  %3146 = vmatpush2.msra.mxu0 0.0
  %3147 = vmatprep.subr.mxu0 0.0
  %3148 = vmatpush2.msra.mxu0 0.0
  %3149 = vmatprep.subr.mxu0 0.0
  %3150 = vmatpush2.msra.mxu0 0.0
  %3151 = vmatprep.subr.mxu0 0.0
  %3152 = vmatpush2.msra.mxu0 0.0
  %3153 = vmatprep.subr.mxu0 0.0
  %3154 = vmatpush2.msra.mxu0 0.0
  %3155 = vmatprep.subr.mxu0 0.0
  %3156 = vmatpush2.msra.mxu0 0.0
  %3157 = vmatprep.subr.mxu0 0.0
  %3158 = vmatpush2.msra.mxu0 0.0
  %3159 = vmatprep.subr.mxu0 0.0
  %3160 = vmatpush2.msra.mxu0 0.0
  %3161 = vmatprep.subr.mxu0 0.0
  %3162 = vmatpush2.msra.mxu0 0.0
  %3163 = vmatprep.mubr.f32.mxu0 0.0
  %3164 = vmatmul.mubr.f32.gmra.mxu0 %v2600
  %v3165 = vpop.f32.mrf.mxu0
  %v3166 = vadd.f32 0.0, %v3165
  %v3167 = vpop.f32.mrf.mxu0
  %3168 = vdwg.mxu0
  %v3169 = vld [vmem:[%s7] sm:$0xff]
  %v3170 = vld [vmem:[%s7 + $0x8] sm:$0xff]
  %v3171 = vld [vmem:[%s7 + $0x10] sm:$0xff]
  %v3172 = vld [vmem:[%s7 + $0x18] sm:$0xff]
  %v3173 = vld [vmem:[%s7 + $0x20] sm:$0xff]
  %v3174 = vld [vmem:[%s7 + $0x28] sm:$0xff]
  %v3175 = vld [vmem:[%s7 + $0x30] sm:$0xff]
  %v3176 = vld [vmem:[%s7 + $0x38] sm:$0xff]
  %v3177 = vld [vmem:[%s7 + $0x40] sm:$0xff]
  %v3178 = vld [vmem:[%s7 + $0x48] sm:$0xff]
  %v3179 = vld [vmem:[%s7 + $0x50] sm:$0xff]
  %v3180 = vld [vmem:[%s7 + $0x58] sm:$0xff]
  %v3181 = vld [vmem:[%s7 + $0x60] sm:$0xff]
  %v3182 = vld [vmem:[%s7 + $0x68] sm:$0xff]
  %v3183 = vld [vmem:[%s7 + $0x70] sm:$0xff]
  %v3184 = vld [vmem:[%s7 + $0x78] sm:$0xff]
  %v3193 = vrot.slane %v2746, 7
  %v3194 = vsel %vm2526, %v3193, %v2676
  %v3195 = vrot.slane %v2816, 6
  %v3196 = vsel %vm2528, %v3195, %v3194
  %v3197 = vrot.slane %v2886, 5
  %v3198 = vsel %vm2530, %v3197, %v3196
  %v3199 = vrot.slane %v2956, 4
  %v3200 = vsel %vm2532, %v3199, %v3198
  %v3201 = vrot.slane %v3026, 3
  %v3202 = vsel %vm2534, %v3201, %v3200
  %v3203 = vrot.slane %v3096, 2
  %v3204 = vsel %vm2536, %v3203, %v3202
  %v3205 = vrot.slane %v3166, 1
  %v3206 = vsel %vm2538, %v3205, %v3204
  %3208 = vmatprep.subr.mxu0 0.0
  %3209 = vmatpush1.msra.mxu0 %v3184
  %3210 = vmatprep.subr.mxu0 0.0
  %3211 = vmatpush1.msra.mxu0 %v3183
  %3212 = vmatprep.subr.mxu0 0.0
  %3213 = vmatpush1.msra.mxu0 %v3182
  %3214 = vmatprep.subr.mxu0 0.0
  %3215 = vmatpush1.msra.mxu0 %v3181
  %3216 = vmatprep.subr.mxu0 0.0
  %3217 = vmatpush1.msra.mxu0 %v3180
  %3218 = vmatprep.subr.mxu0 0.0
  %3219 = vmatpush1.msra.mxu0 %v3179
  %3220 = vmatprep.subr.mxu0 0.0
  %3221 = vmatpush1.msra.mxu0 %v3178
  %3222 = vmatprep.subr.mxu0 0.0
  %3223 = vmatpush1.msra.mxu0 %v3177
  %3224 = vmatprep.subr.mxu0 0.0
  %3225 = vmatpush1.msra.mxu0 %v3176
  %3226 = vmatprep.subr.mxu0 0.0
  %3227 = vmatpush1.msra.mxu0 %v3175
  %3228 = vmatprep.subr.mxu0 0.0
  %3229 = vmatpush1.msra.mxu0 %v3174
  %3230 = vmatprep.subr.mxu0 0.0
  %3231 = vmatpush1.msra.mxu0 %v3173
  %3232 = vmatprep.subr.mxu0 0.0
  %3233 = vmatpush1.msra.mxu0 %v3172
  %3234 = vmatprep.subr.mxu0 0.0
  %3235 = vmatpush1.msra.mxu0 %v3171
  %3236 = vmatprep.subr.mxu0 0.0
  %3237 = vmatpush1.msra.mxu0 %v3170
  %3238 = vmatprep.subr.mxu0 0.0
  %3239 = vmatpush1.msra.mxu0 %v3169
  %3240 = vmatprep.subr.mxu0 0.0
  %3241 = vmatpush2.msra.mxu0 0.0
  %3242 = vmatprep.subr.mxu0 0.0
  %3243 = vmatpush2.msra.mxu0 0.0
  %3244 = vmatprep.subr.mxu0 0.0
  %3245 = vmatpush2.msra.mxu0 0.0
  %3246 = vmatprep.subr.mxu0 0.0
  %3247 = vmatpush2.msra.mxu0 0.0
  %3248 = vmatprep.subr.mxu0 0.0
  %3249 = vmatpush2.msra.mxu0 0.0
  %3250 = vmatprep.subr.mxu0 0.0
  %3251 = vmatpush2.msra.mxu0 0.0
  %3252 = vmatprep.subr.mxu0 0.0
  %3253 = vmatpush2.msra.mxu0 0.0
  %3254 = vmatprep.subr.mxu0 0.0
  %3255 = vmatpush2.msra.mxu0 0.0
  %3256 = vmatprep.subr.mxu0 0.0
  %3257 = vmatpush2.msra.mxu0 0.0
  %3258 = vmatprep.subr.mxu0 0.0
  %3259 = vmatpush2.msra.mxu0 0.0
  %3260 = vmatprep.subr.mxu0 0.0
  %3261 = vmatpush2.msra.mxu0 0.0
  %3262 = vmatprep.subr.mxu0 0.0
  %3263 = vmatpush2.msra.mxu0 0.0
  %3264 = vmatprep.subr.mxu0 0.0
  %3265 = vmatpush2.msra.mxu0 0.0
  %3266 = vmatprep.subr.mxu0 0.0
  %3267 = vmatpush2.msra.mxu0 0.0
  %3268 = vmatprep.subr.mxu0 0.0
  %3269 = vmatpush2.msra.mxu0 0.0
  %3270 = vmatprep.subr.mxu0 0.0
  %3271 = vmatpush2.msra.mxu0 0.0
  %3272 = vmatprep.mubr.f32.mxu0 0.0
  %3273 = vmatmul.mubr.f32.gmra.mxu0 %v3206
  %v3274 = vpop.f32.mrf.mxu0
  %v3275 = vadd.f32 %v264, %v3274
  %v3276 = vpop.f32.mrf.mxu0
  %3277 = vdwg.mxu0
  %v3278 = vld [vmem:[%s8] sm:$0x1]
  %v3280 = vlaneseq
  %v3281 = vshrl.u32 %v3280, 7
  %v3282 = vsub.s32 0, %v3281
  %v3283 = vrot.slane %v3278, %v3282
  %v3285 = vadd.f32 %v3275, %v3283
  %v3286 = vtanh.pop %v3285
  %3287 = vst [vmem:[%s9] sm:$0xff] %v3286
  %3288 = vst [vmem:[%s10] sm:$0xff] %v2550
  // Predicated region
  $region38: #{bahdanau_attention.1} parent=0 // pred_check
    _
  $region39: #{bahdanau_attention.1} parent=0 // pred_check_branch
    %3290 = sbr.rel (0) target = $region41
  $region40: #{bahdanau_attention.1} parent=0 // pred_region
    _
  $region41: #{bahdanau_attention.1} parent=0 // pred_fallthru
    _
  // Predicated region
  $region42: #{bahdanau_attention.1} parent=0 // pred_check
    _
  $region43: #{bahdanau_attention.1} parent=0 // pred_check_branch
    %3292 = sbr.rel (0) target = $region45
  $region44: #{bahdanau_attention.1} parent=0 // pred_region
    _
  $region45: #{bahdanau_attention.1} parent=0 // pred_fallthru
    _
  // Predicated region
  $region46: #{bahdanau_attention.1} parent=0 // pred_check
    _
  $region47: #{bahdanau_attention.1} parent=0 // pred_check_branch
    %3294 = sbr.rel (0) target = $region49
  $region48: #{bahdanau_attention.1} parent=0 // pred_region
    _
  $region49: #{bahdanau_attention.1} parent=0 // pred_fallthru
    _
  // Predicated region
  $region50: #{bahdanau_attention.1} parent=0 // pred_check
    _
  $region51: #{bahdanau_attention.1} parent=0 // pred_check_branch
    %3296 = sbr.rel (0) target = $region53
  $region52: #{bahdanau_attention.1} parent=0 // pred_region
    _
  $region53: #{bahdanau_attention.1} parent=0 // pred_fallthru
    _

</llo_original>
